<compile_context>
chip_gen: v6e
topology: v6e:2x2x1
jax: 0.10.0
libtpu: 0.0.40
codegen_flags: <defaults>
</compile_context>

<pallas_src>
import functools
import math

import jax
import jax.numpy as jnp
from jax.experimental import pallas as pl
from jax.experimental.pallas import tpu as pltpu


# ----------------------------------------------------------------------------
# generation-aware config (v5e/v6e: 128 MiB VMEM; v7x: 64 MiB, 2 TC, 3.2 TB/s)
# ----------------------------------------------------------------------------
def _device_kind():
    try:
        return jax.devices()[0].device_kind.lower()
    except Exception:
        return ""


_KIND = _device_kind()
_BIG_VMEM = ("v5" in _KIND) or ("v6" in _KIND)
_VMEM_LIMIT = (64 if _BIG_VMEM else 32) * 1024 * 1024
_LANE_TARGET = 8192 if _BIG_VMEM else 4096


# ----------------------------------------------------------------------------
# small helpers
# ----------------------------------------------------------------------------
def _erf_approx(x):
    # Abramowitz & Stegun 7.1.26, |err| < 1.5e-7 (Mosaic has no erf primitive).
    a1, a2, a3 = 0.254829592, -0.284496736, 1.421413741
    a4, a5, p = -1.453152027, 1.061405429, 0.3275911
    ax = jnp.abs(x)
    # divide -> EUP reciprocal (keeps VALU slot free in the fused decoder head)
    t = pl.reciprocal(1.0 + p * ax, approx=False)
    poly = t * (a1 + t * (a2 + t * (a3 + t * (a4 + t * a5))))
    e = 1.0 - poly * jnp.exp(-ax * ax)
    return jnp.where(x < 0, -e, e)


def _gelu_exact(x):
    # PyTorch F.gelu default: 0.5 * x * (1 + erf(x / sqrt(2)))
    return 0.5 * x * (1.0 + _erf_approx(x * 0.7071067811865476))


def _pick_lane_tile(n, target):
    """Largest lane tile t dividing n with t <= target; prefers t % 128 == 0."""
    if n <= target:
        return n
    t = target - (target % 128)
    while t >= 128:
        if n % t == 0:
            return t
        t -= 128
    # TODO(synk): handle awkward N (no 128-multiple divisor) with a masked or
    # padded last block instead of one full-axis block (VMEM risk for huge N).
    return n


# ----------------------------------------------------------------------------
# Kernel 1: SpectralConv2d channel mixing, frequency-on-lanes layout.
#   out[b, o, f] = sum_i x[b, i, f] * w[i, o, f]   (complex, 3-mult product)
#   blocks: x (1, Cin, TF), w (Cin, Cout, TF), out (1, Cout, TF)
# ----------------------------------------------------------------------------
def _spectral_kernel(xr_ref, xi_ref, wr_ref, wi_ref, or_ref, oi_ref):
    xr = xr_ref[0]            # (Cin, TF)
    xi = xi_ref[0]
    wr = wr_ref[...]          # (Cin, Cout, TF)
    wi = wi_ref[...]
    xs = xr + xi
    ws = wr + wi

    cin = xr.shape[0]
    cout = wr.shape[1]
    tf = xr.shape[1]

    rr = jnp.zeros((cout, tf), jnp.float32)
    ii = jnp.zeros((cout, tf), jnp.float32)
    kk = jnp.zeros((cout, tf), jnp.float32)
    # Short VPU MAC loop over Cin (<= width); each term is a lane-dense
    # (Cout, TF) multiply-add, (1,TF) operand sublane-broadcasts.
    for i in range(cin):
        xri = xr[i:i + 1, :]
        xii = xi[i:i + 1, :]
        xsi = xs[i:i + 1, :]
        rr = rr + xri * wr[i]
        ii = ii + xii * wi[i]
        kk = kk + xsi * ws[i]

    or_ref[0] = rr - ii            # real part
    oi_ref[0] = kk - rr - ii       # imag part (Gauss trick)


def _spectral_channel_mix(xr, xi, wr, wi):
    """xr/xi: (B, Cin, SF) f32, wr/wi: (Cin, Cout, SF) f32.
       Returns (out_r, out_i), each (B, Cout, SF) f32."""
    B, Cin, SF = xr.shape
    Cout = wr.shape[1]
    TF = _pick_lane_tile(SF, 2048)
    grid = (B, SF // TF)

    x_spec = pl.BlockSpec((1, Cin, TF), lambda b, f: (b, 0, f))
    w_spec = pl.BlockSpec((Cin, Cout, TF), lambda b, f: (0, 0, f))
    o_spec = pl.BlockSpec((1, Cout, TF), lambda b, f: (b, 0, f))

    return pl.pallas_call(
        _spectral_kernel,
        out_shape=(jax.ShapeDtypeStruct((B, Cout, SF), jnp.float32),
                   jax.ShapeDtypeStruct((B, Cout, SF), jnp.float32)),
        grid=grid,
        in_specs=[x_spec, x_spec, w_spec, w_spec],
        out_specs=(o_spec, o_spec),
        compiler_params=pltpu.CompilerParams(
            dimension_semantics=("parallel", "parallel"),
            vmem_limit_bytes=_VMEM_LIMIT),
        cost_estimate=pl.CostEstimate(
            flops=8 * B * Cin * Cout * SF,
            transcendentals=0,
            bytes_accessed=8 * SF * (B * Cin + Cin * Cout + B * Cout)),
    )(xr, xi, wr, wi)


# ----------------------------------------------------------------------------
# Kernel 2: channels-first 1x1 conv / linear:  y = W @ x + b (+ residual) (GELU)
#   x block: (1, Cin, TN), TN = lane-dense tile of N = dim_x * dim_t
# ----------------------------------------------------------------------------
def _conv1x1_kernel(x_ref, w_ref, b_ref, o_ref, *, apply_gelu):
    y = jnp.dot(w_ref[...], x_ref[0], preferred_element_type=jnp.float32)
    y = y + b_ref[...]
    if apply_gelu:
        y = _gelu_exact(y)
    o_ref[0] = y.astype(o_ref.dtype)


def _conv1x1_res_kernel(x_ref, r_ref, w_ref, b_ref, o_ref, *, apply_gelu):
    y = jnp.dot(w_ref[...], x_ref[0], preferred_element_type=jnp.float32)
    y = y + b_ref[...] + r_ref[0]
    if apply_gelu:
        y = _gelu_exact(y)
    o_ref[0] = y.astype(o_ref.dtype)


def conv1x1_cf(x, w, b, *, residual=None, gelu=False):
    """x: (B, Cin, N), w: (Cout, Cin), b: (Cout,), residual: (B, Cout, N)|None."""
    B, Cin, N = x.shape
    Cout = w.shape[0]
    TN = _pick_lane_tile(N, _LANE_TARGET)
    grid = (B, N // TN)
    bias = b.reshape(Cout, 1)

    x_spec = pl.BlockSpec((1, Cin, TN), lambda bb, nn: (bb, 0, nn))
    r_spec = pl.BlockSpec((1, Cout, TN), lambda bb, nn: (bb, 0, nn))
    w_spec = pl.BlockSpec((Cout, Cin), lambda bb, nn: (0, 0))
    b_spec = pl.BlockSpec((Cout, 1), lambda bb, nn: (0, 0))
    o_spec = pl.BlockSpec((1, Cout, TN), lambda bb, nn: (bb, 0, nn))

    n_res = 1 if residual is not None else 0
    common = dict(
        out_shape=jax.ShapeDtypeStruct((B, Cout, N), jnp.float32),
        grid=grid,
        out_specs=o_spec,
        compiler_params=pltpu.CompilerParams(
            dimension_semantics=("parallel", "parallel"),
            vmem_limit_bytes=_VMEM_LIMIT),
        cost_estimate=pl.CostEstimate(
            flops=2 * B * N * Cin * Cout,
            transcendentals=(B * N * Cout) if gelu else 0,
            bytes_accessed=4 * (B * N * (Cin + Cout * (1 + n_res))
                                + Cout * Cin + Cout)),
    )

    if residual is not None:
        return pl.pallas_call(
            functools.partial(_conv1x1_res_kernel, apply_gelu=gelu),
            in_specs=[x_spec, r_spec, w_spec, b_spec], **common,
        )(x, residual, w, bias)
    return pl.pallas_call(
        functools.partial(_conv1x1_kernel, apply_gelu=gelu),
        in_specs=[x_spec, w_spec, b_spec], **common,
    )(x, w, bias)


# ----------------------------------------------------------------------------
# Kernel 3: decoder head  fc1 -> GELU -> fc2, fused, channels-first
# ----------------------------------------------------------------------------
def _decoder_head_kernel(x_ref, w1_ref, b1_ref, w2_ref, b2_ref, o_ref):
    h = jnp.dot(w1_ref[...], x_ref[0], preferred_element_type=jnp.float32)
    h = _gelu_exact(h + b1_ref[...])
    y = jnp.dot(w2_ref[...], h, preferred_element_type=jnp.float32) + b2_ref[...]
    o_ref[0] = y.astype(o_ref.dtype)


def decoder_head_cf(x, w1, b1, w2, b2):
    """x: (B, C, N);  fc1: (H, C), (H,);  fc2: (O, H), (O,).  Returns (B, O, N)."""
    B, C, N = x.shape
    H = w1.shape[0]
    O = w2.shape[0]
    TN = _pick_lane_tile(N, _LANE_TARGET)
    return pl.pallas_call(
        _decoder_head_kernel,
        out_shape=jax.ShapeDtypeStruct((B, O, N), jnp.float32),
        grid=(B, N // TN),
        in_specs=[pl.BlockSpec((1, C, TN), lambda bb, nn: (bb, 0, nn)),
                  pl.BlockSpec((H, C), lambda bb, nn: (0, 0)),
                  pl.BlockSpec((H, 1), lambda bb, nn: (0, 0)),
                  pl.BlockSpec((O, H), lambda bb, nn: (0, 0)),
                  pl.BlockSpec((O, 1), lambda bb, nn: (0, 0))],
        out_specs=pl.BlockSpec((1, O, TN), lambda bb, nn: (bb, 0, nn)),
        compiler_params=pltpu.CompilerParams(
            dimension_semantics=("parallel", "parallel"),
            vmem_limit_bytes=_VMEM_LIMIT),
        cost_estimate=pl.CostEstimate(
            flops=2 * B * N * (C * H + H * O),
            transcendentals=B * N * H,
            bytes_accessed=4 * (B * N * (C + O) + H * C + O * H + H + O)),
    )(x, w1, b1.reshape(H, 1), w2, b2.reshape(O, 1))


# ----------------------------------------------------------------------------
# FNO layer (shared by FNO_layer and FNO_layer_trans: identical forward)
# ----------------------------------------------------------------------------
def fno_layer_forward(x, lp, modes1, modes2, last):
    """x: (B, Cin, X, T) f32; lp: dict(conv_w, conv_b, swr, swi)."""
    B, Cin, X, T = x.shape
    Cout = lp['conv_w'].shape[0]
    m1, m2 = modes1, modes2
    SF = 2 * m1 * m2

    # --- SpectralConv2d ------------------------------------------------------
    # TODO(synk): rfft2 / irfft2 have no Pallas TPU primitive; they stay in XLA.
    x_ft = jnp.fft.rfft2(x)                                   # (B, Cin, X, T//2+1)
    x_sel = jnp.stack([x_ft[:, :, :m1, :m2],
                       x_ft[:, :, X - m1:, :m2]], axis=2)     # (B, Cin, 2, m1, m2)
    x_sel = x_sel.reshape(B, Cin, SF)                         # frequency on lanes
    xr = jnp.real(x_sel).astype(jnp.float32)
    xi = jnp.imag(x_sel).astype(jnp.float32)

    out_r, out_i = _spectral_channel_mix(xr, xi, lp['swr'], lp['swi'])
    out_sel = (out_r + 1j * out_i).astype(jnp.complex64).reshape(B, Cout, 2, m1, m2)

    out_ft = jnp.zeros((B, Cout, X, T // 2 + 1), jnp.complex64)
    out_ft = out_ft.at[:, :, :m1, :m2].set(out_sel[:, :, 0])
    out_ft = out_ft.at[:, :, X - m1:, :m2].set(out_sel[:, :, 1])
    x1 = jnp.fft.irfft2(out_ft, s=(X, T))                     # (B, Cout, X, T) f32

    # --- 1x1 conv + residual add + GELU (channels-first, lane-dense N) -------
    y = conv1x1_cf(x.reshape(B, Cin, X * T), lp['conv_w'], lp['conv_b'],
                   residual=x1.reshape(B, Cout, X * T), gelu=not last)
    return y.reshape(B, Cout, X, T)


# ----------------------------------------------------------------------------
# Sub-networks and full FNO_ensemble_RBC1 forward
# ----------------------------------------------------------------------------
def _make_grid(B, nx, ny, Lx, Ly):
    gx = jnp.broadcast_to(
        jnp.linspace(0.0, Lx, nx, dtype=jnp.float32).reshape(1, nx, 1, 1),
        (B, nx, ny, 1))
    gy = jnp.broadcast_to(
        jnp.linspace(0.0, Ly, ny, dtype=jnp.float32).reshape(1, 1, ny, 1),
        (B, nx, ny, 1))
    return gx, gy


def state_en_forward(x, p, modes, Lx, Ly):
    """x: (B, nx, ny, 3) -> x_latent: (B, width, nx, ny)."""
    B, nx, ny, _ = x.shape
    gx, gy = _make_grid(B, nx, ny, Lx, Ly)
    xg = jnp.concatenate([x, gx, gy], axis=-1)                 # (B, nx, ny, 5)
    xc = jnp.transpose(xg, (0, 3, 1, 2)).reshape(B, 5, nx * ny)
    h = conv1x1_cf(xc, p['fc0_w'], p['fc0_b'])                 # (B, width, nx*ny)
    h = h.reshape(B, -1, nx, ny)
    n = len(p['down'])
    for i, lp in enumerate(p['down']):
        h = fno_layer_forward(h, lp, modes, modes, last=(i == n - 1))
    return h


def state_de_forward(x_latent, p, modes):
    """x_latent: (B, width, nx, ny) -> (B, nx, ny, 3)."""
    h = x_latent
    n = len(p['up'])
    for i, lp in enumerate(p['up']):
        h = fno_layer_forward(h, lp, modes, modes, last=(i == n - 1))
    B, C, nx, ny = h.shape
    out = decoder_head_cf(h.reshape(B, C, nx * ny),
                          p['fc1_w'], p['fc1_b'], p['fc2_w'], p['fc2_b'])
    return jnp.transpose(out.reshape(B, -1, nx, ny), (0, 2, 3, 1))


def trans_forward(x_latent, ctr_latent, p, modes):
    h = jnp.concatenate([x_latent, ctr_latent], axis=1)
    n = len(p['layers'])
    for i, lp in enumerate(p['layers']):
        h = fno_layer_forward(h, lp, modes, modes, last=(i == n - 1))
    return h


def fno_ensemble_rbc1_forward(x, ctr, params, *, modes, Lx, Ly):
    """x: (B, nx, ny, 3), ctr: (B, nx, ny, f_channels)."""
    x_latent = state_en_forward(x, params['en'], modes, Lx, Ly)
    x_rec = state_de_forward(x_latent, params['de'], modes)
    ctr_latent = jnp.transpose(ctr, (0, 3, 1, 2))
    trans_out = trans_forward(x_latent, ctr_latent, params['trans'], modes)
    pred = state_de_forward(trans_out, params['de'], modes)
    return pred, x_rec, ctr, trans_out


# ----------------------------------------------------------------------------
# Parameter init (mirrors the PyTorch module's initialisers) + weight prep
# ----------------------------------------------------------------------------
def _init_spectral_w(key, cin, cout, m1, m2):
    kr, ki = jax.random.split(key)
    scale = 1.0 / (cin * cout)
    return (scale * (jax.random.uniform(kr, (cin, cout, m1, m2))
                     + 1j * jax.random.uniform(ki, (cin, cout, m1, m2)))
            ).astype(jnp.complex64)


def _init_affine(key, fin, fout):
    kw, kb = jax.random.split(key)
    bound = 1.0 / math.sqrt(fin)
    w = jax.random.uniform(kw, (fout, fin), minval=-bound, maxval=bound,
                           dtype=jnp.float32)
    b = jax.random.uniform(kb, (fout,), minval=-bound, maxval=bound,
                           dtype=jnp.float32)
    return w, b


def _init_fno_layer(key, cin, cout, m1, m2):
    k1, k2, k3 = jax.random.split(key, 3)
    cw, cb = _init_affine(k3, cin, cout)
    return {'w1': _init_spectral_w(k1, cin, cout, m1, m2),
            'w2': _init_spectral_w(k2, cin, cout, m1, m2),
            'conv_w': cw, 'conv_b': cb}


def init_fno_ensemble_rbc1(key, modes, width, L, f_channels):
    k_en, k_de, k_tr = jax.random.split(key, 3)
    ken = jax.random.split(k_en, L + 1)
    fc0_w, fc0_b = _init_affine(ken[0], 5, width)
    down = [_init_fno_layer(ken[i + 1], width, width, modes, modes)
            for i in range(L)]
    kde = jax.random.split(k_de, L + 2)
    up = [_init_fno_layer(kde[i], width, width, modes, modes) for i in range(L)]
    fc1_w, fc1_b = _init_affine(kde[L], width, 128)
    fc2_w, fc2_b = _init_affine(kde[L + 1], 128, 3)
    ktr = jax.random.split(k_tr, L)
    layers = [_init_fno_layer(ktr[0], width + f_channels, width, modes, modes)]
    layers += [_init_fno_layer(ktr[i], width, width, modes, modes)
               for i in range(1, L)]
    return {'en': {'fc0_w': fc0_w, 'fc0_b': fc0_b, 'down': down},
            'de': {'up': up, 'fc1_w': fc1_w, 'fc1_b': fc1_b,
                   'fc2_w': fc2_w, 'fc2_b': fc2_b},
            'trans': {'layers': layers}}


def _prep_layer(lp):
    """Hoisted once per parameter set: re-layout spectral weights to
    frequency-last (Cin, Cout, 2*m1*m2) and split into real/imag f32 planes."""
    w = jnp.stack([lp['w1'], lp['w2']], axis=2)          # (Cin, Cout, 2, m1, m2)
    cin, cout = w.shape[0], w.shape[1]
    w = w.reshape(cin, cout, -1)                          # (Cin, Cout, SF)
    out = dict(lp)
    out['swr'] = jnp.real(w).astype(jnp.float32)
    out['swi'] = jnp.imag(w).astype(jnp.float32)
    return out


def prepare_params(params):
    """Hoist spectral-weight preprocessing out of the per-forward path."""
    return {
        'en': {'fc0_w': params['en']['fc0_w'], 'fc0_b': params['en']['fc0_b'],
               'down': [_prep_layer(lp) for lp in params['en']['down']]},
        'de': {'up': [_prep_layer(lp) for lp in params['de']['up']],
               'fc1_w': params['de']['fc1_w'], 'fc1_b': params['de']['fc1_b'],
               'fc2_w': params['de']['fc2_w'], 'fc2_b': params['de']['fc2_b']},
        'trans': {'layers': [_prep_layer(lp) for lp in params['trans']['layers']]},
    }


# ----------------------------------------------------------------------------
# Pure-JAX reference (mirrors the PyTorch forward exactly)
# ----------------------------------------------------------------------------
def _ref_gelu(x):
    return 0.5 * x * (1.0 + jax.scipy.special.erf(x / jnp.sqrt(2.0)))


def _ref_spectral_conv(x, w1, w2, m1, m2):
    B, Cin, X, T = x.shape
    Cout = w1.shape[1]
    x_ft = jnp.fft.rfft2(x)
    out_ft = jnp.zeros((B, Cout, X, T // 2 + 1), jnp.complex64)
    out_ft = out_ft.at[:, :, :m1, :m2].set(
        jnp.einsum('bixt,ioxt->boxt', x_ft[:, :, :m1, :m2], w1))
    out_ft = out_ft.at[:, :, X - m1:, :m2].set(
        jnp.einsum('bixt,ioxt->boxt', x_ft[:, :, X - m1:, :m2], w2))
    return jnp.fft.irfft2(out_ft, s=(X, T))


def _ref_fno_layer(x, lp, m1, m2, last):
    x1 = _ref_spectral_conv(x, lp['w1'], lp['w2'], m1, m2)
    x2 = jnp.einsum('oi,bixt->boxt', lp['conv_w'], x) \
        + lp['conv_b'][None, :, None, None]
    y = x1 + x2
    return y if last else _ref_gelu(y)


def _ref_state_en(x, p, modes, Lx, Ly):
    B, nx, ny, _ = x.shape
    gx, gy = _make_grid(B, nx, ny, Lx, Ly)
    h = jnp.concatenate([x, gx, gy], axis=-1)
    h = h @ p['fc0_w'].T + p['fc0_b']
    h = jnp.transpose(h, (0, 3, 1, 2))
    n = len(p['down'])
    for i, lp in enumerate(p['down']):
        h = _ref_fno_layer(h, lp, modes, modes, last=(i == n - 1))
    return h


def _ref_state_de(x, p, modes):
    h = x
    n = len(p['up'])
    for i, lp in enumerate(p['up']):
        h = _ref_fno_layer(h, lp, modes, modes, last=(i == n - 1))
    h = jnp.transpose(h, (0, 2, 3, 1))
    h = _ref_gelu(h @ p['fc1_w'].T + p['fc1_b'])
    return h @ p['fc2_w'].T + p['fc2_b']


def _ref_trans(x_latent, ctr_latent, p, modes):
    h = jnp.concatenate([x_latent, ctr_latent], axis=1)
    n = len(p['layers'])
    for i, lp in enumerate(p['layers']):
        h = _ref_fno_layer(h, lp, modes, modes, last=(i == n - 1))
    return h


def _ref_ensemble(x, ctr, params, modes, Lx, Ly):
    x_latent = _ref_state_en(x, params['en'], modes, Lx, Ly)
    x_rec = _ref_state_de(x_latent, params['de'], modes)
    ctr_latent = jnp.transpose(ctr, (0, 3, 1, 2))
    trans_out = _ref_trans(x_latent, ctr_latent, params['trans'], modes)
    pred = _ref_state_de(trans_out, params['de'], modes)
    return pred, x_rec, ctr, trans_out


# ----------------------------------------------------------------------------
if __name__ == "__main__":
    modes, width, L = 4, 8, 2
    f_channels = 2
    nx, ny = 16, 16
    Lx, Ly = 2.2, 0.41
    B = 2

    key = jax.random.PRNGKey(0)
    kp, kx, kc = jax.random.split(key, 3)
    raw_params = init_fno_ensemble_rbc1(kp, modes, width, L, f_channels)
    params = prepare_params(raw_params)       # weight re-layout hoisted, done once
    x = jax.random.normal(kx, (B, nx, ny, 3), jnp.float32)
    ctr = jax.random.normal(kc, (B, nx, ny, f_channels), jnp.float32)

    fwd = jax.jit(functools.partial(fno_ensemble_rbc1_forward,
                                    modes=modes, Lx=Lx, Ly=Ly))
    pred, x_rec, ctr_out, trans_out = fwd(x, ctr, params)
    for o in (pred, x_rec, ctr_out, trans_out):
        jax.block_until_ready(o)

    r_pred, r_rec, _, r_trans = _ref_ensemble(x, ctr, raw_params, modes, Lx, Ly)

    assert pred.shape == (B, nx, ny, 3)
    assert x_rec.shape == (B, nx, ny, 3)
    assert trans_out.shape == (B, width, nx, ny)
    assert bool(jnp.array_equal(ctr_out, ctr))
    for got, want in ((pred, r_pred), (x_rec, r_rec), (trans_out, r_trans)):
        assert bool(jnp.all(jnp.isfinite(got)))
        err = float(jnp.max(jnp.abs(got - want)))
        assert bool(jnp.allclose(got, want, atol=2e-3, rtol=2e-3)), \
            f"mismatch vs reference, max abs err {err}"

    print("KERNEL_OK")
</pallas_src>

<mosaic_0001>
module attributes {stable_mosaic.version = 11 : i64} {
  func.func @_conv1x1_kernel(%arg0: i32, %arg1: i32, %arg2: memref<1x5x256xf32, #tpu.memory_space<vmem>>, %arg3: memref<8x5xf32, #tpu.memory_space<vmem>>, %arg4: memref<8x1xf32, #tpu.memory_space<vmem>>, %arg5: memref<1x8x256xf32, #tpu.memory_space<vmem>>) attributes {dimension_semantics = [#tpu.dimension_semantics<parallel>, #tpu.dimension_semantics<parallel>], iteration_bounds = array<i64: 2, 1>, scalar_prefetch = 0 : i64, scratch_operands = 0 : i64, tpu.core_type = #tpu.core_type<tc>, window_params = [{transform_indices = @transform_0, window_bounds = array<i64: 1, 5, 256>}, {pipeline_mode = #tpu.pipeline_mode<synchronous>, transform_indices = @transform_1, window_bounds = array<i64: 8, 5>}, {pipeline_mode = #tpu.pipeline_mode<synchronous>, transform_indices = @transform_2, window_bounds = array<i64: 8, 1>}, {transform_indices = @transform_3, window_bounds = array<i64: 1, 8, 256>}]} {
    %c0 = arith.constant 0 : index
    %c0_0 = arith.constant 0 : index
    %0 = vector.load %arg3[%c0, %c0_0] : memref<8x5xf32, #tpu.memory_space<vmem>>, vector<8x5xf32>
    %c0_1 = arith.constant 0 : index
    %c0_2 = arith.constant 0 : index
    %c0_3 = arith.constant 0 : index
    %1 = vector.load %arg2[%c0_1, %c0_2, %c0_3] : memref<1x5x256xf32, #tpu.memory_space<vmem>>, vector<1x5x256xf32>
    %2 = vector.shape_cast %1 : vector<1x5x256xf32> to vector<5x256xf32>
    %cst = arith.constant dense<0.000000e+00> : vector<8x256xf32>
    %3 = tpu.matmul %0, %2, %cst {dimension_numbers = #tpu.dot_dimension_numbers<[1], [0], [0], [1], [0, 0, 1, 1], [], []>} : vector<8x5xf32>, vector<5x256xf32>, vector<8x256xf32> -> vector<8x256xf32>
    %c0_4 = arith.constant 0 : index
    %c0_5 = arith.constant 0 : index
    %4 = vector.load %arg4[%c0_4, %c0_5] : memref<8x1xf32, #tpu.memory_space<vmem>>, vector<8x1xf32>
    %5 = vector.broadcast %4 : vector<8x1xf32> to vector<8x256xf32>
    %6 = arith.addf %3, %5 : vector<8x256xf32>
    %c0_6 = arith.constant 0 : index
    %c0_7 = arith.constant 0 : index
    %c0_8 = arith.constant 0 : index
    %7 = vector.load %arg5[%c0_6, %c0_7, %c0_8] : memref<1x8x256xf32, #tpu.memory_space<vmem>>, vector<1x8x256xf32>
    %8 = vector.shape_cast %7 : vector<1x8x256xf32> to vector<8x256xf32>
    %9 = vector.shape_cast %6 : vector<8x256xf32> to vector<1x8x256xf32>
    tpu.vector_store %arg5[%c0_6, %c0_7, %c0_8], %9 {strides = array<i32>} : memref<1x8x256xf32, #tpu.memory_space<vmem>>, vector<1x8x256xf32>,
    return
  }
  func.func @transform_0(%arg0: i32, %arg1: i32) -> (i32, i32, i32) {
    %c0_i32 = arith.constant 0 : i32
    %c0_i32_0 = arith.constant 0 : i32
    return %arg0, %c0_i32, %arg1 : i32, i32, i32
  }
  func.func @transform_1(%arg0: i32, %arg1: i32) -> (i32, i32) {
    %c0_i32 = arith.constant 0 : i32
    %c0_i32_0 = arith.constant 0 : i32
    %c0_i32_1 = arith.constant 0 : i32
    return %c0_i32, %c0_i32_0 : i32, i32
  }
  func.func @transform_2(%arg0: i32, %arg1: i32) -> (i32, i32) {
    %c0_i32 = arith.constant 0 : i32
    %c0_i32_0 = arith.constant 0 : i32
    %c0_i32_1 = arith.constant 0 : i32
    return %c0_i32, %c0_i32_0 : i32, i32
  }
  func.func @transform_3(%arg0: i32, %arg1: i32) -> (i32, i32, i32) {
    %c0_i32 = arith.constant 0 : i32
    %c0_i32_0 = arith.constant 0 : i32
    return %arg0, %c0_i32, %arg1 : i32, i32, i32
  }
}

module attributes {stable_mosaic.version = 11 : i64} {
  func.func @_spectral_kernel(%arg0: i32, %arg1: i32, %arg2: memref<1x8x32xf32, #tpu.memory_space<vmem>>, %arg3: memref<1x8x32xf32, #tpu.memory_space<vmem>>, %arg4: memref<8x8x32xf32, #tpu.memory_space<vmem>>, %arg5: memref<8x8x32xf32, #tpu.memory_space<vmem>>, %arg6: memref<1x8x32xf32, #tpu.memory_space<vmem>>, %arg7: memref<1x8x32xf32, #tpu.memory_space<vmem>>) attributes {dimension_semantics = [#tpu.dimension_semantics<parallel>, #tpu.dimension_semantics<parallel>], iteration_bounds = array<i64: 2, 1>, scalar_prefetch = 0 : i64, scratch_operands = 0 : i64, tpu.core_type = #tpu.core_type<tc>, window_params = [{transform_indices = @transform_0, window_bounds = array<i64: 1, 8, 32>}, {transform_indices = @transform_1, window_bounds = array<i64: 1, 8, 32>}, {transform_indices = @transform_2, window_bounds = array<i64: 8, 8, 32>}, {transform_indices = @transform_3, window_bounds = array<i64: 8, 8, 32>}, {transform_indices = @transform_4, window_bounds = array<i64: 1, 8, 32>}, {transform_indices = @transform_5, window_bounds = array<i64: 1, 8, 32>}]} {
    %c0 = arith.constant 0 : index
    %c0_0 = arith.constant 0 : index
    %c0_1 = arith.constant 0 : index
    %0 = vector.load %arg2[%c0, %c0_0, %c0_1] : memref<1x8x32xf32, #tpu.memory_space<vmem>>, vector<1x8x32xf32>
    %1 = vector.shape_cast %0 : vector<1x8x32xf32> to vector<8x32xf32>
    %c0_2 = arith.constant 0 : index
    %c0_3 = arith.constant 0 : index
    %c0_4 = arith.constant 0 : index
    %2 = vector.load %arg3[%c0_2, %c0_3, %c0_4] : memref<1x8x32xf32, #tpu.memory_space<vmem>>, vector<1x8x32xf32>
    %3 = vector.shape_cast %2 : vector<1x8x32xf32> to vector<8x32xf32>
    %c0_5 = arith.constant 0 : index
    %c0_6 = arith.constant 0 : index
    %c0_7 = arith.constant 0 : index
    %4 = vector.load %arg4[%c0_5, %c0_6, %c0_7] : memref<8x8x32xf32, #tpu.memory_space<vmem>>, vector<8x8x32xf32>
    %c0_8 = arith.constant 0 : index
    %c0_9 = arith.constant 0 : index
    %c0_10 = arith.constant 0 : index
    %5 = vector.load %arg5[%c0_8, %c0_9, %c0_10] : memref<8x8x32xf32, #tpu.memory_space<vmem>>, vector<8x8x32xf32>
    %6 = arith.addf %1, %3 : vector<8x32xf32>
    %7 = arith.addf %4, %5 : vector<8x8x32xf32>
    %cst = arith.constant 0.000000e+00 : f32
    %8 = vector.broadcast %cst : f32 to vector<8x32xf32>
    %cst_11 = arith.constant 0.000000e+00 : f32
    %9 = vector.broadcast %cst_11 : f32 to vector<8x32xf32>
    %cst_12 = arith.constant 0.000000e+00 : f32
    %10 = vector.broadcast %cst_12 : f32 to vector<8x32xf32>
    %11 = vector.extract_strided_slice %1 {offsets = [0, 0], sizes = [1, 32], strides = [1, 1]} : vector<8x32xf32> to vector<1x32xf32>
    %12 = vector.extract_strided_slice %3 {offsets = [0, 0], sizes = [1, 32], strides = [1, 1]} : vector<8x32xf32> to vector<1x32xf32>
    %13 = vector.extract_strided_slice %6 {offsets = [0, 0], sizes = [1, 32], strides = [1, 1]} : vector<8x32xf32> to vector<1x32xf32>
    %14 = vector.extract_strided_slice %4 {offsets = [0, 0, 0], sizes = [1, 8, 32], strides = [1, 1, 1]} : vector<8x8x32xf32> to vector<1x8x32xf32>
    %15 = vector.shape_cast %14 : vector<1x8x32xf32> to vector<8x32xf32>
    %16 = vector.broadcast %11 : vector<1x32xf32> to vector<8x32xf32>
    %17 = arith.mulf %16, %15 : vector<8x32xf32>
    %18 = arith.addf %8, %17 : vector<8x32xf32>
    %19 = vector.extract_strided_slice %5 {offsets = [0, 0, 0], sizes = [1, 8, 32], strides = [1, 1, 1]} : vector<8x8x32xf32> to vector<1x8x32xf32>
    %20 = vector.shape_cast %19 : vector<1x8x32xf32> to vector<8x32xf32>
    %21 = vector.broadcast %12 : vector<1x32xf32> to vector<8x32xf32>
    %22 = arith.mulf %21, %20 : vector<8x32xf32>
    %23 = arith.addf %9, %22 : vector<8x32xf32>
    %24 = vector.extract_strided_slice %7 {offsets = [0, 0, 0], sizes = [1, 8, 32], strides = [1, 1, 1]} : vector<8x8x32xf32> to vector<1x8x32xf32>
    %25 = vector.shape_cast %24 : vector<1x8x32xf32> to vector<8x32xf32>
    %26 = vector.broadcast %13 : vector<1x32xf32> to vector<8x32xf32>
    %27 = arith.mulf %26, %25 : vector<8x32xf32>
    %28 = arith.addf %10, %27 : vector<8x32xf32>
    %29 = vector.extract_strided_slice %1 {offsets = [1, 0], sizes = [1, 32], strides = [1, 1]} : vector<8x32xf32> to vector<1x32xf32>
    %30 = vector.extract_strided_slice %3 {offsets = [1, 0], sizes = [1, 32], strides = [1, 1]} : vector<8x32xf32> to vector<1x32xf32>
    %31 = vector.extract_strided_slice %6 {offsets = [1, 0], sizes = [1, 32], strides = [1, 1]} : vector<8x32xf32> to vector<1x32xf32>
    %32 = vector.extract_strided_slice %4 {offsets = [1, 0, 0], sizes = [1, 8, 32], strides = [1, 1, 1]} : vector<8x8x32xf32> to vector<1x8x32xf32>
    %33 = vector.shape_cast %32 : vector<1x8x32xf32> to vector<8x32xf32>
    %34 = vector.broadcast %29 : vector<1x32xf32> to vector<8x32xf32>
    %35 = arith.mulf %34, %33 : vector<8x32xf32>
    %36 = arith.addf %18, %35 : vector<8x32xf32>
    %37 = vector.extract_strided_slice %5 {offsets = [1, 0, 0], sizes = [1, 8, 32], strides = [1, 1, 1]} : vector<8x8x32xf32> to vector<1x8x32xf32>
    %38 = vector.shape_cast %37 : vector<1x8x32xf32> to vector<8x32xf32>
    %39 = vector.broadcast %30 : vector<1x32xf32> to vector<8x32xf32>
    %40 = arith.mulf %39, %38 : vector<8x32xf32>
    %41 = arith.addf %23, %40 : vector<8x32xf32>
    %42 = vector.extract_strided_slice %7 {offsets = [1, 0, 0], sizes = [1, 8, 32], strides = [1, 1, 1]} : vector<8x8x32xf32> to vector<1x8x32xf32>
    %43 = vector.shape_cast %42 : vector<1x8x32xf32> to vector<8x32xf32>
    %44 = vector.broadcast %31 : vector<1x32xf32> to vector<8x32xf32>
    %45 = arith.mulf %44, %43 : vector<8x32xf32>
    %46 = arith.addf %28, %45 : vector<8x32xf32>
    %47 = vector.extract_strided_slice %1 {offsets = [2, 0], sizes = [1, 32], strides = [1, 1]} : vector<8x32xf32> to vector<1x32xf32>
    %48 = vector.extract_strided_slice %3 {offsets = [2, 0], sizes = [1, 32], strides = [1, 1]} : vector<8x32xf32> to vector<1x32xf32>
    %49 = vector.extract_strided_slice %6 {offsets = [2, 0], sizes = [1, 32], strides = [1, 1]} : vector<8x32xf32> to vector<1x32xf32>
    %50 = vector.extract_strided_slice %4 {offsets = [2, 0, 0], sizes = [1, 8, 32], strides = [1, 1, 1]} : vector<8x8x32xf32> to vector<1x8x32xf32>
    %51 = vector.shape_cast %50 : vector<1x8x32xf32> to vector<8x32xf32>
    %52 = vector.broadcast %47 : vector<1x32xf32> to vector<8x32xf32>
    %53 = arith.mulf %52, %51 : vector<8x32xf32>
    %54 = arith.addf %36, %53 : vector<8x32xf32>
    %55 = vector.extract_strided_slice %5 {offsets = [2, 0, 0], sizes = [1, 8, 32], strides = [1, 1, 1]} : vector<8x8x32xf32> to vector<1x8x32xf32>
    %56 = vector.shape_cast %55 : vector<1x8x32xf32> to vector<8x32xf32>
    %57 = vector.broadcast %48 : vector<1x32xf32> to vector<8x32xf32>
    %58 = arith.mulf %57, %56 : vector<8x32xf32>
    %59 = arith.addf %41, %58 : vector<8x32xf32>
    %60 = vector.extract_strided_slice %7 {offsets = [2, 0, 0], sizes = [1, 8, 32], strides = [1, 1, 1]} : vector<8x8x32xf32> to vector<1x8x32xf32>
    %61 = vector.shape_cast %60 : vector<1x8x32xf32> to vector<8x32xf32>
    %62 = vector.broadcast %49 : vector<1x32xf32> to vector<8x32xf32>
    %63 = arith.mulf %62, %61 : vector<8x32xf32>
    %64 = arith.addf %46, %63 : vector<8x32xf32>
    %65 = vector.extract_strided_slice %1 {offsets = [3, 0], sizes = [1, 32], strides = [1, 1]} : vector<8x32xf32> to vector<1x32xf32>
    %66 = vector.extract_strided_slice %3 {offsets = [3, 0], sizes = [1, 32], strides = [1, 1]} : vector<8x32xf32> to vector<1x32xf32>
    %67 = vector.extract_strided_slice %6 {offsets = [3, 0], sizes = [1, 32], strides = [1, 1]} : vector<8x32xf32> to vector<1x32xf32>
    %68 = vector.extract_strided_slice %4 {offsets = [3, 0, 0], sizes = [1, 8, 32], strides = [1, 1, 1]} : vector<8x8x32xf32> to vector<1x8x32xf32>
    %69 = vector.shape_cast %68 : vector<1x8x32xf32> to vector<8x32xf32>
    %70 = vector.broadcast %65 : vector<1x32xf32> to vector<8x32xf32>
    %71 = arith.mulf %70, %69 : vector<8x32xf32>
    %72 = arith.addf %54, %71 : vector<8x32xf32>
    %73 = vector.extract_strided_slice %5 {offsets = [3, 0, 0], sizes = [1, 8, 32], strides = [1, 1, 1]} : vector<8x8x32xf32> to vector<1x8x32xf32>
    %74 = vector.shape_cast %73 : vector<1x8x32xf32> to vector<8x32xf32>
    %75 = vector.broadcast %66 : vector<1x32xf32> to vector<8x32xf32>
    %76 = arith.mulf %75, %74 : vector<8x32xf32>
    %77 = arith.addf %59, %76 : vector<8x32xf32>
    %78 = vector.extract_strided_slice %7 {offsets = [3, 0, 0], sizes = [1, 8, 32], strides = [1, 1, 1]} : vector<8x8x32xf32> to vector<1x8x32xf32>
    %79 = vector.shape_cast %78 : vector<1x8x32xf32> to vector<8x32xf32>
    %80 = vector.broadcast %67 : vector<1x32xf32> to vector<8x32xf32>
    %81 = arith.mulf %80, %79 : vector<8x32xf32>
    %82 = arith.addf %64, %81 : vector<8x32xf32>
    %83 = vector.extract_strided_slice %1 {offsets = [4, 0], sizes = [1, 32], strides = [1, 1]} : vector<8x32xf32> to vector<1x32xf32>
    %84 = vector.extract_strided_slice %3 {offsets = [4, 0], sizes = [1, 32], strides = [1, 1]} : vector<8x32xf32> to vector<1x32xf32>
    %85 = vector.extract_strided_slice %6 {offsets = [4, 0], sizes = [1, 32], strides = [1, 1]} : vector<8x32xf32> to vector<1x32xf32>
    %86 = vector.extract_strided_slice %4 {offsets = [4, 0, 0], sizes = [1, 8, 32], strides = [1, 1, 1]} : vector<8x8x32xf32> to vector<1x8x32xf32>
    %87 = vector.shape_cast %86 : vector<1x8x32xf32> to vector<8x32xf32>
    %88 = vector.broadcast %83 : vector<1x32xf32> to vector<8x32xf32>
    %89 = arith.mulf %88, %87 : vector<8x32xf32>
    %90 = arith.addf %72, %89 : vector<8x32xf32>
    %91 = vector.extract_strided_slice %5 {offsets = [4, 0, 0], sizes = [1, 8, 32], strides = [1, 1, 1]} : vector<8x8x32xf32> to vector<1x8x32xf32>
    %92 = vector.shape_cast %91 : vector<1x8x32xf32> to vector<8x32xf32>
    %93 = vector.broadcast %84 : vector<1x32xf32> to vector<8x32xf32>
    %94 = arith.mulf %93, %92 : vector<8x32xf32>
    %95 = arith.addf %77, %94 : vector<8x32xf32>
    %96 = vector.extract_strided_slice %7 {offsets = [4, 0, 0], sizes = [1, 8, 32], strides = [1, 1, 1]} : vector<8x8x32xf32> to vector<1x8x32xf32>
    %97 = vector.shape_cast %96 : vector<1x8x32xf32> to vector<8x32xf32>
    %98 = vector.broadcast %85 : vector<1x32xf32> to vector<8x32xf32>
    %99 = arith.mulf %98, %97 : vector<8x32xf32>
    %100 = arith.addf %82, %99 : vector<8x32xf32>
    %101 = vector.extract_strided_slice %1 {offsets = [5, 0], sizes = [1, 32], strides = [1, 1]} : vector<8x32xf32> to vector<1x32xf32>
    %102 = vector.extract_strided_slice %3 {offsets = [5, 0], sizes = [1, 32], strides = [1, 1]} : vector<8x32xf32> to vector<1x32xf32>
    %103 = vector.extract_strided_slice %6 {offsets = [5, 0], sizes = [1, 32], strides = [1, 1]} : vector<8x32xf32> to vector<1x32xf32>
    %104 = vector.extract_strided_slice %4 {offsets = [5, 0, 0], sizes = [1, 8, 32], strides = [1, 1, 1]} : vector<8x8x32xf32> to vector<1x8x32xf32>
    %105 = vector.shape_cast %104 : vector<1x8x32xf32> to vector<8x32xf32>
    %106 = vector.broadcast %101 : vector<1x32xf32> to vector<8x32xf32>
    %107 = arith.mulf %106, %105 : vector<8x32xf32>
    %108 = arith.addf %90, %107 : vector<8x32xf32>
    %109 = vector.extract_strided_slice %5 {offsets = [5, 0, 0], sizes = [1, 8, 32], strides = [1, 1, 1]} : vector<8x8x32xf32> to vector<1x8x32xf32>
    %110 = vector.shape_cast %109 : vector<1x8x32xf32> to vector<8x32xf32>
    %111 = vector.broadcast %102 : vector<1x32xf32> to vector<8x32xf32>
    %112 = arith.mulf %111, %110 : vector<8x32xf32>
    %113 = arith.addf %95, %112 : vector<8x32xf32>
    %114 = vector.extract_strided_slice %7 {offsets = [5, 0, 0], sizes = [1, 8, 32], strides = [1, 1, 1]} : vector<8x8x32xf32> to vector<1x8x32xf32>
    %115 = vector.shape_cast %114 : vector<1x8x32xf32> to vector<8x32xf32>
    %116 = vector.broadcast %103 : vector<1x32xf32> to vector<8x32xf32>
    %117 = arith.mulf %116, %115 : vector<8x32xf32>
    %118 = arith.addf %100, %117 : vector<8x32xf32>
    %119 = vector.extract_strided_slice %1 {offsets = [6, 0], sizes = [1, 32], strides = [1, 1]} : vector<8x32xf32> to vector<1x32xf32>
    %120 = vector.extract_strided_slice %3 {offsets = [6, 0], sizes = [1, 32], strides = [1, 1]} : vector<8x32xf32> to vector<1x32xf32>
    %121 = vector.extract_strided_slice %6 {offsets = [6, 0], sizes = [1, 32], strides = [1, 1]} : vector<8x32xf32> to vector<1x32xf32>
    %122 = vector.extract_strided_slice %4 {offsets = [6, 0, 0], sizes = [1, 8, 32], strides = [1, 1, 1]} : vector<8x8x32xf32> to vector<1x8x32xf32>
    %123 = vector.shape_cast %122 : vector<1x8x32xf32> to vector<8x32xf32>
    %124 = vector.broadcast %119 : vector<1x32xf32> to vector<8x32xf32>
    %125 = arith.mulf %124, %123 : vector<8x32xf32>
    %126 = arith.addf %108, %125 : vector<8x32xf32>
    %127 = vector.extract_strided_slice %5 {offsets = [6, 0, 0], sizes = [1, 8, 32], strides = [1, 1, 1]} : vector<8x8x32xf32> to vector<1x8x32xf32>
    %128 = vector.shape_cast %127 : vector<1x8x32xf32> to vector<8x32xf32>
    %129 = vector.broadcast %120 : vector<1x32xf32> to vector<8x32xf32>
    %130 = arith.mulf %129, %128 : vector<8x32xf32>
    %131 = arith.addf %113, %130 : vector<8x32xf32>
    %132 = vector.extract_strided_slice %7 {offsets = [6, 0, 0], sizes = [1, 8, 32], strides = [1, 1, 1]} : vector<8x8x32xf32> to vector<1x8x32xf32>
    %133 = vector.shape_cast %132 : vector<1x8x32xf32> to vector<8x32xf32>
    %134 = vector.broadcast %121 : vector<1x32xf32> to vector<8x32xf32>
    %135 = arith.mulf %134, %133 : vector<8x32xf32>
    %136 = arith.addf %118, %135 : vector<8x32xf32>
    %137 = vector.extract_strided_slice %1 {offsets = [7, 0], sizes = [1, 32], strides = [1, 1]} : vector<8x32xf32> to vector<1x32xf32>
    %138 = vector.extract_strided_slice %3 {offsets = [7, 0], sizes = [1, 32], strides = [1, 1]} : vector<8x32xf32> to vector<1x32xf32>
    %139 = vector.extract_strided_slice %6 {offsets = [7, 0], sizes = [1, 32], strides = [1, 1]} : vector<8x32xf32> to vector<1x32xf32>
    %140 = vector.extract_strided_slice %4 {offsets = [7, 0, 0], sizes = [1, 8, 32], strides = [1, 1, 1]} : vector<8x8x32xf32> to vector<1x8x32xf32>
    %141 = vector.shape_cast %140 : vector<1x8x32xf32> to vector<8x32xf32>
    %142 = vector.broadcast %137 : vector<1x32xf32> to vector<8x32xf32>
    %143 = arith.mulf %142, %141 : vector<8x32xf32>
    %144 = arith.addf %126, %143 : vector<8x32xf32>
    %145 = vector.extract_strided_slice %5 {offsets = [7, 0, 0], sizes = [1, 8, 32], strides = [1, 1, 1]} : vector<8x8x32xf32> to vector<1x8x32xf32>
    %146 = vector.shape_cast %145 : vector<1x8x32xf32> to vector<8x32xf32>
    %147 = vector.broadcast %138 : vector<1x32xf32> to vector<8x32xf32>
    %148 = arith.mulf %147, %146 : vector<8x32xf32>
    %149 = arith.addf %131, %148 : vector<8x32xf32>
    %150 = vector.extract_strided_slice %7 {offsets = [7, 0, 0], sizes = [1, 8, 32], strides = [1, 1, 1]} : vector<8x8x32xf32> to vector<1x8x32xf32>
    %151 = vector.shape_cast %150 : vector<1x8x32xf32> to vector<8x32xf32>
    %152 = vector.broadcast %139 : vector<1x32xf32> to vector<8x32xf32>
    %153 = arith.mulf %152, %151 : vector<8x32xf32>
    %154 = arith.addf %136, %153 : vector<8x32xf32>
    %155 = arith.subf %144, %149 : vector<8x32xf32>
    %c0_13 = arith.constant 0 : index
    %c0_14 = arith.constant 0 : index
    %c0_15 = arith.constant 0 : index
    %156 = vector.load %arg6[%c0_13, %c0_14, %c0_15] : memref<1x8x32xf32, #tpu.memory_space<vmem>>, vector<1x8x32xf32>
    %157 = vector.shape_cast %156 : vector<1x8x32xf32> to vector<8x32xf32>
    %158 = vector.shape_cast %155 : vector<8x32xf32> to vector<1x8x32xf32>
    tpu.vector_store %arg6[%c0_13, %c0_14, %c0_15], %158 {strides = array<i32>} : memref<1x8x32xf32, #tpu.memory_space<vmem>>, vector<1x8x32xf32>,
    %159 = arith.subf %154, %144 : vector<8x32xf32>
    %160 = arith.subf %159, %149 : vector<8x32xf32>
    %c0_16 = arith.constant 0 : index
    %c0_17 = arith.constant 0 : index
    %c0_18 = arith.constant 0 : index
    %161 = vector.load %arg7[%c0_16, %c0_17, %c0_18] : memref<1x8x32xf32, #tpu.memory_space<vmem>>, vector<1x8x32xf32>
    %162 = vector.shape_cast %161 : vector<1x8x32xf32> to vector<8x32xf32>
    %163 = vector.shape_cast %160 : vector<8x32xf32> to vector<1x8x32xf32>
    tpu.vector_store %arg7[%c0_16, %c0_17, %c0_18], %163 {strides = array<i32>} : memref<1x8x32xf32, #tpu.memory_space<vmem>>, vector<1x8x32xf32>,
    return
  }
  func.func @transform_0(%arg0: i32, %arg1: i32) -> (i32, i32, i32) {
    %c0_i32 = arith.constant 0 : i32
    %c0_i32_0 = arith.constant 0 : i32
    return %arg0, %c0_i32, %arg1 : i32, i32, i32
  }
  func.func @transform_1(%arg0: i32, %arg1: i32) -> (i32, i32, i32) {
    %c0_i32 = arith.constant 0 : i32
    %c0_i32_0 = arith.constant 0 : i32
    return %arg0, %c0_i32, %arg1 : i32, i32, i32
  }
  func.func @transform_2(%arg0: i32, %arg1: i32) -> (i32, i32, i32) {
    %c0_i32 = arith.constant 0 : i32
    %c0_i32_0 = arith.constant 0 : i32
    %c0_i32_1 = arith.constant 0 : i32
    return %c0_i32, %c0_i32_0, %arg1 : i32, i32, i32
  }
  func.func @transform_3(%arg0: i32, %arg1: i32) -> (i32, i32, i32) {
    %c0_i32 = arith.constant 0 : i32
    %c0_i32_0 = arith.constant 0 : i32
    %c0_i32_1 = arith.constant 0 : i32
    return %c0_i32, %c0_i32_0, %arg1 : i32, i32, i32
  }
  func.func @transform_4(%arg0: i32, %arg1: i32) -> (i32, i32, i32) {
    %c0_i32 = arith.constant 0 : i32
    %c0_i32_0 = arith.constant 0 : i32
    return %arg0, %c0_i32, %arg1 : i32, i32, i32
  }
  func.func @transform_5(%arg0: i32, %arg1: i32) -> (i32, i32, i32) {
    %c0_i32 = arith.constant 0 : i32
    %c0_i32_0 = arith.constant 0 : i32
    return %arg0, %c0_i32, %arg1 : i32, i32, i32
  }
}

module attributes {stable_mosaic.version = 11 : i64} {
  func.func @_conv1x1_res_kernel(%arg0: i32, %arg1: i32, %arg2: memref<1x8x256xf32, #tpu.memory_space<vmem>>, %arg3: memref<1x8x256xf32, #tpu.memory_space<vmem>>, %arg4: memref<8x8xf32, #tpu.memory_space<vmem>>, %arg5: memref<8x1xf32, #tpu.memory_space<vmem>>, %arg6: memref<1x8x256xf32, #tpu.memory_space<vmem>>) attributes {dimension_semantics = [#tpu.dimension_semantics<parallel>, #tpu.dimension_semantics<parallel>], iteration_bounds = array<i64: 2, 1>, scalar_prefetch = 0 : i64, scratch_operands = 0 : i64, tpu.core_type = #tpu.core_type<tc>, window_params = [{transform_indices = @transform_0, window_bounds = array<i64: 1, 8, 256>}, {transform_indices = @transform_1, window_bounds = array<i64: 1, 8, 256>}, {pipeline_mode = #tpu.pipeline_mode<synchronous>, transform_indices = @transform_2, window_bounds = array<i64: 8, 8>}, {pipeline_mode = #tpu.pipeline_mode<synchronous>, transform_indices = @transform_3, window_bounds = array<i64: 8, 1>}, {transform_indices = @transform_4, window_bounds = array<i64: 1, 8, 256>}]} {
    %c0 = arith.constant 0 : index
    %c0_0 = arith.constant 0 : index
    %0 = vector.load %arg4[%c0, %c0_0] : memref<8x8xf32, #tpu.memory_space<vmem>>, vector<8x8xf32>
    %c0_1 = arith.constant 0 : index
    %c0_2 = arith.constant 0 : index
    %c0_3 = arith.constant 0 : index
    %1 = vector.load %arg2[%c0_1, %c0_2, %c0_3] : memref<1x8x256xf32, #tpu.memory_space<vmem>>, vector<1x8x256xf32>
    %2 = vector.shape_cast %1 : vector<1x8x256xf32> to vector<8x256xf32>
    %cst = arith.constant dense<0.000000e+00> : vector<8x256xf32>
    %3 = tpu.matmul %0, %2, %cst {dimension_numbers = #tpu.dot_dimension_numbers<[1], [0], [0], [1], [0, 0, 1, 1], [], []>} : vector<8x8xf32>, vector<8x256xf32>, vector<8x256xf32> -> vector<8x256xf32>
    %c0_4 = arith.constant 0 : index
    %c0_5 = arith.constant 0 : index
    %4 = vector.load %arg5[%c0_4, %c0_5] : memref<8x1xf32, #tpu.memory_space<vmem>>, vector<8x1xf32>
    %5 = vector.broadcast %4 : vector<8x1xf32> to vector<8x256xf32>
    %6 = arith.addf %3, %5 : vector<8x256xf32>
    %c0_6 = arith.constant 0 : index
    %c0_7 = arith.constant 0 : index
    %c0_8 = arith.constant 0 : index
    %7 = vector.load %arg3[%c0_6, %c0_7, %c0_8] : memref<1x8x256xf32, #tpu.memory_space<vmem>>, vector<1x8x256xf32>
    %8 = vector.shape_cast %7 : vector<1x8x256xf32> to vector<8x256xf32>
    %9 = arith.addf %6, %8 : vector<8x256xf32>
    %cst_9 = arith.constant 5.000000e-01 : f32
    %10 = vector.broadcast %cst_9 : f32 to vector<8x256xf32>
    %11 = arith.mulf %10, %9 : vector<8x256xf32>
    %cst_10 = arith.constant 0.707106769 : f32
    %12 = vector.broadcast %cst_10 : f32 to vector<8x256xf32>
    %13 = arith.mulf %9, %12 : vector<8x256xf32>
    %14 = math.absf %13 : vector<8x256xf32>
    %cst_11 = arith.constant 0.327591091 : f32
    %15 = vector.broadcast %cst_11 : f32 to vector<8x256xf32>
    %16 = arith.mulf %15, %14 : vector<8x256xf32>
    %cst_12 = arith.constant 1.000000e+00 : f32
    %17 = vector.broadcast %cst_12 : f32 to vector<8x256xf32>
    %18 = arith.addf %17, %16 : vector<8x256xf32>
    %19 = tpu.reciprocal %18 : vector<8x256xf32> -> vector<8x256xf32>
    %cst_13 = arith.constant 1.06140542 : f32
    %20 = vector.broadcast %cst_13 : f32 to vector<8x256xf32>
    %21 = arith.mulf %19, %20 : vector<8x256xf32>
    %cst_14 = arith.constant -1.45315206 : f32
    %22 = vector.broadcast %cst_14 : f32 to vector<8x256xf32>
    %23 = arith.addf %22, %21 : vector<8x256xf32>
    %24 = arith.mulf %19, %23 : vector<8x256xf32>
    %cst_15 = arith.constant 1.42141378 : f32
    %25 = vector.broadcast %cst_15 : f32 to vector<8x256xf32>
    %26 = arith.addf %25, %24 : vector<8x256xf32>
    %27 = arith.mulf %19, %26 : vector<8x256xf32>
    %cst_16 = arith.constant -0.284496725 : f32
    %28 = vector.broadcast %cst_16 : f32 to vector<8x256xf32>
    %29 = arith.addf %28, %27 : vector<8x256xf32>
    %30 = arith.mulf %19, %29 : vector<8x256xf32>
    %cst_17 = arith.constant 0.254829586 : f32
    %31 = vector.broadcast %cst_17 : f32 to vector<8x256xf32>
    %32 = arith.addf %31, %30 : vector<8x256xf32>
    %33 = arith.mulf %19, %32 : vector<8x256xf32>
    %cst_18 = arith.constant 0.000000e+00 : f32
    %34 = vector.broadcast %cst_18 : f32 to vector<8x256xf32>
    %35 = arith.subf %34, %14 : vector<8x256xf32>
    %36 = arith.mulf %35, %14 : vector<8x256xf32>
    %37 = math.exp %36 : vector<8x256xf32>
    %38 = arith.mulf %33, %37 : vector<8x256xf32>
    %cst_19 = arith.constant 1.000000e+00 : f32
    %39 = vector.broadcast %cst_19 : f32 to vector<8x256xf32>
    %40 = arith.subf %39, %38 : vector<8x256xf32>
    %cst_20 = arith.constant 0.000000e+00 : f32
    %41 = vector.broadcast %cst_20 : f32 to vector<8x256xf32>
    %42 = arith.cmpf olt, %13, %41 : vector<8x256xf32>
    %cst_21 = arith.constant 0.000000e+00 : f32
    %43 = vector.broadcast %cst_21 : f32 to vector<8x256xf32>
    %44 = arith.subf %43, %40 : vector<8x256xf32>
    %45 = arith.select %42, %44, %40 : vector<8x256xi1>, vector<8x256xf32>
    %cst_22 = arith.constant 1.000000e+00 : f32
    %46 = vector.broadcast %cst_22 : f32 to vector<8x256xf32>
    %47 = arith.addf %46, %45 : vector<8x256xf32>
    %48 = arith.mulf %11, %47 : vector<8x256xf32>
    %c0_23 = arith.constant 0 : index
    %c0_24 = arith.constant 0 : index
    %c0_25 = arith.constant 0 : index
    %49 = vector.load %arg6[%c0_23, %c0_24, %c0_25] : memref<1x8x256xf32, #tpu.memory_space<vmem>>, vector<1x8x256xf32>
    %50 = vector.shape_cast %49 : vector<1x8x256xf32> to vector<8x256xf32>
    %51 = vector.shape_cast %48 : vector<8x256xf32> to vector<1x8x256xf32>
    tpu.vector_store %arg6[%c0_23, %c0_24, %c0_25], %51 {strides = array<i32>} : memref<1x8x256xf32, #tpu.memory_space<vmem>>, vector<1x8x256xf32>,
    return
  }
  func.func @transform_0(%arg0: i32, %arg1: i32) -> (i32, i32, i32) {
    %c0_i32 = arith.constant 0 : i32
    %c0_i32_0 = arith.constant 0 : i32
    return %arg0, %c0_i32, %arg1 : i32, i32, i32
  }
  func.func @transform_1(%arg0: i32, %arg1: i32) -> (i32, i32, i32) {
    %c0_i32 = arith.constant 0 : i32
    %c0_i32_0 = arith.constant 0 : i32
    return %arg0, %c0_i32, %arg1 : i32, i32, i32
  }
  func.func @transform_2(%arg0: i32, %arg1: i32) -> (i32, i32) {
    %c0_i32 = arith.constant 0 : i32
    %c0_i32_0 = arith.constant 0 : i32
    %c0_i32_1 = arith.constant 0 : i32
    return %c0_i32, %c0_i32_0 : i32, i32
  }
  func.func @transform_3(%arg0: i32, %arg1: i32) -> (i32, i32) {
    %c0_i32 = arith.constant 0 : i32
    %c0_i32_0 = arith.constant 0 : i32
    %c0_i32_1 = arith.constant 0 : i32
    return %c0_i32, %c0_i32_0 : i32, i32
  }
  func.func @transform_4(%arg0: i32, %arg1: i32) -> (i32, i32, i32) {
    %c0_i32 = arith.constant 0 : i32
    %c0_i32_0 = arith.constant 0 : i32
    return %arg0, %c0_i32, %arg1 : i32, i32, i32
  }
}

module attributes {stable_mosaic.version = 11 : i64} {
  func.func @_conv1x1_res_kernel(%arg0: i32, %arg1: i32, %arg2: memref<1x8x256xf32, #tpu.memory_space<vmem>>, %arg3: memref<1x8x256xf32, #tpu.memory_space<vmem>>, %arg4: memref<8x8xf32, #tpu.memory_space<vmem>>, %arg5: memref<8x1xf32, #tpu.memory_space<vmem>>, %arg6: memref<1x8x256xf32, #tpu.memory_space<vmem>>) attributes {dimension_semantics = [#tpu.dimension_semantics<parallel>, #tpu.dimension_semantics<parallel>], iteration_bounds = array<i64: 2, 1>, scalar_prefetch = 0 : i64, scratch_operands = 0 : i64, tpu.core_type = #tpu.core_type<tc>, window_params = [{transform_indices = @transform_0, window_bounds = array<i64: 1, 8, 256>}, {transform_indices = @transform_1, window_bounds = array<i64: 1, 8, 256>}, {pipeline_mode = #tpu.pipeline_mode<synchronous>, transform_indices = @transform_2, window_bounds = array<i64: 8, 8>}, {pipeline_mode = #tpu.pipeline_mode<synchronous>, transform_indices = @transform_3, window_bounds = array<i64: 8, 1>}, {transform_indices = @transform_4, window_bounds = array<i64: 1, 8, 256>}]} {
    %c0 = arith.constant 0 : index
    %c0_0 = arith.constant 0 : index
    %0 = vector.load %arg4[%c0, %c0_0] : memref<8x8xf32, #tpu.memory_space<vmem>>, vector<8x8xf32>
    %c0_1 = arith.constant 0 : index
    %c0_2 = arith.constant 0 : index
    %c0_3 = arith.constant 0 : index
    %1 = vector.load %arg2[%c0_1, %c0_2, %c0_3] : memref<1x8x256xf32, #tpu.memory_space<vmem>>, vector<1x8x256xf32>
    %2 = vector.shape_cast %1 : vector<1x8x256xf32> to vector<8x256xf32>
    %cst = arith.constant dense<0.000000e+00> : vector<8x256xf32>
    %3 = tpu.matmul %0, %2, %cst {dimension_numbers = #tpu.dot_dimension_numbers<[1], [0], [0], [1], [0, 0, 1, 1], [], []>} : vector<8x8xf32>, vector<8x256xf32>, vector<8x256xf32> -> vector<8x256xf32>
    %c0_4 = arith.constant 0 : index
    %c0_5 = arith.constant 0 : index
    %4 = vector.load %arg5[%c0_4, %c0_5] : memref<8x1xf32, #tpu.memory_space<vmem>>, vector<8x1xf32>
    %5 = vector.broadcast %4 : vector<8x1xf32> to vector<8x256xf32>
    %6 = arith.addf %3, %5 : vector<8x256xf32>
    %c0_6 = arith.constant 0 : index
    %c0_7 = arith.constant 0 : index
    %c0_8 = arith.constant 0 : index
    %7 = vector.load %arg3[%c0_6, %c0_7, %c0_8] : memref<1x8x256xf32, #tpu.memory_space<vmem>>, vector<1x8x256xf32>
    %8 = vector.shape_cast %7 : vector<1x8x256xf32> to vector<8x256xf32>
    %9 = arith.addf %6, %8 : vector<8x256xf32>
    %c0_9 = arith.constant 0 : index
    %c0_10 = arith.constant 0 : index
    %c0_11 = arith.constant 0 : index
    %10 = vector.load %arg6[%c0_9, %c0_10, %c0_11] : memref<1x8x256xf32, #tpu.memory_space<vmem>>, vector<1x8x256xf32>
    %11 = vector.shape_cast %10 : vector<1x8x256xf32> to vector<8x256xf32>
    %12 = vector.shape_cast %9 : vector<8x256xf32> to vector<1x8x256xf32>
    tpu.vector_store %arg6[%c0_9, %c0_10, %c0_11], %12 {strides = array<i32>} : memref<1x8x256xf32, #tpu.memory_space<vmem>>, vector<1x8x256xf32>,
    return
  }
  func.func @transform_0(%arg0: i32, %arg1: i32) -> (i32, i32, i32) {
    %c0_i32 = arith.constant 0 : i32
    %c0_i32_0 = arith.constant 0 : i32
    return %arg0, %c0_i32, %arg1 : i32, i32, i32
  }
  func.func @transform_1(%arg0: i32, %arg1: i32) -> (i32, i32, i32) {
    %c0_i32 = arith.constant 0 : i32
    %c0_i32_0 = arith.constant 0 : i32
    return %arg0, %c0_i32, %arg1 : i32, i32, i32
  }
  func.func @transform_2(%arg0: i32, %arg1: i32) -> (i32, i32) {
    %c0_i32 = arith.constant 0 : i32
    %c0_i32_0 = arith.constant 0 : i32
    %c0_i32_1 = arith.constant 0 : i32
    return %c0_i32, %c0_i32_0 : i32, i32
  }
  func.func @transform_3(%arg0: i32, %arg1: i32) -> (i32, i32) {
    %c0_i32 = arith.constant 0 : i32
    %c0_i32_0 = arith.constant 0 : i32
    %c0_i32_1 = arith.constant 0 : i32
    return %c0_i32, %c0_i32_0 : i32, i32
  }
  func.func @transform_4(%arg0: i32, %arg1: i32) -> (i32, i32, i32) {
    %c0_i32 = arith.constant 0 : i32
    %c0_i32_0 = arith.constant 0 : i32
    return %arg0, %c0_i32, %arg1 : i32, i32, i32
  }
}

module attributes {stable_mosaic.version = 11 : i64} {
  func.func @_decoder_head_kernel(%arg0: i32, %arg1: i32, %arg2: memref<1x8x256xf32, #tpu.memory_space<vmem>>, %arg3: memref<128x8xf32, #tpu.memory_space<vmem>>, %arg4: memref<128x1xf32, #tpu.memory_space<vmem>>, %arg5: memref<3x128xf32, #tpu.memory_space<vmem>>, %arg6: memref<3x1xf32, #tpu.memory_space<vmem>>, %arg7: memref<1x3x256xf32, #tpu.memory_space<vmem>>) attributes {dimension_semantics = [#tpu.dimension_semantics<parallel>, #tpu.dimension_semantics<parallel>], iteration_bounds = array<i64: 2, 1>, scalar_prefetch = 0 : i64, scratch_operands = 0 : i64, tpu.core_type = #tpu.core_type<tc>, window_params = [{transform_indices = @transform_0, window_bounds = array<i64: 1, 8, 256>}, {pipeline_mode = #tpu.pipeline_mode<synchronous>, transform_indices = @transform_1, window_bounds = array<i64: 128, 8>}, {pipeline_mode = #tpu.pipeline_mode<synchronous>, transform_indices = @transform_2, window_bounds = array<i64: 128, 1>}, {pipeline_mode = #tpu.pipeline_mode<synchronous>, transform_indices = @transform_3, window_bounds = array<i64: 3, 128>}, {pipeline_mode = #tpu.pipeline_mode<synchronous>, transform_indices = @transform_4, window_bounds = array<i64: 3, 1>}, {transform_indices = @transform_5, window_bounds = array<i64: 1, 3, 256>}]} {
    %c0 = arith.constant 0 : index
    %c0_0 = arith.constant 0 : index
    %0 = vector.load %arg3[%c0, %c0_0] : memref<128x8xf32, #tpu.memory_space<vmem>>, vector<128x8xf32>
    %c0_1 = arith.constant 0 : index
    %c0_2 = arith.constant 0 : index
    %c0_3 = arith.constant 0 : index
    %1 = vector.load %arg2[%c0_1, %c0_2, %c0_3] : memref<1x8x256xf32, #tpu.memory_space<vmem>>, vector<1x8x256xf32>
    %2 = vector.shape_cast %1 : vector<1x8x256xf32> to vector<8x256xf32>
    %cst = arith.constant dense<0.000000e+00> : vector<128x256xf32>
    %3 = tpu.matmul %0, %2, %cst {dimension_numbers = #tpu.dot_dimension_numbers<[1], [0], [0], [1], [0, 0, 1, 1], [], []>} : vector<128x8xf32>, vector<8x256xf32>, vector<128x256xf32> -> vector<128x256xf32>
    %c0_4 = arith.constant 0 : index
    %c0_5 = arith.constant 0 : index
    %4 = vector.load %arg4[%c0_4, %c0_5] : memref<128x1xf32, #tpu.memory_space<vmem>>, vector<128x1xf32>
    %5 = vector.broadcast %4 : vector<128x1xf32> to vector<128x256xf32>
    %6 = arith.addf %3, %5 : vector<128x256xf32>
    %cst_6 = arith.constant 5.000000e-01 : f32
    %7 = vector.broadcast %cst_6 : f32 to vector<128x256xf32>
    %8 = arith.mulf %7, %6 : vector<128x256xf32>
    %cst_7 = arith.constant 0.707106769 : f32
    %9 = vector.broadcast %cst_7 : f32 to vector<128x256xf32>
    %10 = arith.mulf %6, %9 : vector<128x256xf32>
    %11 = math.absf %10 : vector<128x256xf32>
    %cst_8 = arith.constant 0.327591091 : f32
    %12 = vector.broadcast %cst_8 : f32 to vector<128x256xf32>
    %13 = arith.mulf %12, %11 : vector<128x256xf32>
    %cst_9 = arith.constant 1.000000e+00 : f32
    %14 = vector.broadcast %cst_9 : f32 to vector<128x256xf32>
    %15 = arith.addf %14, %13 : vector<128x256xf32>
    %16 = tpu.reciprocal %15 : vector<128x256xf32> -> vector<128x256xf32>
    %cst_10 = arith.constant 1.06140542 : f32
    %17 = vector.broadcast %cst_10 : f32 to vector<128x256xf32>
    %18 = arith.mulf %16, %17 : vector<128x256xf32>
    %cst_11 = arith.constant -1.45315206 : f32
    %19 = vector.broadcast %cst_11 : f32 to vector<128x256xf32>
    %20 = arith.addf %19, %18 : vector<128x256xf32>
    %21 = arith.mulf %16, %20 : vector<128x256xf32>
    %cst_12 = arith.constant 1.42141378 : f32
    %22 = vector.broadcast %cst_12 : f32 to vector<128x256xf32>
    %23 = arith.addf %22, %21 : vector<128x256xf32>
    %24 = arith.mulf %16, %23 : vector<128x256xf32>
    %cst_13 = arith.constant -0.284496725 : f32
    %25 = vector.broadcast %cst_13 : f32 to vector<128x256xf32>
    %26 = arith.addf %25, %24 : vector<128x256xf32>
    %27 = arith.mulf %16, %26 : vector<128x256xf32>
    %cst_14 = arith.constant 0.254829586 : f32
    %28 = vector.broadcast %cst_14 : f32 to vector<128x256xf32>
    %29 = arith.addf %28, %27 : vector<128x256xf32>
    %30 = arith.mulf %16, %29 : vector<128x256xf32>
    %cst_15 = arith.constant 0.000000e+00 : f32
    %31 = vector.broadcast %cst_15 : f32 to vector<128x256xf32>
    %32 = arith.subf %31, %11 : vector<128x256xf32>
    %33 = arith.mulf %32, %11 : vector<128x256xf32>
    %34 = math.exp %33 : vector<128x256xf32>
    %35 = arith.mulf %30, %34 : vector<128x256xf32>
    %cst_16 = arith.constant 1.000000e+00 : f32
    %36 = vector.broadcast %cst_16 : f32 to vector<128x256xf32>
    %37 = arith.subf %36, %35 : vector<128x256xf32>
    %cst_17 = arith.constant 0.000000e+00 : f32
    %38 = vector.broadcast %cst_17 : f32 to vector<128x256xf32>
    %39 = arith.cmpf olt, %10, %38 : vector<128x256xf32>
    %cst_18 = arith.constant 0.000000e+00 : f32
    %40 = vector.broadcast %cst_18 : f32 to vector<128x256xf32>
    %41 = arith.subf %40, %37 : vector<128x256xf32>
    %42 = arith.select %39, %41, %37 : vector<128x256xi1>, vector<128x256xf32>
    %cst_19 = arith.constant 1.000000e+00 : f32
    %43 = vector.broadcast %cst_19 : f32 to vector<128x256xf32>
    %44 = arith.addf %43, %42 : vector<128x256xf32>
    %45 = arith.mulf %8, %44 : vector<128x256xf32>
    %c0_20 = arith.constant 0 : index
    %c0_21 = arith.constant 0 : index
    %46 = vector.load %arg5[%c0_20, %c0_21] : memref<3x128xf32, #tpu.memory_space<vmem>>, vector<3x128xf32>
    %cst_22 = arith.constant dense<0.000000e+00> : vector<3x256xf32>
    %47 = tpu.matmul %46, %45, %cst_22 {dimension_numbers = #tpu.dot_dimension_numbers<[1], [0], [0], [1], [0, 0, 1, 1], [], []>} : vector<3x128xf32>, vector<128x256xf32>, vector<3x256xf32> -> vector<3x256xf32>
    %c0_23 = arith.constant 0 : index
    %c0_24 = arith.constant 0 : index
    %48 = vector.load %arg6[%c0_23, %c0_24] : memref<3x1xf32, #tpu.memory_space<vmem>>, vector<3x1xf32>
    %49 = vector.broadcast %48 : vector<3x1xf32> to vector<3x256xf32>
    %50 = arith.addf %47, %49 : vector<3x256xf32>
    %c0_25 = arith.constant 0 : index
    %c0_26 = arith.constant 0 : index
    %c0_27 = arith.constant 0 : index
    %51 = vector.load %arg7[%c0_25, %c0_26, %c0_27] : memref<1x3x256xf32, #tpu.memory_space<vmem>>, vector<1x3x256xf32>
    %52 = vector.shape_cast %51 : vector<1x3x256xf32> to vector<3x256xf32>
    %53 = vector.shape_cast %50 : vector<3x256xf32> to vector<1x3x256xf32>
    tpu.vector_store %arg7[%c0_25, %c0_26, %c0_27], %53 {strides = array<i32>} : memref<1x3x256xf32, #tpu.memory_space<vmem>>, vector<1x3x256xf32>,
    return
  }
  func.func @transform_0(%arg0: i32, %arg1: i32) -> (i32, i32, i32) {
    %c0_i32 = arith.constant 0 : i32
    %c0_i32_0 = arith.constant 0 : i32
    return %arg0, %c0_i32, %arg1 : i32, i32, i32
  }
  func.func @transform_1(%arg0: i32, %arg1: i32) -> (i32, i32) {
    %c0_i32 = arith.constant 0 : i32
    %c0_i32_0 = arith.constant 0 : i32
    %c0_i32_1 = arith.constant 0 : i32
    return %c0_i32, %c0_i32_0 : i32, i32
  }
  func.func @transform_2(%arg0: i32, %arg1: i32) -> (i32, i32) {
    %c0_i32 = arith.constant 0 : i32
    %c0_i32_0 = arith.constant 0 : i32
    %c0_i32_1 = arith.constant 0 : i32
    return %c0_i32, %c0_i32_0 : i32, i32
  }
  func.func @transform_3(%arg0: i32, %arg1: i32) -> (i32, i32) {
    %c0_i32 = arith.constant 0 : i32
    %c0_i32_0 = arith.constant 0 : i32
    %c0_i32_1 = arith.constant 0 : i32
    return %c0_i32, %c0_i32_0 : i32, i32
  }
  func.func @transform_4(%arg0: i32, %arg1: i32) -> (i32, i32) {
    %c0_i32 = arith.constant 0 : i32
    %c0_i32_0 = arith.constant 0 : i32
    %c0_i32_1 = arith.constant 0 : i32
    return %c0_i32, %c0_i32_0 : i32, i32
  }
  func.func @transform_5(%arg0: i32, %arg1: i32) -> (i32, i32, i32) {
    %c0_i32 = arith.constant 0 : i32
    %c0_i32_0 = arith.constant 0 : i32
    return %arg0, %c0_i32, %arg1 : i32, i32, i32
  }
}

module attributes {stable_mosaic.version = 11 : i64} {
  func.func @_conv1x1_res_kernel(%arg0: i32, %arg1: i32, %arg2: memref<1x10x256xf32, #tpu.memory_space<vmem>>, %arg3: memref<1x8x256xf32, #tpu.memory_space<vmem>>, %arg4: memref<8x10xf32, #tpu.memory_space<vmem>>, %arg5: memref<8x1xf32, #tpu.memory_space<vmem>>, %arg6: memref<1x8x256xf32, #tpu.memory_space<vmem>>) attributes {dimension_semantics = [#tpu.dimension_semantics<parallel>, #tpu.dimension_semantics<parallel>], iteration_bounds = array<i64: 2, 1>, scalar_prefetch = 0 : i64, scratch_operands = 0 : i64, tpu.core_type = #tpu.core_type<tc>, window_params = [{transform_indices = @transform_0, window_bounds = array<i64: 1, 10, 256>}, {transform_indices = @transform_1, window_bounds = array<i64: 1, 8, 256>}, {pipeline_mode = #tpu.pipeline_mode<synchronous>, transform_indices = @transform_2, window_bounds = array<i64: 8, 10>}, {pipeline_mode = #tpu.pipeline_mode<synchronous>, transform_indices = @transform_3, window_bounds = array<i64: 8, 1>}, {transform_indices = @transform_4, window_bounds = array<i64: 1, 8, 256>}]} {
    %c0 = arith.constant 0 : index
    %c0_0 = arith.constant 0 : index
    %0 = vector.load %arg4[%c0, %c0_0] : memref<8x10xf32, #tpu.memory_space<vmem>>, vector<8x10xf32>
    %c0_1 = arith.constant 0 : index
    %c0_2 = arith.constant 0 : index
    %c0_3 = arith.constant 0 : index
    %1 = vector.load %arg2[%c0_1, %c0_2, %c0_3] : memref<1x10x256xf32, #tpu.memory_space<vmem>>, vector<1x10x256xf32>
    %2 = vector.shape_cast %1 : vector<1x10x256xf32> to vector<10x256xf32>
    %cst = arith.constant dense<0.000000e+00> : vector<8x256xf32>
    %3 = tpu.matmul %0, %2, %cst {dimension_numbers = #tpu.dot_dimension_numbers<[1], [0], [0], [1], [0, 0, 1, 1], [], []>} : vector<8x10xf32>, vector<10x256xf32>, vector<8x256xf32> -> vector<8x256xf32>
    %c0_4 = arith.constant 0 : index
    %c0_5 = arith.constant 0 : index
    %4 = vector.load %arg5[%c0_4, %c0_5] : memref<8x1xf32, #tpu.memory_space<vmem>>, vector<8x1xf32>
    %5 = vector.broadcast %4 : vector<8x1xf32> to vector<8x256xf32>
    %6 = arith.addf %3, %5 : vector<8x256xf32>
    %c0_6 = arith.constant 0 : index
    %c0_7 = arith.constant 0 : index
    %c0_8 = arith.constant 0 : index
    %7 = vector.load %arg3[%c0_6, %c0_7, %c0_8] : memref<1x8x256xf32, #tpu.memory_space<vmem>>, vector<1x8x256xf32>
    %8 = vector.shape_cast %7 : vector<1x8x256xf32> to vector<8x256xf32>
    %9 = arith.addf %6, %8 : vector<8x256xf32>
    %cst_9 = arith.constant 5.000000e-01 : f32
    %10 = vector.broadcast %cst_9 : f32 to vector<8x256xf32>
    %11 = arith.mulf %10, %9 : vector<8x256xf32>
    %cst_10 = arith.constant 0.707106769 : f32
    %12 = vector.broadcast %cst_10 : f32 to vector<8x256xf32>
    %13 = arith.mulf %9, %12 : vector<8x256xf32>
    %14 = math.absf %13 : vector<8x256xf32>
    %cst_11 = arith.constant 0.327591091 : f32
    %15 = vector.broadcast %cst_11 : f32 to vector<8x256xf32>
    %16 = arith.mulf %15, %14 : vector<8x256xf32>
    %cst_12 = arith.constant 1.000000e+00 : f32
    %17 = vector.broadcast %cst_12 : f32 to vector<8x256xf32>
    %18 = arith.addf %17, %16 : vector<8x256xf32>
    %19 = tpu.reciprocal %18 : vector<8x256xf32> -> vector<8x256xf32>
    %cst_13 = arith.constant 1.06140542 : f32
    %20 = vector.broadcast %cst_13 : f32 to vector<8x256xf32>
    %21 = arith.mulf %19, %20 : vector<8x256xf32>
    %cst_14 = arith.constant -1.45315206 : f32
    %22 = vector.broadcast %cst_14 : f32 to vector<8x256xf32>
    %23 = arith.addf %22, %21 : vector<8x256xf32>
    %24 = arith.mulf %19, %23 : vector<8x256xf32>
    %cst_15 = arith.constant 1.42141378 : f32
    %25 = vector.broadcast %cst_15 : f32 to vector<8x256xf32>
    %26 = arith.addf %25, %24 : vector<8x256xf32>
    %27 = arith.mulf %19, %26 : vector<8x256xf32>
    %cst_16 = arith.constant -0.284496725 : f32
    %28 = vector.broadcast %cst_16 : f32 to vector<8x256xf32>
    %29 = arith.addf %28, %27 : vector<8x256xf32>
    %30 = arith.mulf %19, %29 : vector<8x256xf32>
    %cst_17 = arith.constant 0.254829586 : f32
    %31 = vector.broadcast %cst_17 : f32 to vector<8x256xf32>
    %32 = arith.addf %31, %30 : vector<8x256xf32>
    %33 = arith.mulf %19, %32 : vector<8x256xf32>
    %cst_18 = arith.constant 0.000000e+00 : f32
    %34 = vector.broadcast %cst_18 : f32 to vector<8x256xf32>
    %35 = arith.subf %34, %14 : vector<8x256xf32>
    %36 = arith.mulf %35, %14 : vector<8x256xf32>
    %37 = math.exp %36 : vector<8x256xf32>
    %38 = arith.mulf %33, %37 : vector<8x256xf32>
    %cst_19 = arith.constant 1.000000e+00 : f32
    %39 = vector.broadcast %cst_19 : f32 to vector<8x256xf32>
    %40 = arith.subf %39, %38 : vector<8x256xf32>
    %cst_20 = arith.constant 0.000000e+00 : f32
    %41 = vector.broadcast %cst_20 : f32 to vector<8x256xf32>
    %42 = arith.cmpf olt, %13, %41 : vector<8x256xf32>
    %cst_21 = arith.constant 0.000000e+00 : f32
    %43 = vector.broadcast %cst_21 : f32 to vector<8x256xf32>
    %44 = arith.subf %43, %40 : vector<8x256xf32>
    %45 = arith.select %42, %44, %40 : vector<8x256xi1>, vector<8x256xf32>
    %cst_22 = arith.constant 1.000000e+00 : f32
    %46 = vector.broadcast %cst_22 : f32 to vector<8x256xf32>
    %47 = arith.addf %46, %45 : vector<8x256xf32>
    %48 = arith.mulf %11, %47 : vector<8x256xf32>
    %c0_23 = arith.constant 0 : index
    %c0_24 = arith.constant 0 : index
    %c0_25 = arith.constant 0 : index
    %49 = vector.load %arg6[%c0_23, %c0_24, %c0_25] : memref<1x8x256xf32, #tpu.memory_space<vmem>>, vector<1x8x256xf32>
    %50 = vector.shape_cast %49 : vector<1x8x256xf32> to vector<8x256xf32>
    %51 = vector.shape_cast %48 : vector<8x256xf32> to vector<1x8x256xf32>
    tpu.vector_store %arg6[%c0_23, %c0_24, %c0_25], %51 {strides = array<i32>} : memref<1x8x256xf32, #tpu.memory_space<vmem>>, vector<1x8x256xf32>,
    return
  }
  func.func @transform_0(%arg0: i32, %arg1: i32) -> (i32, i32, i32) {
    %c0_i32 = arith.constant 0 : i32
    %c0_i32_0 = arith.constant 0 : i32
    return %arg0, %c0_i32, %arg1 : i32, i32, i32
  }
  func.func @transform_1(%arg0: i32, %arg1: i32) -> (i32, i32, i32) {
    %c0_i32 = arith.constant 0 : i32
    %c0_i32_0 = arith.constant 0 : i32
    return %arg0, %c0_i32, %arg1 : i32, i32, i32
  }
  func.func @transform_2(%arg0: i32, %arg1: i32) -> (i32, i32) {
    %c0_i32 = arith.constant 0 : i32
    %c0_i32_0 = arith.constant 0 : i32
    %c0_i32_1 = arith.constant 0 : i32
    return %c0_i32, %c0_i32_0 : i32, i32
  }
  func.func @transform_3(%arg0: i32, %arg1: i32) -> (i32, i32) {
    %c0_i32 = arith.constant 0 : i32
    %c0_i32_0 = arith.constant 0 : i32
    %c0_i32_1 = arith.constant 0 : i32
    return %c0_i32, %c0_i32_0 : i32, i32
  }
  func.func @transform_4(%arg0: i32, %arg1: i32) -> (i32, i32, i32) {
    %c0_i32 = arith.constant 0 : i32
    %c0_i32_0 = arith.constant 0 : i32
    return %arg0, %c0_i32, %arg1 : i32, i32, i32
  }
}

module attributes {stable_mosaic.version = 11 : i64} {
  func.func @_spectral_kernel(%arg0: i32, %arg1: i32, %arg2: memref<1x10x32xf32, #tpu.memory_space<vmem>>, %arg3: memref<1x10x32xf32, #tpu.memory_space<vmem>>, %arg4: memref<10x8x32xf32, #tpu.memory_space<vmem>>, %arg5: memref<10x8x32xf32, #tpu.memory_space<vmem>>, %arg6: memref<1x8x32xf32, #tpu.memory_space<vmem>>, %arg7: memref<1x8x32xf32, #tpu.memory_space<vmem>>) attributes {dimension_semantics = [#tpu.dimension_semantics<parallel>, #tpu.dimension_semantics<parallel>], iteration_bounds = array<i64: 2, 1>, scalar_prefetch = 0 : i64, scratch_operands = 0 : i64, tpu.core_type = #tpu.core_type<tc>, window_params = [{transform_indices = @transform_0, window_bounds = array<i64: 1, 10, 32>}, {transform_indices = @transform_1, window_bounds = array<i64: 1, 10, 32>}, {transform_indices = @transform_2, window_bounds = array<i64: 10, 8, 32>}, {transform_indices = @transform_3, window_bounds = array<i64: 10, 8, 32>}, {transform_indices = @transform_4, window_bounds = array<i64: 1, 8, 32>}, {transform_indices = @transform_5, window_bounds = array<i64: 1, 8, 32>}]} {
    %c0 = arith.constant 0 : index
    %c0_0 = arith.constant 0 : index
    %c0_1 = arith.constant 0 : index
    %0 = vector.load %arg2[%c0, %c0_0, %c0_1] : memref<1x10x32xf32, #tpu.memory_space<vmem>>, vector<1x10x32xf32>
    %1 = vector.shape_cast %0 : vector<1x10x32xf32> to vector<10x32xf32>
    %c0_2 = arith.constant 0 : index
    %c0_3 = arith.constant 0 : index
    %c0_4 = arith.constant 0 : index
    %2 = vector.load %arg3[%c0_2, %c0_3, %c0_4] : memref<1x10x32xf32, #tpu.memory_space<vmem>>, vector<1x10x32xf32>
    %3 = vector.shape_cast %2 : vector<1x10x32xf32> to vector<10x32xf32>
    %c0_5 = arith.constant 0 : index
    %c0_6 = arith.constant 0 : index
    %c0_7 = arith.constant 0 : index
    %4 = vector.load %arg4[%c0_5, %c0_6, %c0_7] : memref<10x8x32xf32, #tpu.memory_space<vmem>>, vector<10x8x32xf32>
    %c0_8 = arith.constant 0 : index
    %c0_9 = arith.constant 0 : index
    %c0_10 = arith.constant 0 : index
    %5 = vector.load %arg5[%c0_8, %c0_9, %c0_10] : memref<10x8x32xf32, #tpu.memory_space<vmem>>, vector<10x8x32xf32>
    %6 = arith.addf %1, %3 : vector<10x32xf32>
    %7 = arith.addf %4, %5 : vector<10x8x32xf32>
    %cst = arith.constant 0.000000e+00 : f32
    %8 = vector.broadcast %cst : f32 to vector<8x32xf32>
    %cst_11 = arith.constant 0.000000e+00 : f32
    %9 = vector.broadcast %cst_11 : f32 to vector<8x32xf32>
    %cst_12 = arith.constant 0.000000e+00 : f32
    %10 = vector.broadcast %cst_12 : f32 to vector<8x32xf32>
    %11 = vector.extract_strided_slice %1 {offsets = [0, 0], sizes = [1, 32], strides = [1, 1]} : vector<10x32xf32> to vector<1x32xf32>
    %12 = vector.extract_strided_slice %3 {offsets = [0, 0], sizes = [1, 32], strides = [1, 1]} : vector<10x32xf32> to vector<1x32xf32>
    %13 = vector.extract_strided_slice %6 {offsets = [0, 0], sizes = [1, 32], strides = [1, 1]} : vector<10x32xf32> to vector<1x32xf32>
    %14 = vector.extract_strided_slice %4 {offsets = [0, 0, 0], sizes = [1, 8, 32], strides = [1, 1, 1]} : vector<10x8x32xf32> to vector<1x8x32xf32>
    %15 = vector.shape_cast %14 : vector<1x8x32xf32> to vector<8x32xf32>
    %16 = vector.broadcast %11 : vector<1x32xf32> to vector<8x32xf32>
    %17 = arith.mulf %16, %15 : vector<8x32xf32>
    %18 = arith.addf %8, %17 : vector<8x32xf32>
    %19 = vector.extract_strided_slice %5 {offsets = [0, 0, 0], sizes = [1, 8, 32], strides = [1, 1, 1]} : vector<10x8x32xf32> to vector<1x8x32xf32>
    %20 = vector.shape_cast %19 : vector<1x8x32xf32> to vector<8x32xf32>
    %21 = vector.broadcast %12 : vector<1x32xf32> to vector<8x32xf32>
    %22 = arith.mulf %21, %20 : vector<8x32xf32>
    %23 = arith.addf %9, %22 : vector<8x32xf32>
    %24 = vector.extract_strided_slice %7 {offsets = [0, 0, 0], sizes = [1, 8, 32], strides = [1, 1, 1]} : vector<10x8x32xf32> to vector<1x8x32xf32>
    %25 = vector.shape_cast %24 : vector<1x8x32xf32> to vector<8x32xf32>
    %26 = vector.broadcast %13 : vector<1x32xf32> to vector<8x32xf32>
    %27 = arith.mulf %26, %25 : vector<8x32xf32>
    %28 = arith.addf %10, %27 : vector<8x32xf32>
    %29 = vector.extract_strided_slice %1 {offsets = [1, 0], sizes = [1, 32], strides = [1, 1]} : vector<10x32xf32> to vector<1x32xf32>
    %30 = vector.extract_strided_slice %3 {offsets = [1, 0], sizes = [1, 32], strides = [1, 1]} : vector<10x32xf32> to vector<1x32xf32>
    %31 = vector.extract_strided_slice %6 {offsets = [1, 0], sizes = [1, 32], strides = [1, 1]} : vector<10x32xf32> to vector<1x32xf32>
    %32 = vector.extract_strided_slice %4 {offsets = [1, 0, 0], sizes = [1, 8, 32], strides = [1, 1, 1]} : vector<10x8x32xf32> to vector<1x8x32xf32>
    %33 = vector.shape_cast %32 : vector<1x8x32xf32> to vector<8x32xf32>
    %34 = vector.broadcast %29 : vector<1x32xf32> to vector<8x32xf32>
    %35 = arith.mulf %34, %33 : vector<8x32xf32>
    %36 = arith.addf %18, %35 : vector<8x32xf32>
    %37 = vector.extract_strided_slice %5 {offsets = [1, 0, 0], sizes = [1, 8, 32], strides = [1, 1, 1]} : vector<10x8x32xf32> to vector<1x8x32xf32>
    %38 = vector.shape_cast %37 : vector<1x8x32xf32> to vector<8x32xf32>
    %39 = vector.broadcast %30 : vector<1x32xf32> to vector<8x32xf32>
    %40 = arith.mulf %39, %38 : vector<8x32xf32>
    %41 = arith.addf %23, %40 : vector<8x32xf32>
    %42 = vector.extract_strided_slice %7 {offsets = [1, 0, 0], sizes = [1, 8, 32], strides = [1, 1, 1]} : vector<10x8x32xf32> to vector<1x8x32xf32>
    %43 = vector.shape_cast %42 : vector<1x8x32xf32> to vector<8x32xf32>
    %44 = vector.broadcast %31 : vector<1x32xf32> to vector<8x32xf32>
    %45 = arith.mulf %44, %43 : vector<8x32xf32>
    %46 = arith.addf %28, %45 : vector<8x32xf32>
    %47 = vector.extract_strided_slice %1 {offsets = [2, 0], sizes = [1, 32], strides = [1, 1]} : vector<10x32xf32> to vector<1x32xf32>
    %48 = vector.extract_strided_slice %3 {offsets = [2, 0], sizes = [1, 32], strides = [1, 1]} : vector<10x32xf32> to vector<1x32xf32>
    %49 = vector.extract_strided_slice %6 {offsets = [2, 0], sizes = [1, 32], strides = [1, 1]} : vector<10x32xf32> to vector<1x32xf32>
    %50 = vector.extract_strided_slice %4 {offsets = [2, 0, 0], sizes = [1, 8, 32], strides = [1, 1, 1]} : vector<10x8x32xf32> to vector<1x8x32xf32>
    %51 = vector.shape_cast %50 : vector<1x8x32xf32> to vector<8x32xf32>
    %52 = vector.broadcast %47 : vector<1x32xf32> to vector<8x32xf32>
    %53 = arith.mulf %52, %51 : vector<8x32xf32>
    %54 = arith.addf %36, %53 : vector<8x32xf32>
    %55 = vector.extract_strided_slice %5 {offsets = [2, 0, 0], sizes = [1, 8, 32], strides = [1, 1, 1]} : vector<10x8x32xf32> to vector<1x8x32xf32>
    %56 = vector.shape_cast %55 : vector<1x8x32xf32> to vector<8x32xf32>
    %57 = vector.broadcast %48 : vector<1x32xf32> to vector<8x32xf32>
    %58 = arith.mulf %57, %56 : vector<8x32xf32>
    %59 = arith.addf %41, %58 : vector<8x32xf32>
    %60 = vector.extract_strided_slice %7 {offsets = [2, 0, 0], sizes = [1, 8, 32], strides = [1, 1, 1]} : vector<10x8x32xf32> to vector<1x8x32xf32>
    %61 = vector.shape_cast %60 : vector<1x8x32xf32> to vector<8x32xf32>
    %62 = vector.broadcast %49 : vector<1x32xf32> to vector<8x32xf32>
    %63 = arith.mulf %62, %61 : vector<8x32xf32>
    %64 = arith.addf %46, %63 : vector<8x32xf32>
    %65 = vector.extract_strided_slice %1 {offsets = [3, 0], sizes = [1, 32], strides = [1, 1]} : vector<10x32xf32> to vector<1x32xf32>
    %66 = vector.extract_strided_slice %3 {offsets = [3, 0], sizes = [1, 32], strides = [1, 1]} : vector<10x32xf32> to vector<1x32xf32>
    %67 = vector.extract_strided_slice %6 {offsets = [3, 0], sizes = [1, 32], strides = [1, 1]} : vector<10x32xf32> to vector<1x32xf32>
    %68 = vector.extract_strided_slice %4 {offsets = [3, 0, 0], sizes = [1, 8, 32], strides = [1, 1, 1]} : vector<10x8x32xf32> to vector<1x8x32xf32>
    %69 = vector.shape_cast %68 : vector<1x8x32xf32> to vector<8x32xf32>
    %70 = vector.broadcast %65 : vector<1x32xf32> to vector<8x32xf32>
    %71 = arith.mulf %70, %69 : vector<8x32xf32>
    %72 = arith.addf %54, %71 : vector<8x32xf32>
    %73 = vector.extract_strided_slice %5 {offsets = [3, 0, 0], sizes = [1, 8, 32], strides = [1, 1, 1]} : vector<10x8x32xf32> to vector<1x8x32xf32>
    %74 = vector.shape_cast %73 : vector<1x8x32xf32> to vector<8x32xf32>
    %75 = vector.broadcast %66 : vector<1x32xf32> to vector<8x32xf32>
    %76 = arith.mulf %75, %74 : vector<8x32xf32>
    %77 = arith.addf %59, %76 : vector<8x32xf32>
    %78 = vector.extract_strided_slice %7 {offsets = [3, 0, 0], sizes = [1, 8, 32], strides = [1, 1, 1]} : vector<10x8x32xf32> to vector<1x8x32xf32>
    %79 = vector.shape_cast %78 : vector<1x8x32xf32> to vector<8x32xf32>
    %80 = vector.broadcast %67 : vector<1x32xf32> to vector<8x32xf32>
    %81 = arith.mulf %80, %79 : vector<8x32xf32>
    %82 = arith.addf %64, %81 : vector<8x32xf32>
    %83 = vector.extract_strided_slice %1 {offsets = [4, 0], sizes = [1, 32], strides = [1, 1]} : vector<10x32xf32> to vector<1x32xf32>
    %84 = vector.extract_strided_slice %3 {offsets = [4, 0], sizes = [1, 32], strides = [1, 1]} : vector<10x32xf32> to vector<1x32xf32>
    %85 = vector.extract_strided_slice %6 {offsets = [4, 0], sizes = [1, 32], strides = [1, 1]} : vector<10x32xf32> to vector<1x32xf32>
    %86 = vector.extract_strided_slice %4 {offsets = [4, 0, 0], sizes = [1, 8, 32], strides = [1, 1, 1]} : vector<10x8x32xf32> to vector<1x8x32xf32>
    %87 = vector.shape_cast %86 : vector<1x8x32xf32> to vector<8x32xf32>
    %88 = vector.broadcast %83 : vector<1x32xf32> to vector<8x32xf32>
    %89 = arith.mulf %88, %87 : vector<8x32xf32>
    %90 = arith.addf %72, %89 : vector<8x32xf32>
    %91 = vector.extract_strided_slice %5 {offsets = [4, 0, 0], sizes = [1, 8, 32], strides = [1, 1, 1]} : vector<10x8x32xf32> to vector<1x8x32xf32>
    %92 = vector.shape_cast %91 : vector<1x8x32xf32> to vector<8x32xf32>
    %93 = vector.broadcast %84 : vector<1x32xf32> to vector<8x32xf32>
    %94 = arith.mulf %93, %92 : vector<8x32xf32>
    %95 = arith.addf %77, %94 : vector<8x32xf32>
    %96 = vector.extract_strided_slice %7 {offsets = [4, 0, 0], sizes = [1, 8, 32], strides = [1, 1, 1]} : vector<10x8x32xf32> to vector<1x8x32xf32>
    %97 = vector.shape_cast %96 : vector<1x8x32xf32> to vector<8x32xf32>
    %98 = vector.broadcast %85 : vector<1x32xf32> to vector<8x32xf32>
    %99 = arith.mulf %98, %97 : vector<8x32xf32>
    %100 = arith.addf %82, %99 : vector<8x32xf32>
    %101 = vector.extract_strided_slice %1 {offsets = [5, 0], sizes = [1, 32], strides = [1, 1]} : vector<10x32xf32> to vector<1x32xf32>
    %102 = vector.extract_strided_slice %3 {offsets = [5, 0], sizes = [1, 32], strides = [1, 1]} : vector<10x32xf32> to vector<1x32xf32>
    %103 = vector.extract_strided_slice %6 {offsets = [5, 0], sizes = [1, 32], strides = [1, 1]} : vector<10x32xf32> to vector<1x32xf32>
    %104 = vector.extract_strided_slice %4 {offsets = [5, 0, 0], sizes = [1, 8, 32], strides = [1, 1, 1]} : vector<10x8x32xf32> to vector<1x8x32xf32>
    %105 = vector.shape_cast %104 : vector<1x8x32xf32> to vector<8x32xf32>
    %106 = vector.broadcast %101 : vector<1x32xf32> to vector<8x32xf32>
    %107 = arith.mulf %106, %105 : vector<8x32xf32>
    %108 = arith.addf %90, %107 : vector<8x32xf32>
    %109 = vector.extract_strided_slice %5 {offsets = [5, 0, 0], sizes = [1, 8, 32], strides = [1, 1, 1]} : vector<10x8x32xf32> to vector<1x8x32xf32>
    %110 = vector.shape_cast %109 : vector<1x8x32xf32> to vector<8x32xf32>
    %111 = vector.broadcast %102 : vector<1x32xf32> to vector<8x32xf32>
    %112 = arith.mulf %111, %110 : vector<8x32xf32>
    %113 = arith.addf %95, %112 : vector<8x32xf32>
    %114 = vector.extract_strided_slice %7 {offsets = [5, 0, 0], sizes = [1, 8, 32], strides = [1, 1, 1]} : vector<10x8x32xf32> to vector<1x8x32xf32>
    %115 = vector.shape_cast %114 : vector<1x8x32xf32> to vector<8x32xf32>
    %116 = vector.broadcast %103 : vector<1x32xf32> to vector<8x32xf32>
    %117 = arith.mulf %116, %115 : vector<8x32xf32>
    %118 = arith.addf %100, %117 : vector<8x32xf32>
    %119 = vector.extract_strided_slice %1 {offsets = [6, 0], sizes = [1, 32], strides = [1, 1]} : vector<10x32xf32> to vector<1x32xf32>
    %120 = vector.extract_strided_slice %3 {offsets = [6, 0], sizes = [1, 32], strides = [1, 1]} : vector<10x32xf32> to vector<1x32xf32>
    %121 = vector.extract_strided_slice %6 {offsets = [6, 0], sizes = [1, 32], strides = [1, 1]} : vector<10x32xf32> to vector<1x32xf32>
    %122 = vector.extract_strided_slice %4 {offsets = [6, 0, 0], sizes = [1, 8, 32], strides = [1, 1, 1]} : vector<10x8x32xf32> to vector<1x8x32xf32>
    %123 = vector.shape_cast %122 : vector<1x8x32xf32> to vector<8x32xf32>
    %124 = vector.broadcast %119 : vector<1x32xf32> to vector<8x32xf32>
    %125 = arith.mulf %124, %123 : vector<8x32xf32>
    %126 = arith.addf %108, %125 : vector<8x32xf32>
    %127 = vector.extract_strided_slice %5 {offsets = [6, 0, 0], sizes = [1, 8, 32], strides = [1, 1, 1]} : vector<10x8x32xf32> to vector<1x8x32xf32>
    %128 = vector.shape_cast %127 : vector<1x8x32xf32> to vector<8x32xf32>
    %129 = vector.broadcast %120 : vector<1x32xf32> to vector<8x32xf32>
    %130 = arith.mulf %129, %128 : vector<8x32xf32>
    %131 = arith.addf %113, %130 : vector<8x32xf32>
    %132 = vector.extract_strided_slice %7 {offsets = [6, 0, 0], sizes = [1, 8, 32], strides = [1, 1, 1]} : vector<10x8x32xf32> to vector<1x8x32xf32>
    %133 = vector.shape_cast %132 : vector<1x8x32xf32> to vector<8x32xf32>
    %134 = vector.broadcast %121 : vector<1x32xf32> to vector<8x32xf32>
    %135 = arith.mulf %134, %133 : vector<8x32xf32>
    %136 = arith.addf %118, %135 : vector<8x32xf32>
    %137 = vector.extract_strided_slice %1 {offsets = [7, 0], sizes = [1, 32], strides = [1, 1]} : vector<10x32xf32> to vector<1x32xf32>
    %138 = vector.extract_strided_slice %3 {offsets = [7, 0], sizes = [1, 32], strides = [1, 1]} : vector<10x32xf32> to vector<1x32xf32>
    %139 = vector.extract_strided_slice %6 {offsets = [7, 0], sizes = [1, 32], strides = [1, 1]} : vector<10x32xf32> to vector<1x32xf32>
    %140 = vector.extract_strided_slice %4 {offsets = [7, 0, 0], sizes = [1, 8, 32], strides = [1, 1, 1]} : vector<10x8x32xf32> to vector<1x8x32xf32>
    %141 = vector.shape_cast %140 : vector<1x8x32xf32> to vector<8x32xf32>
    %142 = vector.broadcast %137 : vector<1x32xf32> to vector<8x32xf32>
    %143 = arith.mulf %142, %141 : vector<8x32xf32>
    %144 = arith.addf %126, %143 : vector<8x32xf32>
    %145 = vector.extract_strided_slice %5 {offsets = [7, 0, 0], sizes = [1, 8, 32], strides = [1, 1, 1]} : vector<10x8x32xf32> to vector<1x8x32xf32>
    %146 = vector.shape_cast %145 : vector<1x8x32xf32> to vector<8x32xf32>
    %147 = vector.broadcast %138 : vector<1x32xf32> to vector<8x32xf32>
    %148 = arith.mulf %147, %146 : vector<8x32xf32>
    %149 = arith.addf %131, %148 : vector<8x32xf32>
    %150 = vector.extract_strided_slice %7 {offsets = [7, 0, 0], sizes = [1, 8, 32], strides = [1, 1, 1]} : vector<10x8x32xf32> to vector<1x8x32xf32>
    %151 = vector.shape_cast %150 : vector<1x8x32xf32> to vector<8x32xf32>
    %152 = vector.broadcast %139 : vector<1x32xf32> to vector<8x32xf32>
    %153 = arith.mulf %152, %151 : vector<8x32xf32>
    %154 = arith.addf %136, %153 : vector<8x32xf32>
    %155 = vector.extract_strided_slice %1 {offsets = [8, 0], sizes = [1, 32], strides = [1, 1]} : vector<10x32xf32> to vector<1x32xf32>
    %156 = vector.extract_strided_slice %3 {offsets = [8, 0], sizes = [1, 32], strides = [1, 1]} : vector<10x32xf32> to vector<1x32xf32>
    %157 = vector.extract_strided_slice %6 {offsets = [8, 0], sizes = [1, 32], strides = [1, 1]} : vector<10x32xf32> to vector<1x32xf32>
    %158 = vector.extract_strided_slice %4 {offsets = [8, 0, 0], sizes = [1, 8, 32], strides = [1, 1, 1]} : vector<10x8x32xf32> to vector<1x8x32xf32>
    %159 = vector.shape_cast %158 : vector<1x8x32xf32> to vector<8x32xf32>
    %160 = vector.broadcast %155 : vector<1x32xf32> to vector<8x32xf32>
    %161 = arith.mulf %160, %159 : vector<8x32xf32>
    %162 = arith.addf %144, %161 : vector<8x32xf32>
    %163 = vector.extract_strided_slice %5 {offsets = [8, 0, 0], sizes = [1, 8, 32], strides = [1, 1, 1]} : vector<10x8x32xf32> to vector<1x8x32xf32>
    %164 = vector.shape_cast %163 : vector<1x8x32xf32> to vector<8x32xf32>
    %165 = vector.broadcast %156 : vector<1x32xf32> to vector<8x32xf32>
    %166 = arith.mulf %165, %164 : vector<8x32xf32>
    %167 = arith.addf %149, %166 : vector<8x32xf32>
    %168 = vector.extract_strided_slice %7 {offsets = [8, 0, 0], sizes = [1, 8, 32], strides = [1, 1, 1]} : vector<10x8x32xf32> to vector<1x8x32xf32>
    %169 = vector.shape_cast %168 : vector<1x8x32xf32> to vector<8x32xf32>
    %170 = vector.broadcast %157 : vector<1x32xf32> to vector<8x32xf32>
    %171 = arith.mulf %170, %169 : vector<8x32xf32>
    %172 = arith.addf %154, %171 : vector<8x32xf32>
    %173 = vector.extract_strided_slice %1 {offsets = [9, 0], sizes = [1, 32], strides = [1, 1]} : vector<10x32xf32> to vector<1x32xf32>
    %174 = vector.extract_strided_slice %3 {offsets = [9, 0], sizes = [1, 32], strides = [1, 1]} : vector<10x32xf32> to vector<1x32xf32>
    %175 = vector.extract_strided_slice %6 {offsets = [9, 0], sizes = [1, 32], strides = [1, 1]} : vector<10x32xf32> to vector<1x32xf32>
    %176 = vector.extract_strided_slice %4 {offsets = [9, 0, 0], sizes = [1, 8, 32], strides = [1, 1, 1]} : vector<10x8x32xf32> to vector<1x8x32xf32>
    %177 = vector.shape_cast %176 : vector<1x8x32xf32> to vector<8x32xf32>
    %178 = vector.broadcast %173 : vector<1x32xf32> to vector<8x32xf32>
    %179 = arith.mulf %178, %177 : vector<8x32xf32>
    %180 = arith.addf %162, %179 : vector<8x32xf32>
    %181 = vector.extract_strided_slice %5 {offsets = [9, 0, 0], sizes = [1, 8, 32], strides = [1, 1, 1]} : vector<10x8x32xf32> to vector<1x8x32xf32>
    %182 = vector.shape_cast %181 : vector<1x8x32xf32> to vector<8x32xf32>
    %183 = vector.broadcast %174 : vector<1x32xf32> to vector<8x32xf32>
    %184 = arith.mulf %183, %182 : vector<8x32xf32>
    %185 = arith.addf %167, %184 : vector<8x32xf32>
    %186 = vector.extract_strided_slice %7 {offsets = [9, 0, 0], sizes = [1, 8, 32], strides = [1, 1, 1]} : vector<10x8x32xf32> to vector<1x8x32xf32>
    %187 = vector.shape_cast %186 : vector<1x8x32xf32> to vector<8x32xf32>
    %188 = vector.broadcast %175 : vector<1x32xf32> to vector<8x32xf32>
    %189 = arith.mulf %188, %187 : vector<8x32xf32>
    %190 = arith.addf %172, %189 : vector<8x32xf32>
    %191 = arith.subf %180, %185 : vector<8x32xf32>
    %c0_13 = arith.constant 0 : index
    %c0_14 = arith.constant 0 : index
    %c0_15 = arith.constant 0 : index
    %192 = vector.load %arg6[%c0_13, %c0_14, %c0_15] : memref<1x8x32xf32, #tpu.memory_space<vmem>>, vector<1x8x32xf32>
    %193 = vector.shape_cast %192 : vector<1x8x32xf32> to vector<8x32xf32>
    %194 = vector.shape_cast %191 : vector<8x32xf32> to vector<1x8x32xf32>
    tpu.vector_store %arg6[%c0_13, %c0_14, %c0_15], %194 {strides = array<i32>} : memref<1x8x32xf32, #tpu.memory_space<vmem>>, vector<1x8x32xf32>,
    %195 = arith.subf %190, %180 : vector<8x32xf32>
    %196 = arith.subf %195, %185 : vector<8x32xf32>
    %c0_16 = arith.constant 0 : index
    %c0_17 = arith.constant 0 : index
    %c0_18 = arith.constant 0 : index
    %197 = vector.load %arg7[%c0_16, %c0_17, %c0_18] : memref<1x8x32xf32, #tpu.memory_space<vmem>>, vector<1x8x32xf32>
    %198 = vector.shape_cast %197 : vector<1x8x32xf32> to vector<8x32xf32>
    %199 = vector.shape_cast %196 : vector<8x32xf32> to vector<1x8x32xf32>
    tpu.vector_store %arg7[%c0_16, %c0_17, %c0_18], %199 {strides = array<i32>} : memref<1x8x32xf32, #tpu.memory_space<vmem>>, vector<1x8x32xf32>,
    return
  }
  func.func @transform_0(%arg0: i32, %arg1: i32) -> (i32, i32, i32) {
    %c0_i32 = arith.constant 0 : i32
    %c0_i32_0 = arith.constant 0 : i32
    return %arg0, %c0_i32, %arg1 : i32, i32, i32
  }
  func.func @transform_1(%arg0: i32, %arg1: i32) -> (i32, i32, i32) {
    %c0_i32 = arith.constant 0 : i32
    %c0_i32_0 = arith.constant 0 : i32
    return %arg0, %c0_i32, %arg1 : i32, i32, i32
  }
  func.func @transform_2(%arg0: i32, %arg1: i32) -> (i32, i32, i32) {
    %c0_i32 = arith.constant 0 : i32
    %c0_i32_0 = arith.constant 0 : i32
    %c0_i32_1 = arith.constant 0 : i32
    return %c0_i32, %c0_i32_0, %arg1 : i32, i32, i32
  }
  func.func @transform_3(%arg0: i32, %arg1: i32) -> (i32, i32, i32) {
    %c0_i32 = arith.constant 0 : i32
    %c0_i32_0 = arith.constant 0 : i32
    %c0_i32_1 = arith.constant 0 : i32
    return %c0_i32, %c0_i32_0, %arg1 : i32, i32, i32
  }
  func.func @transform_4(%arg0: i32, %arg1: i32) -> (i32, i32, i32) {
    %c0_i32 = arith.constant 0 : i32
    %c0_i32_0 = arith.constant 0 : i32
    return %arg0, %c0_i32, %arg1 : i32, i32, i32
  }
  func.func @transform_5(%arg0: i32, %arg1: i32) -> (i32, i32, i32) {
    %c0_i32 = arith.constant 0 : i32
    %c0_i32_0 = arith.constant 0 : i32
    return %arg0, %c0_i32, %arg1 : i32, i32, i32
  }
}

</mosaic_0001>

<llo_original>
// kernel: fno_ensemble_rbc1_forward.19
$region0: #{fno_ensemble_rbc1_forward.19}
  #allocation0 [shape = 'u32[]', space=smem, size = 0x4, offset = 0x4, fixed_abs, tag = 'smem constant byte address 0x4 - core index']
  #allocation1 [shape = 'u32[144,128]{1,0:T(1,128)}', space=vmem, size = 0x12000, scoped, tag = 'internal scratch']
  %s0 = inlined_call_operand.vmem [shape: f32[2,5,256], index: 0, kind: input, shape index: {}]
  %s1 = inlined_call_operand.vmem [shape: f32[8,5], index: 1, kind: input, shape index: {}]
  %s2 = inlined_call_operand.vmem [shape: f32[8,1], index: 2, kind: input, shape index: {}]
  %s3 = inlined_call_operand.vmem [shape: f32[2,8,256], index: 3, kind: output, shape index: {}]
  %s4 = sld [smem:[#allocation0]]
  $region45: #{fno_ensemble_rbc1_forward.19} parent=0
    _
  %s6 = ssub.s32 1, %s4
  %s7 = scalar_select 0, %s6, %s4
  loop: start=0, step=1, limit=4
  $region2: #{fno_ensemble_rbc1_forward.19} parent=0 // loop_pre_header
    _
  $region3: #{fno_ensemble_rbc1_forward.19} parent=0 // loop_header
    %s9 = sphi 0, %s13
    %p10 = scmp.ge.s32.totalorder %s9, 4
    %s16 = sphi 0, %s28
    %s17 = sphi 0, %s24
    %s18 = sphi 0, %s16
    %s19 = sphi 0, %s17
    %s20 = sphi 0, %s18
    %s21 = sphi 0, %s19
    %s33 = sphi 0, %s35
    %s36 = sphi 0, %s33
    %s37 = sphi 0, %s36
    %s53 = sphi 0, %s37
    %s57 = sphi 0, %s57
    %s59 = sphi 0, %s57
    %s60 = sphi 0, %s59
    %s74 = sphi 0, %s60
    %s78 = sphi 0, %s78
    %s80 = sphi 0, %s78
    %s81 = sphi 0, %s80
    %s95 = sphi 0, %s81
    %s103 = sphi 0, %s105
    %s106 = sphi 0, %s103
    %s107 = sphi 0, %s106
    %s123 = sphi 0, %s107
  $region4: #{fno_ensemble_rbc1_forward.19} parent=0 // loop_header_branch
    %12 = sbr.rel (%p10) target = $region8
  $region5: #{fno_ensemble_rbc1_forward.19} parent=0 // loop_body
    %s14 = ssub.s32 %s9, 1
    %s15 = ssub.s32 %s9, 2
    %s22 = sadd.s32 1, %s17
    %p23 = scmp.ge.s32.totalorder %s22, 1
    %s24 = scalar_select %p23, 0, %s22
    %s25 = sadd.s32 1, %s16
    %s26 = scalar_select %p23, %s25, %s16
    %p27 = scmp.ge.s32.totalorder %s26, 2
    %s28 = scalar_select %p27, 0, %s26
    %s29 = ssub.s32 %s16, %s28
    %s30 = ssub.s32 %s17, %s24
    %s31 = sor.u32 %s29, %s30
    %p32 = scmp.eq.s32.totalorder %s31, 0
    %s34 = sadd.s32 %s33, 1
    %s35 = scalar_select %p32, %s33, %s34
    %p38 = pneg %p32
    %p39 = scmp.eq.s32.totalorder %s9, 1
    %p40 = por %p38, %p39
    %p41 = scmp.ne.s32.totalorder %s33, %s36
    %p42 = scmp.eq.s32.totalorder %s9, 0
    %p43 = por %p41, %p42
    %p44 = scmp.ne.s32.totalorder %s33, %s36
    %p45 = scmp.eq.s32.totalorder %s14, 1
    %p46 = por %p44, %p45
    %p47 = scmp.ne.s32.totalorder %s36, %s37
    %p48 = scmp.eq.s32.totalorder %s14, 0
    %p49 = por %p47, %p48
    %p50 = scmp.ne.s32.totalorder %s36, %s37
    %p51 = scmp.eq.s32.totalorder %s15, 1
    %p52 = por %p50, %p51
    %p54 = scmp.ne.s32.totalorder %s37, %s53
    %p55 = scmp.eq.s32.totalorder %s15, 0
    %p56 = por %p54, %p55
    %s58 = sadd.s32 %s57, 1
    %p61 = scmp.eq.s32.totalorder %s9, 1
    %p62 = scmp.ne.s32.totalorder %s57, %s59
    %p63 = scmp.eq.s32.totalorder %s9, 0
    %p64 = por %p62, %p63
    %p65 = scmp.ne.s32.totalorder %s57, %s59
    %p66 = scmp.eq.s32.totalorder %s14, 1
    %p67 = por %p65, %p66
    %p68 = scmp.ne.s32.totalorder %s59, %s60
    %p69 = scmp.eq.s32.totalorder %s14, 0
    %p70 = por %p68, %p69
    %p71 = scmp.ne.s32.totalorder %s59, %s60
    %p72 = scmp.eq.s32.totalorder %s15, 1
    %p73 = por %p71, %p72
    %p75 = scmp.ne.s32.totalorder %s60, %s74
    %p76 = scmp.eq.s32.totalorder %s15, 0
    %p77 = por %p75, %p76
    %s79 = sadd.s32 %s78, 1
    %p82 = scmp.eq.s32.totalorder %s9, 1
    %p83 = scmp.ne.s32.totalorder %s78, %s80
    %p84 = scmp.eq.s32.totalorder %s9, 0
    %p85 = por %p83, %p84
    %p86 = scmp.ne.s32.totalorder %s78, %s80
    %p87 = scmp.eq.s32.totalorder %s14, 1
    %p88 = por %p86, %p87
    %p89 = scmp.ne.s32.totalorder %s80, %s81
    %p90 = scmp.eq.s32.totalorder %s14, 0
    %p91 = por %p89, %p90
    %p92 = scmp.ne.s32.totalorder %s80, %s81
    %p93 = scmp.eq.s32.totalorder %s15, 1
    %p94 = por %p92, %p93
    %p96 = scmp.ne.s32.totalorder %s81, %s95
    %p97 = scmp.eq.s32.totalorder %s15, 0
    %p98 = por %p96, %p97
    %s99 = ssub.s32 %s16, %s28
    %s100 = ssub.s32 %s17, %s24
    %s101 = sor.u32 %s99, %s100
    %p102 = scmp.eq.s32.totalorder %s101, 0
    %s104 = sadd.s32 %s103, 1
    %s105 = scalar_select %p102, %s103, %s104
    %p108 = pneg %p102
    %p109 = scmp.eq.s32.totalorder %s9, 1
    %p110 = por %p108, %p109
    %p111 = scmp.ne.s32.totalorder %s103, %s106
    %p112 = scmp.eq.s32.totalorder %s9, 0
    %p113 = por %p111, %p112
    %p114 = scmp.ne.s32.totalorder %s103, %s106
    %p115 = scmp.eq.s32.totalorder %s14, 1
    %p116 = por %p114, %p115
    %p117 = scmp.ne.s32.totalorder %s106, %s107
    %p118 = scmp.eq.s32.totalorder %s14, 0
    %p119 = por %p117, %p118
    %p120 = scmp.ne.s32.totalorder %s106, %s107
    %p121 = scmp.eq.s32.totalorder %s15, 1
    %p122 = por %p120, %p121
    %p124 = scmp.ne.s32.totalorder %s107, %s123
    %p125 = scmp.eq.s32.totalorder %s15, 0
    %p126 = por %p124, %p125
    %p127 = scmp.le.s32.totalorder 1, %s9
    %p128 = scmp.lt.s32.totalorder %s9, 3
    %p129 = pnand %p127, %p128
    %p130 = pneg %p129
    // Predicated region
    $region9: #{fno_ensemble_rbc1_forward.19} parent=5 // pred_check
      _
    $region10: #{fno_ensemble_rbc1_forward.19} parent=5 // pred_check_branch
      %132 = sbr.rel (%p129) target = $region12
    $region11: #{fno_ensemble_rbc1_forward.19} parent=5 // pred_region
      %s133 = ssub.s32 %s9, 1
      // Predicated region
      $region13: #{fno_ensemble_rbc1_forward.19} parent=11 // pred_check
        %p134 = pneg %p70
      $region14: #{fno_ensemble_rbc1_forward.19} parent=11 // pred_check_branch
        %136 = sbr.rel (%p134) target = $region16
      $region15: #{fno_ensemble_rbc1_forward.19} parent=11 // pred_region
        _
      $region16: #{fno_ensemble_rbc1_forward.19} parent=11 // pred_fallthru
        _
      // Predicated region
      $region17: #{fno_ensemble_rbc1_forward.19} parent=11 // pred_check
        %p137 = pneg %p91
      $region18: #{fno_ensemble_rbc1_forward.19} parent=11 // pred_check_branch
        %139 = sbr.rel (%p137) target = $region20
      $region19: #{fno_ensemble_rbc1_forward.19} parent=11 // pred_region
        _
      $region20: #{fno_ensemble_rbc1_forward.19} parent=11 // pred_fallthru
        _
    $region12: #{fno_ensemble_rbc1_forward.19} parent=5 // pred_fallthru
      _
    %p140 = scmp.lt.s32.totalorder %s9, 2
    // Predicated region
    $region21: #{fno_ensemble_rbc1_forward.19} parent=5 // pred_check
      %p141 = pneg %p140
    $region22: #{fno_ensemble_rbc1_forward.19} parent=5 // pred_check_branch
      %143 = sbr.rel (%p141) target = $region24
    $region23: #{fno_ensemble_rbc1_forward.19} parent=5 // pred_region
      // Predicated region
      $region25: #{fno_ensemble_rbc1_forward.19} parent=23 // pred_check
        %p144 = pneg %p43
      $region26: #{fno_ensemble_rbc1_forward.19} parent=23 // pred_check_branch
        %146 = sbr.rel (%p144) target = $region28
      $region27: #{fno_ensemble_rbc1_forward.19} parent=23 // pred_region
        %s147 = smul.u32 2, %s17
        %p148 = scmp.lt.s32.totalorder %s16, 1
        %s149 = scalar_select %p148, %s16, 1
        %p150 = scmp.lt.s32.totalorder %s147, 1
        %s151 = scalar_select %p150, %s147, 1
        %s152 = smul.addr %s149, 2
        %s153 = sadd.s32 %s151, %s152
        %s154 = smul.addr %s153, 8
        %s155 = scalar_lea.vmem %s0, %s154
        %s156 = smul.u32 2, %s17
      $region28: #{fno_ensemble_rbc1_forward.19} parent=23 // pred_fallthru
        _
    $region24: #{fno_ensemble_rbc1_forward.19} parent=5 // pred_fallthru
      _
    %p157 = scmp.le.s32.totalorder 1, %s9
    %p158 = scmp.lt.s32.totalorder %s9, 3
    %p159 = pnand %p157, %p158
    %p160 = pneg %p159
    // Predicated region
    $region29: #{fno_ensemble_rbc1_forward.19} parent=5 // pred_check
      _
    $region30: #{fno_ensemble_rbc1_forward.19} parent=5 // pred_check_branch
      %162 = sbr.rel (%p159) target = $region32
    $region31: #{fno_ensemble_rbc1_forward.19} parent=5 // pred_region
      %s163 = ssub.s32 %s9, 1
      %s164 = smul.u32 2, %s19
      %p165 = scmp.lt.s32.totalorder %s18, 1
      %s166 = scalar_select %p165, %s18, 1
      %p167 = scmp.lt.s32.totalorder %s164, 1
      %s168 = scalar_select %p167, %s164, 1
      %s169 = smul.addr %s166, 2
      %s170 = sadd.s32 %s168, %s169
      %s171 = smul.addr %s170, 8
      %s172 = scalar_lea.vmem %s0, %s171
      %p173 = pneg %p49
      %p174 = pneg %p46
      %p175 = pneg %p70
      %p176 = pneg %p67
      %p177 = pneg %p91
      %p178 = pneg %p88
      %p179 = pneg %p119
      %p180 = pneg %p116
      %s181 = smul.u32 2, %s19
      %p182 = scmp.lt.s32.totalorder %s18, 1
      %s183 = scalar_select %p182, %s18, 1
      %p184 = scmp.lt.s32.totalorder %s181, 1
      %s185 = scalar_select %p184, %s181, 1
      %s186 = smul.addr %s183, 2
      %s187 = sadd.s32 %s185, %s186
      %s188 = smul.addr %s187, 8
      %s189 = scalar_lea.vmem %s3, %s188
      %s190 = smul.u32 2, %s19
      %p191 = scmp.lt.s32.totalorder %s18, 1
      %s192 = scalar_select %p191, %s18, 1
      %p193 = scmp.lt.s32.totalorder %s190, 1
      %s194 = scalar_select %p193, %s190, 1
      %s195 = smul.addr %s192, 2
      %s196 = sadd.s32 %s194, %s195
      %s197 = smul.addr %s196, 8
      %s198 = scalar_lea.vmem %s0, %s197
      %s199 = smul.u32 2, %s19
      %s200 = smul.u32 2, %s19
      %p201 = scmp.lt.s32.totalorder %s18, 1
      %s202 = scalar_select %p201, %s18, 1
      %p203 = scmp.lt.s32.totalorder %s200, 1
      %s204 = scalar_select %p203, %s200, 1
      %s205 = smul.addr %s202, 2
      %s206 = sadd.s32 %s204, %s205
      %s207 = smul.addr %s206, 8
      %s208 = scalar_lea.vmem %s3, %s207
      %s209 = smul.u32 2, %s19
      %v210 = vld [vmem:[%s1] sm:$0xff]
      %v211 = vld [vmem:[%s198] sm:$0x1f]
      %v212 = vld [vmem:[%s198 + $0x8] sm:$0x1f]
      %v213 = vld [vmem:[%s2] sm:$0xff]
      %215 = vset.pattern.permute.xlu0 0
      %216 = vperm.xlu0 %215, %v213
      %v217 = vpop.permute.xlu0 %216
      %vm219 = vcmask 39936
      %v221 = vsel %vm219, %v210, 0
      %vm223 = vcmask 1044480
      %v225 = vsel %vm223, %v211, 0
      %v228 = vsel %vm223, %v212, 0
      %230 = vmatprep.subr.mxu0 0.0
      %231 = vmatpush1.msra.mxu0 0.0
      %232 = vmatprep.subr.mxu0 0.0
      %233 = vmatpush1.msra.mxu0 0.0
      %234 = vmatprep.subr.mxu0 0.0
      %235 = vmatpush1.msra.mxu0 0.0
      %236 = vmatprep.subr.mxu0 0.0
      %237 = vmatpush1.msra.mxu0 0.0
      %238 = vmatprep.subr.mxu0 0.0
      %239 = vmatpush1.msra.mxu0 0.0
      %240 = vmatprep.subr.mxu0 0.0
      %241 = vmatpush1.msra.mxu0 0.0
      %242 = vmatprep.subr.mxu0 0.0
      %243 = vmatpush1.msra.mxu0 0.0
      %244 = vmatprep.subr.mxu0 0.0
      %245 = vmatpush1.msra.mxu0 0.0
      %246 = vmatprep.subr.mxu0 0.0
      %247 = vmatpush1.msra.mxu0 0.0
      %248 = vmatprep.subr.mxu0 0.0
      %249 = vmatpush1.msra.mxu0 0.0
      %250 = vmatprep.subr.mxu0 0.0
      %251 = vmatpush1.msra.mxu0 0.0
      %252 = vmatprep.subr.mxu0 0.0
      %253 = vmatpush1.msra.mxu0 0.0
      %254 = vmatprep.subr.mxu0 0.0
      %255 = vmatpush1.msra.mxu0 0.0
      %256 = vmatprep.subr.mxu0 0.0
      %257 = vmatpush1.msra.mxu0 0.0
      %258 = vmatprep.subr.mxu0 0.0
      %259 = vmatpush1.msra.mxu0 0.0
      %260 = vmatprep.subr.mxu0 %v228
      %261 = vmatpush1.msra.mxu0 %v225
      %262 = vmatprep.subr.mxu0 0.0
      %263 = vmatpush2.msra.mxu0 0.0
      %264 = vmatprep.subr.mxu0 0.0
      %265 = vmatpush2.msra.mxu0 0.0
      %266 = vmatprep.subr.mxu0 0.0
      %267 = vmatpush2.msra.mxu0 0.0
      %268 = vmatprep.subr.mxu0 0.0
      %269 = vmatpush2.msra.mxu0 0.0
      %270 = vmatprep.subr.mxu0 0.0
      %271 = vmatpush2.msra.mxu0 0.0
      %272 = vmatprep.subr.mxu0 0.0
      %273 = vmatpush2.msra.mxu0 0.0
      %274 = vmatprep.subr.mxu0 0.0
      %275 = vmatpush2.msra.mxu0 0.0
      %276 = vmatprep.subr.mxu0 0.0
      %277 = vmatpush2.msra.mxu0 0.0
      %278 = vmatprep.subr.mxu0 0.0
      %279 = vmatpush2.msra.mxu0 0.0
      %280 = vmatprep.subr.mxu0 0.0
      %281 = vmatpush2.msra.mxu0 0.0
      %282 = vmatprep.subr.mxu0 0.0
      %283 = vmatpush2.msra.mxu0 0.0
      %284 = vmatprep.subr.mxu0 0.0
      %285 = vmatpush2.msra.mxu0 0.0
      %286 = vmatprep.subr.mxu0 0.0
      %287 = vmatpush2.msra.mxu0 0.0
      %288 = vmatprep.subr.mxu0 0.0
      %289 = vmatpush2.msra.mxu0 0.0
      %290 = vmatprep.subr.mxu0 0.0
      %291 = vmatpush2.msra.mxu0 0.0
      %292 = vmatprep.subr.mxu0 0.0
      %293 = vmatpush2.msra.mxu0 0.0
      %294 = vmatprep.mubr.f32.mxu0 0.0
      %295 = vmatmul.mubr.f32.gmra.mxu0 %v221
      %v296 = vpop.f32.mrf.mxu0
      %v297 = vadd.f32 %v217, %v296
      %v298 = vpop.f32.mrf.mxu0
      %v299 = vadd.f32 %v217, %v298
      %300 = vdwg.mxu0
      %301 = vst [vmem:[%s208] sm:$0xff] %v297
      %302 = vst [vmem:[%s208 + $0x8] sm:$0xff] %v299
      %s303 = smul.u32 2, %s19
      %p304 = scmp.lt.s32.totalorder %s18, 1
      %s305 = scalar_select %p304, %s18, 1
      %p306 = scmp.lt.s32.totalorder %s303, 1
      %s307 = scalar_select %p306, %s303, 1
      %s308 = smul.addr %s305, 2
      %s309 = sadd.s32 %s307, %s308
      %s310 = smul.addr %s309, 8
      %s311 = scalar_lea.vmem %s3, %s310
      // Predicated region
      $region33: #{fno_ensemble_rbc1_forward.19} parent=31 // pred_check
        %p312 = pneg %p116
      $region34: #{fno_ensemble_rbc1_forward.19} parent=31 // pred_check_branch
        %314 = sbr.rel (%p312) target = $region36
      $region35: #{fno_ensemble_rbc1_forward.19} parent=31 // pred_region
        %s315 = smul.u32 2, %s19
      $region36: #{fno_ensemble_rbc1_forward.19} parent=31 // pred_fallthru
        _
    $region32: #{fno_ensemble_rbc1_forward.19} parent=5 // pred_fallthru
      _
    %p316 = scmp.le.s32.totalorder 2, %s9
    // Predicated region
    $region37: #{fno_ensemble_rbc1_forward.19} parent=5 // pred_check
      %p317 = pneg %p316
    $region38: #{fno_ensemble_rbc1_forward.19} parent=5 // pred_check_branch
      %319 = sbr.rel (%p317) target = $region40
    $region39: #{fno_ensemble_rbc1_forward.19} parent=5 // pred_region
      %s320 = ssub.s32 %s9, 2
      // Predicated region
      $region41: #{fno_ensemble_rbc1_forward.19} parent=39 // pred_check
        %p321 = pneg %p122
      $region42: #{fno_ensemble_rbc1_forward.19} parent=39 // pred_check_branch
        %323 = sbr.rel (%p321) target = $region44
      $region43: #{fno_ensemble_rbc1_forward.19} parent=39 // pred_region
        %s324 = smul.u32 2, %s21
        %p325 = scmp.lt.s32.totalorder %s20, 1
        %s326 = scalar_select %p325, %s20, 1
        %p327 = scmp.lt.s32.totalorder %s324, 1
        %s328 = scalar_select %p327, %s324, 1
        %s329 = smul.addr %s326, 2
        %s330 = sadd.s32 %s328, %s329
        %s331 = smul.addr %s330, 8
        %s332 = scalar_lea.vmem %s3, %s331
      $region44: #{fno_ensemble_rbc1_forward.19} parent=39 // pred_fallthru
        _
    $region40: #{fno_ensemble_rbc1_forward.19} parent=5 // pred_fallthru
      _
  $region6: #{fno_ensemble_rbc1_forward.19} parent=0 // loop_footer
    %s13 = sadd.s32 1, %s9
  $region7: #{fno_ensemble_rbc1_forward.19} parent=0 // loop_footer_branch
    %8 = sbr.rel target = $region3
  $region8: #{fno_ensemble_rbc1_forward.19} parent=0 // loop_exit
    _

// kernel: fno_ensemble_rbc1_forward.20
$region0: #{fno_ensemble_rbc1_forward.20}
  #allocation0 [shape = 'u32[]', space=smem, size = 0x4, offset = 0x4, fixed_abs, tag = 'smem constant byte address 0x4 - core index']
  #allocation1 [shape = 'u32[144,128]{1,0:T(1,128)}', space=vmem, size = 0x12000, scoped, tag = 'internal scratch']
  %s0 = inlined_call_operand.vmem [shape: f32[2,8,32], index: 0, kind: input, shape index: {}]
  %s1 = inlined_call_operand.vmem [shape: f32[2,8,32], index: 1, kind: input, shape index: {}]
  %s2 = inlined_call_operand.vmem [shape: f32[8,8,32], index: 2, kind: input, shape index: {}]
  %s3 = inlined_call_operand.vmem [shape: f32[8,8,32], index: 3, kind: input, shape index: {}]
  %s4 = inlined_call_operand.vmem [shape: f32[2,8,32], index: 4, kind: output, shape index: {0}]
  %s5 = inlined_call_operand.vmem [shape: f32[2,8,32], index: 5, kind: output, shape index: {1}]
  %6 = xla_tuple %s4, %s5
  %s7 = sld [smem:[#allocation0]]
  $region57: #{fno_ensemble_rbc1_forward.20} parent=0
    _
  %s9 = ssub.s32 1, %s7
  %s10 = scalar_select 0, %s9, %s7
  loop: start=0, step=1, limit=4
  $region2: #{fno_ensemble_rbc1_forward.20} parent=0 // loop_pre_header
    _
  $region3: #{fno_ensemble_rbc1_forward.20} parent=0 // loop_header
    %s12 = sphi 0, %s16
    %p13 = scmp.ge.s32.totalorder %s12, 4
    %s19 = sphi 0, %s31
    %s20 = sphi 0, %s27
    %s21 = sphi 0, %s19
    %s22 = sphi 0, %s20
    %s23 = sphi 0, %s21
    %s24 = sphi 0, %s22
    %s36 = sphi 0, %s38
    %s39 = sphi 0, %s36
    %s40 = sphi 0, %s39
    %s56 = sphi 0, %s40
    %s64 = sphi 0, %s66
    %s67 = sphi 0, %s64
    %s68 = sphi 0, %s67
    %s84 = sphi 0, %s68
    %s90 = sphi 0, %s92
    %s93 = sphi 0, %s90
    %s94 = sphi 0, %s93
    %s110 = sphi 0, %s94
    %s116 = sphi 0, %s118
    %s119 = sphi 0, %s116
    %s120 = sphi 0, %s119
    %s136 = sphi 0, %s120
    %s144 = sphi 0, %s146
    %s147 = sphi 0, %s144
    %s148 = sphi 0, %s147
    %s164 = sphi 0, %s148
    %s172 = sphi 0, %s174
    %s175 = sphi 0, %s172
    %s176 = sphi 0, %s175
    %s192 = sphi 0, %s176
  $region4: #{fno_ensemble_rbc1_forward.20} parent=0 // loop_header_branch
    %15 = sbr.rel (%p13) target = $region8
  $region5: #{fno_ensemble_rbc1_forward.20} parent=0 // loop_body
    %s17 = ssub.s32 %s12, 1
    %s18 = ssub.s32 %s12, 2
    %s25 = sadd.s32 1, %s20
    %p26 = scmp.ge.s32.totalorder %s25, 1
    %s27 = scalar_select %p26, 0, %s25
    %s28 = sadd.s32 1, %s19
    %s29 = scalar_select %p26, %s28, %s19
    %p30 = scmp.ge.s32.totalorder %s29, 2
    %s31 = scalar_select %p30, 0, %s29
    %s32 = ssub.s32 %s19, %s31
    %s33 = ssub.s32 %s20, %s27
    %s34 = sor.u32 %s32, %s33
    %p35 = scmp.eq.s32.totalorder %s34, 0
    %s37 = sadd.s32 %s36, 1
    %s38 = scalar_select %p35, %s36, %s37
    %p41 = pneg %p35
    %p42 = scmp.eq.s32.totalorder %s12, 1
    %p43 = por %p41, %p42
    %p44 = scmp.ne.s32.totalorder %s36, %s39
    %p45 = scmp.eq.s32.totalorder %s12, 0
    %p46 = por %p44, %p45
    %p47 = scmp.ne.s32.totalorder %s36, %s39
    %p48 = scmp.eq.s32.totalorder %s17, 1
    %p49 = por %p47, %p48
    %p50 = scmp.ne.s32.totalorder %s39, %s40
    %p51 = scmp.eq.s32.totalorder %s17, 0
    %p52 = por %p50, %p51
    %p53 = scmp.ne.s32.totalorder %s39, %s40
    %p54 = scmp.eq.s32.totalorder %s18, 1
    %p55 = por %p53, %p54
    %p57 = scmp.ne.s32.totalorder %s40, %s56
    %p58 = scmp.eq.s32.totalorder %s18, 0
    %p59 = por %p57, %p58
    %s60 = ssub.s32 %s19, %s31
    %s61 = ssub.s32 %s20, %s27
    %s62 = sor.u32 %s60, %s61
    %p63 = scmp.eq.s32.totalorder %s62, 0
    %s65 = sadd.s32 %s64, 1
    %s66 = scalar_select %p63, %s64, %s65
    %p69 = pneg %p63
    %p70 = scmp.eq.s32.totalorder %s12, 1
    %p71 = por %p69, %p70
    %p72 = scmp.ne.s32.totalorder %s64, %s67
    %p73 = scmp.eq.s32.totalorder %s12, 0
    %p74 = por %p72, %p73
    %p75 = scmp.ne.s32.totalorder %s64, %s67
    %p76 = scmp.eq.s32.totalorder %s17, 1
    %p77 = por %p75, %p76
    %p78 = scmp.ne.s32.totalorder %s67, %s68
    %p79 = scmp.eq.s32.totalorder %s17, 0
    %p80 = por %p78, %p79
    %p81 = scmp.ne.s32.totalorder %s67, %s68
    %p82 = scmp.eq.s32.totalorder %s18, 1
    %p83 = por %p81, %p82
    %p85 = scmp.ne.s32.totalorder %s68, %s84
    %p86 = scmp.eq.s32.totalorder %s18, 0
    %p87 = por %p85, %p86
    %s88 = ssub.s32 %s20, %s27
    %p89 = scmp.eq.s32.totalorder %s88, 0
    %s91 = sadd.s32 %s90, 1
    %s92 = scalar_select %p89, %s90, %s91
    %p95 = pneg %p89
    %p96 = scmp.eq.s32.totalorder %s12, 1
    %p97 = por %p95, %p96
    %p98 = scmp.ne.s32.totalorder %s90, %s93
    %p99 = scmp.eq.s32.totalorder %s12, 0
    %p100 = por %p98, %p99
    %p101 = scmp.ne.s32.totalorder %s90, %s93
    %p102 = scmp.eq.s32.totalorder %s17, 1
    %p103 = por %p101, %p102
    %p104 = scmp.ne.s32.totalorder %s93, %s94
    %p105 = scmp.eq.s32.totalorder %s17, 0
    %p106 = por %p104, %p105
    %p107 = scmp.ne.s32.totalorder %s93, %s94
    %p108 = scmp.eq.s32.totalorder %s18, 1
    %p109 = por %p107, %p108
    %p111 = scmp.ne.s32.totalorder %s94, %s110
    %p112 = scmp.eq.s32.totalorder %s18, 0
    %p113 = por %p111, %p112
    %s114 = ssub.s32 %s20, %s27
    %p115 = scmp.eq.s32.totalorder %s114, 0
    %s117 = sadd.s32 %s116, 1
    %s118 = scalar_select %p115, %s116, %s117
    %p121 = pneg %p115
    %p122 = scmp.eq.s32.totalorder %s12, 1
    %p123 = por %p121, %p122
    %p124 = scmp.ne.s32.totalorder %s116, %s119
    %p125 = scmp.eq.s32.totalorder %s12, 0
    %p126 = por %p124, %p125
    %p127 = scmp.ne.s32.totalorder %s116, %s119
    %p128 = scmp.eq.s32.totalorder %s17, 1
    %p129 = por %p127, %p128
    %p130 = scmp.ne.s32.totalorder %s119, %s120
    %p131 = scmp.eq.s32.totalorder %s17, 0
    %p132 = por %p130, %p131
    %p133 = scmp.ne.s32.totalorder %s119, %s120
    %p134 = scmp.eq.s32.totalorder %s18, 1
    %p135 = por %p133, %p134
    %p137 = scmp.ne.s32.totalorder %s120, %s136
    %p138 = scmp.eq.s32.totalorder %s18, 0
    %p139 = por %p137, %p138
    %s140 = ssub.s32 %s19, %s31
    %s141 = ssub.s32 %s20, %s27
    %s142 = sor.u32 %s140, %s141
    %p143 = scmp.eq.s32.totalorder %s142, 0
    %s145 = sadd.s32 %s144, 1
    %s146 = scalar_select %p143, %s144, %s145
    %p149 = pneg %p143
    %p150 = scmp.eq.s32.totalorder %s12, 1
    %p151 = por %p149, %p150
    %p152 = scmp.ne.s32.totalorder %s144, %s147
    %p153 = scmp.eq.s32.totalorder %s12, 0
    %p154 = por %p152, %p153
    %p155 = scmp.ne.s32.totalorder %s144, %s147
    %p156 = scmp.eq.s32.totalorder %s17, 1
    %p157 = por %p155, %p156
    %p158 = scmp.ne.s32.totalorder %s147, %s148
    %p159 = scmp.eq.s32.totalorder %s17, 0
    %p160 = por %p158, %p159
    %p161 = scmp.ne.s32.totalorder %s147, %s148
    %p162 = scmp.eq.s32.totalorder %s18, 1
    %p163 = por %p161, %p162
    %p165 = scmp.ne.s32.totalorder %s148, %s164
    %p166 = scmp.eq.s32.totalorder %s18, 0
    %p167 = por %p165, %p166
    %s168 = ssub.s32 %s19, %s31
    %s169 = ssub.s32 %s20, %s27
    %s170 = sor.u32 %s168, %s169
    %p171 = scmp.eq.s32.totalorder %s170, 0
    %s173 = sadd.s32 %s172, 1
    %s174 = scalar_select %p171, %s172, %s173
    %p177 = pneg %p171
    %p178 = scmp.eq.s32.totalorder %s12, 1
    %p179 = por %p177, %p178
    %p180 = scmp.ne.s32.totalorder %s172, %s175
    %p181 = scmp.eq.s32.totalorder %s12, 0
    %p182 = por %p180, %p181
    %p183 = scmp.ne.s32.totalorder %s172, %s175
    %p184 = scmp.eq.s32.totalorder %s17, 1
    %p185 = por %p183, %p184
    %p186 = scmp.ne.s32.totalorder %s175, %s176
    %p187 = scmp.eq.s32.totalorder %s17, 0
    %p188 = por %p186, %p187
    %p189 = scmp.ne.s32.totalorder %s175, %s176
    %p190 = scmp.eq.s32.totalorder %s18, 1
    %p191 = por %p189, %p190
    %p193 = scmp.ne.s32.totalorder %s176, %s192
    %p194 = scmp.eq.s32.totalorder %s18, 0
    %p195 = por %p193, %p194
    %p196 = scmp.le.s32.totalorder 1, %s12
    %p197 = scmp.lt.s32.totalorder %s12, 3
    %p198 = pnand %p196, %p197
    %p199 = pneg %p198
    // Predicated region
    $region9: #{fno_ensemble_rbc1_forward.20} parent=5 // pred_check
      _
    $region10: #{fno_ensemble_rbc1_forward.20} parent=5 // pred_check_branch
      %201 = sbr.rel (%p198) target = $region12
    $region11: #{fno_ensemble_rbc1_forward.20} parent=5 // pred_region
      %s202 = ssub.s32 %s12, 1
      // Predicated region
      $region13: #{fno_ensemble_rbc1_forward.20} parent=11 // pred_check
        %p203 = pneg %p106
      $region14: #{fno_ensemble_rbc1_forward.20} parent=11 // pred_check_branch
        %205 = sbr.rel (%p203) target = $region16
      $region15: #{fno_ensemble_rbc1_forward.20} parent=11 // pred_region
        %p206 = scmp.lt.s32.totalorder %s22, 0
        %s207 = scalar_select %p206, %s22, 0
        %s208 = smul.addr %s207, 8
        %s209 = scalar_lea.vmem %s2, %s208
      $region16: #{fno_ensemble_rbc1_forward.20} parent=11 // pred_fallthru
        _
      // Predicated region
      $region17: #{fno_ensemble_rbc1_forward.20} parent=11 // pred_check
        %p210 = pneg %p132
      $region18: #{fno_ensemble_rbc1_forward.20} parent=11 // pred_check_branch
        %212 = sbr.rel (%p210) target = $region20
      $region19: #{fno_ensemble_rbc1_forward.20} parent=11 // pred_region
        %p213 = scmp.lt.s32.totalorder %s22, 0
        %s214 = scalar_select %p213, %s22, 0
        %s215 = smul.addr %s214, 8
        %s216 = scalar_lea.vmem %s3, %s215
      $region20: #{fno_ensemble_rbc1_forward.20} parent=11 // pred_fallthru
        _
    $region12: #{fno_ensemble_rbc1_forward.20} parent=5 // pred_fallthru
      _
    %p217 = scmp.lt.s32.totalorder %s12, 2
    // Predicated region
    $region21: #{fno_ensemble_rbc1_forward.20} parent=5 // pred_check
      %p218 = pneg %p217
    $region22: #{fno_ensemble_rbc1_forward.20} parent=5 // pred_check_branch
      %220 = sbr.rel (%p218) target = $region24
    $region23: #{fno_ensemble_rbc1_forward.20} parent=5 // pred_region
      // Predicated region
      $region25: #{fno_ensemble_rbc1_forward.20} parent=23 // pred_check
        %p221 = pneg %p46
      $region26: #{fno_ensemble_rbc1_forward.20} parent=23 // pred_check_branch
        %223 = sbr.rel (%p221) target = $region28
      $region27: #{fno_ensemble_rbc1_forward.20} parent=23 // pred_region
        %p224 = scmp.lt.s32.totalorder %s19, 1
        %s225 = scalar_select %p224, %s19, 1
        %p226 = scmp.lt.s32.totalorder %s20, 0
        %s227 = scalar_select %p226, %s20, 0
        %s228 = sadd.s32 %s227, %s225
        %s229 = smul.addr %s228, 8
        %s230 = scalar_lea.vmem %s0, %s229
      $region28: #{fno_ensemble_rbc1_forward.20} parent=23 // pred_fallthru
        _
      // Predicated region
      $region29: #{fno_ensemble_rbc1_forward.20} parent=23 // pred_check
        %p231 = pneg %p74
      $region30: #{fno_ensemble_rbc1_forward.20} parent=23 // pred_check_branch
        %233 = sbr.rel (%p231) target = $region32
      $region31: #{fno_ensemble_rbc1_forward.20} parent=23 // pred_region
        %p234 = scmp.lt.s32.totalorder %s19, 1
        %s235 = scalar_select %p234, %s19, 1
        %p236 = scmp.lt.s32.totalorder %s20, 0
        %s237 = scalar_select %p236, %s20, 0
        %s238 = sadd.s32 %s237, %s235
        %s239 = smul.addr %s238, 8
        %s240 = scalar_lea.vmem %s1, %s239
      $region32: #{fno_ensemble_rbc1_forward.20} parent=23 // pred_fallthru
        _
    $region24: #{fno_ensemble_rbc1_forward.20} parent=5 // pred_fallthru
      _
    %p241 = scmp.le.s32.totalorder 1, %s12
    %p242 = scmp.lt.s32.totalorder %s12, 3
    %p243 = pnand %p241, %p242
    %p244 = pneg %p243
    // Predicated region
    $region33: #{fno_ensemble_rbc1_forward.20} parent=5 // pred_check
      _
    $region34: #{fno_ensemble_rbc1_forward.20} parent=5 // pred_check_branch
      %246 = sbr.rel (%p243) target = $region36
    $region35: #{fno_ensemble_rbc1_forward.20} parent=5 // pred_region
      %s247 = ssub.s32 %s12, 1
      %p248 = scmp.lt.s32.totalorder %s21, 1
      %s249 = scalar_select %p248, %s21, 1
      %p250 = scmp.lt.s32.totalorder %s22, 0
      %s251 = scalar_select %p250, %s22, 0
      %s252 = sadd.s32 %s251, %s249
      %s253 = smul.addr %s252, 8
      %s254 = scalar_lea.vmem %s0, %s253
      %p255 = pneg %p52
      %p256 = pneg %p49
      %p257 = scmp.lt.s32.totalorder %s21, 1
      %s258 = scalar_select %p257, %s21, 1
      %p259 = scmp.lt.s32.totalorder %s22, 0
      %s260 = scalar_select %p259, %s22, 0
      %s261 = sadd.s32 %s260, %s258
      %s262 = smul.addr %s261, 8
      %s263 = scalar_lea.vmem %s1, %s262
      %p264 = pneg %p80
      %p265 = pneg %p77
      %p266 = scmp.lt.s32.totalorder %s22, 0
      %s267 = scalar_select %p266, %s22, 0
      %s268 = smul.addr %s267, 8
      %s269 = scalar_lea.vmem %s2, %s268
      %p270 = pneg %p106
      %p271 = pneg %p103
      %p272 = scmp.lt.s32.totalorder %s22, 0
      %s273 = scalar_select %p272, %s22, 0
      %s274 = smul.addr %s273, 8
      %s275 = scalar_lea.vmem %s3, %s274
      %p276 = pneg %p132
      %p277 = pneg %p129
      %p278 = pneg %p160
      %p279 = pneg %p157
      %p280 = scmp.lt.s32.totalorder %s21, 1
      %s281 = scalar_select %p280, %s21, 1
      %p282 = scmp.lt.s32.totalorder %s22, 0
      %s283 = scalar_select %p282, %s22, 0
      %s284 = sadd.s32 %s283, %s281
      %s285 = smul.addr %s284, 8
      %s286 = scalar_lea.vmem %s4, %s285
      %p287 = pneg %p188
      %p288 = pneg %p185
      %p289 = scmp.lt.s32.totalorder %s21, 1
      %s290 = scalar_select %p289, %s21, 1
      %p291 = scmp.lt.s32.totalorder %s22, 0
      %s292 = scalar_select %p291, %s22, 0
      %s293 = sadd.s32 %s292, %s290
      %s294 = smul.addr %s293, 8
      %s295 = scalar_lea.vmem %s5, %s294
      %p296 = scmp.lt.s32.totalorder %s21, 1
      %s297 = scalar_select %p296, %s21, 1
      %p298 = scmp.lt.s32.totalorder %s22, 0
      %s299 = scalar_select %p298, %s22, 0
      %s300 = sadd.s32 %s299, %s297
      %s301 = smul.addr %s300, 8
      %s302 = scalar_lea.vmem %s0, %s301
      %p303 = scmp.lt.s32.totalorder %s21, 1
      %s304 = scalar_select %p303, %s21, 1
      %p305 = scmp.lt.s32.totalorder %s22, 0
      %s306 = scalar_select %p305, %s22, 0
      %s307 = sadd.s32 %s306, %s304
      %s308 = smul.addr %s307, 8
      %s309 = scalar_lea.vmem %s1, %s308
      %p310 = scmp.lt.s32.totalorder %s22, 0
      %s311 = scalar_select %p310, %s22, 0
      %s312 = smul.addr %s311, 8
      %s313 = scalar_lea.vmem %s2, %s312
      %p314 = scmp.lt.s32.totalorder %s22, 0
      %s315 = scalar_select %p314, %s22, 0
      %s316 = smul.addr %s315, 8
      %s317 = scalar_lea.vmem %s3, %s316
      %p318 = scmp.lt.s32.totalorder %s21, 1
      %s319 = scalar_select %p318, %s21, 1
      %p320 = scmp.lt.s32.totalorder %s22, 0
      %s321 = scalar_select %p320, %s22, 0
      %s322 = sadd.s32 %s321, %s319
      %s323 = smul.addr %s322, 8
      %s324 = scalar_lea.vmem %s4, %s323
      %p325 = scmp.lt.s32.totalorder %s21, 1
      %s326 = scalar_select %p325, %s21, 1
      %p327 = scmp.lt.s32.totalorder %s22, 0
      %s328 = scalar_select %p327, %s22, 0
      %s329 = sadd.s32 %s328, %s326
      %s330 = smul.addr %s329, 8
      %s331 = scalar_lea.vmem %s5, %s330
      %v332 = vld [vmem:[%s302] sm:$0xff]
      %v333 = vld [vmem:[%s309] sm:$0xff]
      %v334 = vld [vmem:[%s313] sm:$0xff]
      %v335 = vld [vmem:[%s313 + $0x8] sm:$0xff]
      %v336 = vld [vmem:[%s313 + $0x10] sm:$0xff]
      %v337 = vld [vmem:[%s313 + $0x18] sm:$0xff]
      %v338 = vld [vmem:[%s313 + $0x20] sm:$0xff]
      %v339 = vld [vmem:[%s313 + $0x28] sm:$0xff]
      %v340 = vld [vmem:[%s313 + $0x30] sm:$0xff]
      %v341 = vld [vmem:[%s313 + $0x38] sm:$0xff]
      %v342 = vld [vmem:[%s317] sm:$0xff]
      %v343 = vld [vmem:[%s317 + $0x8] sm:$0xff]
      %v344 = vld [vmem:[%s317 + $0x10] sm:$0xff]
      %v345 = vld [vmem:[%s317 + $0x18] sm:$0xff]
      %v346 = vld [vmem:[%s317 + $0x20] sm:$0xff]
      %v347 = vld [vmem:[%s317 + $0x28] sm:$0xff]
      %v348 = vld [vmem:[%s317 + $0x30] sm:$0xff]
      %v349 = vld [vmem:[%s317 + $0x38] sm:$0xff]
      %v350 = vadd.f32 %v332, %v333
      %v351 = vadd.f32 %v334, %v342
      %v352 = vadd.f32 %v335, %v343
      %v353 = vadd.f32 %v336, %v344
      %v354 = vadd.f32 %v337, %v345
      %v355 = vadd.f32 %v338, %v346
      %v356 = vadd.f32 %v339, %v347
      %v357 = vadd.f32 %v340, %v348
      %v358 = vadd.f32 %v341, %v349
      %v359 = vlaneseq
      %v360 = vshrl.u32 %v359, 7
      %v361 = vsub.s32 0, %v360
      %v362 = vrot.slane %v332, %v361
      %v363 = vmul.f32 %v362, %v334
      %v364 = vadd.f32 %v363, 0.0
      %v365 = vlaneseq
      %v366 = vshrl.u32 %v365, 7
      %v367 = vsub.s32 0, %v366
      %v368 = vrot.slane %v333, %v367
      %v369 = vmul.f32 %v368, %v342
      %v370 = vadd.f32 %v369, 0.0
      %v371 = vlaneseq
      %v372 = vshrl.u32 %v371, 7
      %v373 = vsub.s32 0, %v372
      %v374 = vrot.slane %v350, %v373
      %v375 = vmul.f32 %v374, %v351
      %v376 = vadd.f32 %v375, 0.0
      %v377 = vlaneseq
      %v378 = vshrl.u32 %v377, 7
      %v379 = vsub.s32 1, %v378
      %v380 = vrot.slane %v332, %v379
      %v381 = vmul.f32 %v380, %v335
      %v382 = vadd.f32 %v364, %v381
      %v383 = vlaneseq
      %v384 = vshrl.u32 %v383, 7
      %v385 = vsub.s32 1, %v384
      %v386 = vrot.slane %v333, %v385
      %v387 = vmul.f32 %v386, %v343
      %v388 = vadd.f32 %v370, %v387
      %v389 = vlaneseq
      %v390 = vshrl.u32 %v389, 7
      %v391 = vsub.s32 1, %v390
      %v392 = vrot.slane %v350, %v391
      %v393 = vmul.f32 %v392, %v352
      %v394 = vadd.f32 %v376, %v393
      %v395 = vlaneseq
      %v396 = vshrl.u32 %v395, 7
      %v397 = vsub.s32 2, %v396
      %v398 = vrot.slane %v332, %v397
      %v399 = vmul.f32 %v398, %v336
      %v400 = vadd.f32 %v382, %v399
      %v401 = vlaneseq
      %v402 = vshrl.u32 %v401, 7
      %v403 = vsub.s32 2, %v402
      %v404 = vrot.slane %v333, %v403
      %v405 = vmul.f32 %v404, %v344
      %v406 = vadd.f32 %v388, %v405
      %v407 = vlaneseq
      %v408 = vshrl.u32 %v407, 7
      %v409 = vsub.s32 2, %v408
      %v410 = vrot.slane %v350, %v409
      %v411 = vmul.f32 %v410, %v353
      %v412 = vadd.f32 %v394, %v411
      %v413 = vlaneseq
      %v414 = vshrl.u32 %v413, 7
      %v415 = vsub.s32 3, %v414
      %v416 = vrot.slane %v332, %v415
      %v417 = vmul.f32 %v416, %v337
      %v418 = vadd.f32 %v400, %v417
      %v419 = vlaneseq
      %v420 = vshrl.u32 %v419, 7
      %v421 = vsub.s32 3, %v420
      %v422 = vrot.slane %v333, %v421
      %v423 = vmul.f32 %v422, %v345
      %v424 = vadd.f32 %v406, %v423
      %v425 = vlaneseq
      %v426 = vshrl.u32 %v425, 7
      %v427 = vsub.s32 3, %v426
      %v428 = vrot.slane %v350, %v427
      %v429 = vmul.f32 %v428, %v354
      %v430 = vadd.f32 %v412, %v429
      %v431 = vlaneseq
      %v432 = vshrl.u32 %v431, 7
      %v433 = vsub.s32 4, %v432
      %v434 = vrot.slane %v332, %v433
      %v435 = vmul.f32 %v434, %v338
      %v436 = vadd.f32 %v418, %v435
      %v437 = vlaneseq
      %v438 = vshrl.u32 %v437, 7
      %v439 = vsub.s32 4, %v438
      %v440 = vrot.slane %v333, %v439
      %v441 = vmul.f32 %v440, %v346
      %v442 = vadd.f32 %v424, %v441
      %v443 = vlaneseq
      %v444 = vshrl.u32 %v443, 7
      %v445 = vsub.s32 4, %v444
      %v446 = vrot.slane %v350, %v445
      %v447 = vmul.f32 %v446, %v355
      %v448 = vadd.f32 %v430, %v447
      %v449 = vlaneseq
      %v450 = vshrl.u32 %v449, 7
      %v451 = vsub.s32 5, %v450
      %v452 = vrot.slane %v332, %v451
      %v453 = vmul.f32 %v452, %v339
      %v454 = vadd.f32 %v436, %v453
      %v455 = vlaneseq
      %v456 = vshrl.u32 %v455, 7
      %v457 = vsub.s32 5, %v456
      %v458 = vrot.slane %v333, %v457
      %v459 = vmul.f32 %v458, %v347
      %v460 = vadd.f32 %v442, %v459
      %v461 = vlaneseq
      %v462 = vshrl.u32 %v461, 7
      %v463 = vsub.s32 5, %v462
      %v464 = vrot.slane %v350, %v463
      %v465 = vmul.f32 %v464, %v356
      %v466 = vadd.f32 %v448, %v465
      %v467 = vlaneseq
      %v468 = vshrl.u32 %v467, 7
      %v469 = vsub.s32 6, %v468
      %v470 = vrot.slane %v332, %v469
      %v471 = vmul.f32 %v470, %v340
      %v472 = vadd.f32 %v454, %v471
      %v473 = vlaneseq
      %v474 = vshrl.u32 %v473, 7
      %v475 = vsub.s32 6, %v474
      %v476 = vrot.slane %v333, %v475
      %v477 = vmul.f32 %v476, %v348
      %v478 = vadd.f32 %v460, %v477
      %v479 = vlaneseq
      %v480 = vshrl.u32 %v479, 7
      %v481 = vsub.s32 6, %v480
      %v482 = vrot.slane %v350, %v481
      %v483 = vmul.f32 %v482, %v357
      %v484 = vadd.f32 %v466, %v483
      %v485 = vlaneseq
      %v486 = vshrl.u32 %v485, 7
      %v487 = vsub.s32 7, %v486
      %v488 = vrot.slane %v332, %v487
      %v489 = vmul.f32 %v488, %v341
      %v490 = vadd.f32 %v472, %v489
      %v491 = vlaneseq
      %v492 = vshrl.u32 %v491, 7
      %v493 = vsub.s32 7, %v492
      %v494 = vrot.slane %v333, %v493
      %v495 = vmul.f32 %v494, %v349
      %v496 = vadd.f32 %v478, %v495
      %v497 = vlaneseq
      %v498 = vshrl.u32 %v497, 7
      %v499 = vsub.s32 7, %v498
      %v500 = vrot.slane %v350, %v499
      %v501 = vmul.f32 %v500, %v358
      %v502 = vadd.f32 %v484, %v501
      %v503 = vsub.f32 %v490, %v496
      %vm504 = vcmask 261120
      %505 = vst.msk [vmem:[%s324] sm:$0xff] %vm504, %v503
      %v506 = vsub.f32 %v502, %v490
      %v507 = vsub.f32 %v506, %v496
      %508 = vst.msk [vmem:[%s331] sm:$0xff] %vm504, %v507
      %p509 = scmp.lt.s32.totalorder %s21, 1
      %s510 = scalar_select %p509, %s21, 1
      %p511 = scmp.lt.s32.totalorder %s22, 0
      %s512 = scalar_select %p511, %s22, 0
      %s513 = sadd.s32 %s512, %s510
      %s514 = smul.addr %s513, 8
      %s515 = scalar_lea.vmem %s4, %s514
      %p516 = scmp.lt.s32.totalorder %s21, 1
      %s517 = scalar_select %p516, %s21, 1
      %p518 = scmp.lt.s32.totalorder %s22, 0
      %s519 = scalar_select %p518, %s22, 0
      %s520 = sadd.s32 %s519, %s517
      %s521 = smul.addr %s520, 8
      %s522 = scalar_lea.vmem %s5, %s521
      // Predicated region
      $region37: #{fno_ensemble_rbc1_forward.20} parent=35 // pred_check
        %p523 = pneg %p157
      $region38: #{fno_ensemble_rbc1_forward.20} parent=35 // pred_check_branch
        %525 = sbr.rel (%p523) target = $region40
      $region39: #{fno_ensemble_rbc1_forward.20} parent=35 // pred_region
        _
      $region40: #{fno_ensemble_rbc1_forward.20} parent=35 // pred_fallthru
        _
      // Predicated region
      $region41: #{fno_ensemble_rbc1_forward.20} parent=35 // pred_check
        %p526 = pneg %p185
      $region42: #{fno_ensemble_rbc1_forward.20} parent=35 // pred_check_branch
        %528 = sbr.rel (%p526) target = $region44
      $region43: #{fno_ensemble_rbc1_forward.20} parent=35 // pred_region
        _
      $region44: #{fno_ensemble_rbc1_forward.20} parent=35 // pred_fallthru
        _
    $region36: #{fno_ensemble_rbc1_forward.20} parent=5 // pred_fallthru
      _
    %p529 = scmp.le.s32.totalorder 2, %s12
    // Predicated region
    $region45: #{fno_ensemble_rbc1_forward.20} parent=5 // pred_check
      %p530 = pneg %p529
    $region46: #{fno_ensemble_rbc1_forward.20} parent=5 // pred_check_branch
      %532 = sbr.rel (%p530) target = $region48
    $region47: #{fno_ensemble_rbc1_forward.20} parent=5 // pred_region
      %s533 = ssub.s32 %s12, 2
      // Predicated region
      $region49: #{fno_ensemble_rbc1_forward.20} parent=47 // pred_check
        %p534 = pneg %p163
      $region50: #{fno_ensemble_rbc1_forward.20} parent=47 // pred_check_branch
        %536 = sbr.rel (%p534) target = $region52
      $region51: #{fno_ensemble_rbc1_forward.20} parent=47 // pred_region
        %p537 = scmp.lt.s32.totalorder %s23, 1
        %s538 = scalar_select %p537, %s23, 1
        %p539 = scmp.lt.s32.totalorder %s24, 0
        %s540 = scalar_select %p539, %s24, 0
        %s541 = sadd.s32 %s540, %s538
        %s542 = smul.addr %s541, 8
        %s543 = scalar_lea.vmem %s4, %s542
      $region52: #{fno_ensemble_rbc1_forward.20} parent=47 // pred_fallthru
        _
      // Predicated region
      $region53: #{fno_ensemble_rbc1_forward.20} parent=47 // pred_check
        %p544 = pneg %p191
      $region54: #{fno_ensemble_rbc1_forward.20} parent=47 // pred_check_branch
        %546 = sbr.rel (%p544) target = $region56
      $region55: #{fno_ensemble_rbc1_forward.20} parent=47 // pred_region
        %p547 = scmp.lt.s32.totalorder %s23, 1
        %s548 = scalar_select %p547, %s23, 1
        %p549 = scmp.lt.s32.totalorder %s24, 0
        %s550 = scalar_select %p549, %s24, 0
        %s551 = sadd.s32 %s550, %s548
        %s552 = smul.addr %s551, 8
        %s553 = scalar_lea.vmem %s5, %s552
      $region56: #{fno_ensemble_rbc1_forward.20} parent=47 // pred_fallthru
        _
    $region48: #{fno_ensemble_rbc1_forward.20} parent=5 // pred_fallthru
      _
  $region6: #{fno_ensemble_rbc1_forward.20} parent=0 // loop_footer
    %s16 = sadd.s32 1, %s12
  $region7: #{fno_ensemble_rbc1_forward.20} parent=0 // loop_footer_branch
    %11 = sbr.rel target = $region3
  $region8: #{fno_ensemble_rbc1_forward.20} parent=0 // loop_exit
    _

// kernel: reverse.17
$region0: #{reverse.17}
  %s0 = inlined_call_operand.vmem [shape: f32[2,8,16,7], index: 0, kind: input, shape index: {}]
  %s1 = inlined_call_operand.vmem [shape: f32[2,8,16,7], index: 1, kind: output, shape index: {}]
  $region1: #{reverse.17} parent=0
    #allocation0 [shape = 'u8[131072]{0}', space=vmem, size = 0x20000, scoped, tag = 'operand span for operand 0']
    #allocation1 [shape = 'u8[65536]{0}', space=vmem, size = 0x10000, scoped, tag = 'operand span for operand 1']
    %s2 = scalar_lea.vmem [#allocation0], 8
    // Predicated region
    $region2: #{reverse.17} parent=1 // pred_check
      _
    $region3: #{reverse.17} parent=1 // pred_check_branch
      %4 = sbr.rel (0) target = $region5
    $region4: #{reverse.17} parent=1 // pred_region
      // Predicated region
      $region6: #{reverse.17} parent=4 // pred_check
        _
      $region7: #{reverse.17} parent=4 // pred_check_branch
        %6 = sbr.rel (0) target = $region9
      $region8: #{reverse.17} parent=4 // pred_region
        // Predicated region
        $region21: #{reverse.17} parent=8 // pred_check
          _
        $region22: #{reverse.17} parent=8 // pred_check_branch
          %52 = sbr.rel (0) target = $region24
        $region23: #{reverse.17} parent=8 // pred_region
          loop: start=0, step=1, limit=1
          $region25: #{reverse.17} parent=23 // loop_pre_header
            _
          $region26: #{reverse.17} parent=23 // loop_header
            %s54 = sphi 0, %s58
            %p55 = scmp.ge.s32.totalorder %s54, 1
            %s59 = sphi %s0, %s0
            %s60 = sphi %s2, %s2
          $region27: #{reverse.17} parent=23 // loop_header_branch
            %57 = sbr.rel (%p55) target = $region31
          $region28: #{reverse.17} parent=23 // loop_body
            %v61 = vld [vmem:[%s59] sm:$0xff]
            %62 = vst [vmem:[%s60] sm:$0xff] %v61
            %v63 = vld [vmem:[%s59 + $0x8] sm:$0xff]
            %64 = vst [vmem:[%s60 + $0x10] sm:$0xff] %v63
            %v65 = vld [vmem:[%s59 + $0x10] sm:$0xff]
            %66 = vst [vmem:[%s60 + $0x20] sm:$0xff] %v65
            %v67 = vld [vmem:[%s59 + $0x18] sm:$0xff]
            %68 = vst [vmem:[%s60 + $0x30] sm:$0xff] %v67
            %v69 = vld [vmem:[%s59 + $0x20] sm:$0xff]
            %70 = vst [vmem:[%s60 + $0x40] sm:$0xff] %v69
            %v71 = vld [vmem:[%s59 + $0x28] sm:$0xff]
            %72 = vst [vmem:[%s60 + $0x50] sm:$0xff] %v71
            %v73 = vld [vmem:[%s59 + $0x30] sm:$0xff]
            %74 = vst [vmem:[%s60 + $0x60] sm:$0xff] %v73
            %v75 = vld [vmem:[%s59 + $0x38] sm:$0xff]
            %76 = vst [vmem:[%s60 + $0x70] sm:$0xff] %v75
            %v77 = vld [vmem:[%s59 + $0x40] sm:$0xff]
            %78 = vst [vmem:[%s60 + $0x80] sm:$0xff] %v77
            %v79 = vld [vmem:[%s59 + $0x48] sm:$0xff]
            %80 = vst [vmem:[%s60 + $0x90] sm:$0xff] %v79
            %v81 = vld [vmem:[%s59 + $0x50] sm:$0xff]
            %82 = vst [vmem:[%s60 + $0xa0] sm:$0xff] %v81
            %v83 = vld [vmem:[%s59 + $0x58] sm:$0xff]
            %84 = vst [vmem:[%s60 + $0xb0] sm:$0xff] %v83
            %v85 = vld [vmem:[%s59 + $0x60] sm:$0xff]
            %86 = vst [vmem:[%s60 + $0xc0] sm:$0xff] %v85
            %v87 = vld [vmem:[%s59 + $0x68] sm:$0xff]
            %88 = vst [vmem:[%s60 + $0xd0] sm:$0xff] %v87
            %v89 = vld [vmem:[%s59 + $0x70] sm:$0xff]
            %90 = vst [vmem:[%s60 + $0xe0] sm:$0xff] %v89
            %v91 = vld [vmem:[%s59 + $0x78] sm:$0xff]
            %92 = vst [vmem:[%s60 + $0xf0] sm:$0xff] %v91
          $region29: #{reverse.17} parent=23 // loop_footer
            %s58 = sadd.s32 1, %s54
          $region30: #{reverse.17} parent=23 // loop_footer_branch
            %53 = sbr.rel target = $region26
          $region31: #{reverse.17} parent=23 // loop_exit
            _
        $region24: #{reverse.17} parent=8 // pred_fallthru
          _
        // Predicated region
        $region32: #{reverse.17} parent=8 // pred_check
          _
        $region33: #{reverse.17} parent=8 // pred_check_branch
          %94 = sbr.rel target = $region35
        $region34: #{reverse.17} parent=8 // pred_region
          _
        $region35: #{reverse.17} parent=8 // pred_fallthru
          _
      $region9: #{reverse.17} parent=4 // pred_fallthru
        _
      // Predicated region
      $region10: #{reverse.17} parent=4 // pred_check
        _
      $region11: #{reverse.17} parent=4 // pred_check_branch
        %8 = sbr.rel target = $region13
      $region12: #{reverse.17} parent=4 // pred_region
        %s10 = ssub.s32 256, 1
        loop: start=0, step=1, limit=1
        $region14: #{reverse.17} parent=12 // loop_pre_header
          _
        $region15: #{reverse.17} parent=12 // loop_header
          %s12 = sphi 0, %s16
          %p13 = scmp.ge.s32.totalorder %s12, 1
          %s17 = sphi %s0, %s0
          %s18 = sphi %s2, %s2
        $region16: #{reverse.17} parent=12 // loop_header_branch
          %15 = sbr.rel (%p13) target = $region20
        $region17: #{reverse.17} parent=12 // loop_body
          %v19 = vld [vmem:[%s17] sm:%s10]
          %20 = vst [vmem:[%s18] sm:%s10] %v19
          %v21 = vld [vmem:[%s17 + $0x8] sm:%s10]
          %22 = vst [vmem:[%s18 + $0x10] sm:%s10] %v21
          %v23 = vld [vmem:[%s17 + $0x10] sm:%s10]
          %24 = vst [vmem:[%s18 + $0x20] sm:%s10] %v23
          %v25 = vld [vmem:[%s17 + $0x18] sm:%s10]
          %26 = vst [vmem:[%s18 + $0x30] sm:%s10] %v25
          %v27 = vld [vmem:[%s17 + $0x20] sm:%s10]
          %28 = vst [vmem:[%s18 + $0x40] sm:%s10] %v27
          %v29 = vld [vmem:[%s17 + $0x28] sm:%s10]
          %30 = vst [vmem:[%s18 + $0x50] sm:%s10] %v29
          %v31 = vld [vmem:[%s17 + $0x30] sm:%s10]
          %32 = vst [vmem:[%s18 + $0x60] sm:%s10] %v31
          %v33 = vld [vmem:[%s17 + $0x38] sm:%s10]
          %34 = vst [vmem:[%s18 + $0x70] sm:%s10] %v33
          %v35 = vld [vmem:[%s17 + $0x40] sm:%s10]
          %36 = vst [vmem:[%s18 + $0x80] sm:%s10] %v35
          %v37 = vld [vmem:[%s17 + $0x48] sm:%s10]
          %38 = vst [vmem:[%s18 + $0x90] sm:%s10] %v37
          %v39 = vld [vmem:[%s17 + $0x50] sm:%s10]
          %40 = vst [vmem:[%s18 + $0xa0] sm:%s10] %v39
          %v41 = vld [vmem:[%s17 + $0x58] sm:%s10]
          %42 = vst [vmem:[%s18 + $0xb0] sm:%s10] %v41
          %v43 = vld [vmem:[%s17 + $0x60] sm:%s10]
          %44 = vst [vmem:[%s18 + $0xc0] sm:%s10] %v43
          %v45 = vld [vmem:[%s17 + $0x68] sm:%s10]
          %46 = vst [vmem:[%s18 + $0xd0] sm:%s10] %v45
          %v47 = vld [vmem:[%s17 + $0x70] sm:%s10]
          %48 = vst [vmem:[%s18 + $0xe0] sm:%s10] %v47
          %v49 = vld [vmem:[%s17 + $0x78] sm:%s10]
          %50 = vst [vmem:[%s18 + $0xf0] sm:%s10] %v49
        $region18: #{reverse.17} parent=12 // loop_footer
          %s16 = sadd.s32 1, %s12
        $region19: #{reverse.17} parent=12 // loop_footer_branch
          %11 = sbr.rel target = $region15
        $region20: #{reverse.17} parent=12 // loop_exit
          _
      $region13: #{reverse.17} parent=4 // pred_fallthru
        _
    $region5: #{reverse.17} parent=1 // pred_fallthru
      _
    %95 = vnop
    %s96 = scalar_lea.vmem [#allocation0], 7
    %v97 = vld [vmem:[%s96] ss:$-1 sm:$0xff]
    %v98 = vrot.slane %v97, 1
    %99 = vst [vmem:[#allocation1] sm:$0xff] %v98
    %s100 = scalar_lea.vmem [#allocation0], 8
    %s101 = scalar_lea.vmem %s100, 7 [#allocation0]
    %v102 = vld [vmem:[%s101] ss:$-1 sm:$0xff]
    %v103 = vrot.slane %v102, 1
    %v104 = vlaneseq
    %v105 = vshrl.u32 %v104, 7
    %vm106 = vcmp.lt.s32.totalorder %v105, 7
    %107 = vst.msk [vmem:[#allocation1] sm:$0xff] %vm106, %v103
    %s108 = scalar_lea.vmem [#allocation1], 8
    %s109 = scalar_lea.vmem [#allocation0], 16
    %s110 = scalar_lea.vmem %s109, 7 [#allocation0]
    %v111 = vld [vmem:[%s110] ss:$-1 sm:$0xff]
    %v112 = vrot.slane %v111, 1
    %113 = vst [vmem:[%s108] sm:$0xff] %v112
    %s114 = scalar_lea.vmem %s109, 8 [#allocation0]
    %s115 = scalar_lea.vmem %s114, 7 [#allocation0]
    %v116 = vld [vmem:[%s115] ss:$-1 sm:$0xff]
    %v117 = vrot.slane %v116, 1
    %v118 = vlaneseq
    %v119 = vshrl.u32 %v118, 7
    %vm120 = vcmp.lt.s32.totalorder %v119, 7
    %121 = vst.msk [vmem:[%s108] sm:$0xff] %vm120, %v117
    %s122 = scalar_lea.vmem [#allocation1], 16
    %s123 = scalar_lea.vmem [#allocation0], 32
    %s124 = scalar_lea.vmem %s123, 7 [#allocation0]
    %v125 = vld [vmem:[%s124] ss:$-1 sm:$0xff]
    %v126 = vrot.slane %v125, 1
    %127 = vst [vmem:[%s122] sm:$0xff] %v126
    %s128 = scalar_lea.vmem %s123, 8 [#allocation0]
    %s129 = scalar_lea.vmem %s128, 7 [#allocation0]
    %v130 = vld [vmem:[%s129] ss:$-1 sm:$0xff]
    %v131 = vrot.slane %v130, 1
    %v132 = vlaneseq
    %v133 = vshrl.u32 %v132, 7
    %vm134 = vcmp.lt.s32.totalorder %v133, 7
    %135 = vst.msk [vmem:[%s122] sm:$0xff] %vm134, %v131
    %s136 = scalar_lea.vmem [#allocation1], 24
    %s137 = scalar_lea.vmem [#allocation0], 48
    %s138 = scalar_lea.vmem %s137, 7 [#allocation0]
    %v139 = vld [vmem:[%s138] ss:$-1 sm:$0xff]
    %v140 = vrot.slane %v139, 1
    %141 = vst [vmem:[%s136] sm:$0xff] %v140
    %s142 = scalar_lea.vmem %s137, 8 [#allocation0]
    %s143 = scalar_lea.vmem %s142, 7 [#allocation0]
    %v144 = vld [vmem:[%s143] ss:$-1 sm:$0xff]
    %v145 = vrot.slane %v144, 1
    %v146 = vlaneseq
    %v147 = vshrl.u32 %v146, 7
    %vm148 = vcmp.lt.s32.totalorder %v147, 7
    %149 = vst.msk [vmem:[%s136] sm:$0xff] %vm148, %v145
    %s150 = scalar_lea.vmem [#allocation1], 32
    %s151 = scalar_lea.vmem [#allocation0], 64
    %s152 = scalar_lea.vmem %s151, 7 [#allocation0]
    %v153 = vld [vmem:[%s152] ss:$-1 sm:$0xff]
    %v154 = vrot.slane %v153, 1
    %155 = vst [vmem:[%s150] sm:$0xff] %v154
    %s156 = scalar_lea.vmem %s151, 8 [#allocation0]
    %s157 = scalar_lea.vmem %s156, 7 [#allocation0]
    %v158 = vld [vmem:[%s157] ss:$-1 sm:$0xff]
    %v159 = vrot.slane %v158, 1
    %v160 = vlaneseq
    %v161 = vshrl.u32 %v160, 7
    %vm162 = vcmp.lt.s32.totalorder %v161, 7
    %163 = vst.msk [vmem:[%s150] sm:$0xff] %vm162, %v159
    %s164 = scalar_lea.vmem [#allocation1], 40
    %s165 = scalar_lea.vmem [#allocation0], 80
    %s166 = scalar_lea.vmem %s165, 7 [#allocation0]
    %v167 = vld [vmem:[%s166] ss:$-1 sm:$0xff]
    %v168 = vrot.slane %v167, 1
    %169 = vst [vmem:[%s164] sm:$0xff] %v168
    %s170 = scalar_lea.vmem %s165, 8 [#allocation0]
    %s171 = scalar_lea.vmem %s170, 7 [#allocation0]
    %v172 = vld [vmem:[%s171] ss:$-1 sm:$0xff]
    %v173 = vrot.slane %v172, 1
    %v174 = vlaneseq
    %v175 = vshrl.u32 %v174, 7
    %vm176 = vcmp.lt.s32.totalorder %v175, 7
    %177 = vst.msk [vmem:[%s164] sm:$0xff] %vm176, %v173
    %s178 = scalar_lea.vmem [#allocation1], 48
    %s179 = scalar_lea.vmem [#allocation0], 96
    %s180 = scalar_lea.vmem %s179, 7 [#allocation0]
    %v181 = vld [vmem:[%s180] ss:$-1 sm:$0xff]
    %v182 = vrot.slane %v181, 1
    %183 = vst [vmem:[%s178] sm:$0xff] %v182
    %s184 = scalar_lea.vmem %s179, 8 [#allocation0]
    %s185 = scalar_lea.vmem %s184, 7 [#allocation0]
    %v186 = vld [vmem:[%s185] ss:$-1 sm:$0xff]
    %v187 = vrot.slane %v186, 1
    %v188 = vlaneseq
    %v189 = vshrl.u32 %v188, 7
    %vm190 = vcmp.lt.s32.totalorder %v189, 7
    %191 = vst.msk [vmem:[%s178] sm:$0xff] %vm190, %v187
    %s192 = scalar_lea.vmem [#allocation1], 56
    %s193 = scalar_lea.vmem [#allocation0], 112
    %s194 = scalar_lea.vmem %s193, 7 [#allocation0]
    %v195 = vld [vmem:[%s194] ss:$-1 sm:$0xff]
    %v196 = vrot.slane %v195, 1
    %197 = vst [vmem:[%s192] sm:$0xff] %v196
    %s198 = scalar_lea.vmem %s193, 8 [#allocation0]
    %s199 = scalar_lea.vmem %s198, 7 [#allocation0]
    %v200 = vld [vmem:[%s199] ss:$-1 sm:$0xff]
    %v201 = vrot.slane %v200, 1
    %v202 = vlaneseq
    %v203 = vshrl.u32 %v202, 7
    %vm204 = vcmp.lt.s32.totalorder %v203, 7
    %205 = vst.msk [vmem:[%s192] sm:$0xff] %vm204, %v201
    %s206 = scalar_lea.vmem [#allocation1], 64
    %s207 = scalar_lea.vmem [#allocation0], 128
    %s208 = scalar_lea.vmem %s207, 7 [#allocation0]
    %v209 = vld [vmem:[%s208] ss:$-1 sm:$0xff]
    %v210 = vrot.slane %v209, 1
    %211 = vst [vmem:[%s206] sm:$0xff] %v210
    %s212 = scalar_lea.vmem %s207, 8 [#allocation0]
    %s213 = scalar_lea.vmem %s212, 7 [#allocation0]
    %v214 = vld [vmem:[%s213] ss:$-1 sm:$0xff]
    %v215 = vrot.slane %v214, 1
    %v216 = vlaneseq
    %v217 = vshrl.u32 %v216, 7
    %vm218 = vcmp.lt.s32.totalorder %v217, 7
    %219 = vst.msk [vmem:[%s206] sm:$0xff] %vm218, %v215
    %s220 = scalar_lea.vmem [#allocation1], 72
    %s221 = scalar_lea.vmem [#allocation0], 144
    %s222 = scalar_lea.vmem %s221, 7 [#allocation0]
    %v223 = vld [vmem:[%s222] ss:$-1 sm:$0xff]
    %v224 = vrot.slane %v223, 1
    %225 = vst [vmem:[%s220] sm:$0xff] %v224
    %s226 = scalar_lea.vmem %s221, 8 [#allocation0]
    %s227 = scalar_lea.vmem %s226, 7 [#allocation0]
    %v228 = vld [vmem:[%s227] ss:$-1 sm:$0xff]
    %v229 = vrot.slane %v228, 1
    %v230 = vlaneseq
    %v231 = vshrl.u32 %v230, 7
    %vm232 = vcmp.lt.s32.totalorder %v231, 7
    %233 = vst.msk [vmem:[%s220] sm:$0xff] %vm232, %v229
    %s234 = scalar_lea.vmem [#allocation1], 80
    %s235 = scalar_lea.vmem [#allocation0], 160
    %s236 = scalar_lea.vmem %s235, 7 [#allocation0]
    %v237 = vld [vmem:[%s236] ss:$-1 sm:$0xff]
    %v238 = vrot.slane %v237, 1
    %239 = vst [vmem:[%s234] sm:$0xff] %v238
    %s240 = scalar_lea.vmem %s235, 8 [#allocation0]
    %s241 = scalar_lea.vmem %s240, 7 [#allocation0]
    %v242 = vld [vmem:[%s241] ss:$-1 sm:$0xff]
    %v243 = vrot.slane %v242, 1
    %v244 = vlaneseq
    %v245 = vshrl.u32 %v244, 7
    %vm246 = vcmp.lt.s32.totalorder %v245, 7
    %247 = vst.msk [vmem:[%s234] sm:$0xff] %vm246, %v243
    %s248 = scalar_lea.vmem [#allocation1], 88
    %s249 = scalar_lea.vmem [#allocation0], 176
    %s250 = scalar_lea.vmem %s249, 7 [#allocation0]
    %v251 = vld [vmem:[%s250] ss:$-1 sm:$0xff]
    %v252 = vrot.slane %v251, 1
    %253 = vst [vmem:[%s248] sm:$0xff] %v252
    %s254 = scalar_lea.vmem %s249, 8 [#allocation0]
    %s255 = scalar_lea.vmem %s254, 7 [#allocation0]
    %v256 = vld [vmem:[%s255] ss:$-1 sm:$0xff]
    %v257 = vrot.slane %v256, 1
    %v258 = vlaneseq
    %v259 = vshrl.u32 %v258, 7
    %vm260 = vcmp.lt.s32.totalorder %v259, 7
    %261 = vst.msk [vmem:[%s248] sm:$0xff] %vm260, %v257
    %s262 = scalar_lea.vmem [#allocation1], 96
    %s263 = scalar_lea.vmem [#allocation0], 192
    %s264 = scalar_lea.vmem %s263, 7 [#allocation0]
    %v265 = vld [vmem:[%s264] ss:$-1 sm:$0xff]
    %v266 = vrot.slane %v265, 1
    %267 = vst [vmem:[%s262] sm:$0xff] %v266
    %s268 = scalar_lea.vmem %s263, 8 [#allocation0]
    %s269 = scalar_lea.vmem %s268, 7 [#allocation0]
    %v270 = vld [vmem:[%s269] ss:$-1 sm:$0xff]
    %v271 = vrot.slane %v270, 1
    %v272 = vlaneseq
    %v273 = vshrl.u32 %v272, 7
    %vm274 = vcmp.lt.s32.totalorder %v273, 7
    %275 = vst.msk [vmem:[%s262] sm:$0xff] %vm274, %v271
    %s276 = scalar_lea.vmem [#allocation1], 104
    %s277 = scalar_lea.vmem [#allocation0], 208
    %s278 = scalar_lea.vmem %s277, 7 [#allocation0]
    %v279 = vld [vmem:[%s278] ss:$-1 sm:$0xff]
    %v280 = vrot.slane %v279, 1
    %281 = vst [vmem:[%s276] sm:$0xff] %v280
    %s282 = scalar_lea.vmem %s277, 8 [#allocation0]
    %s283 = scalar_lea.vmem %s282, 7 [#allocation0]
    %v284 = vld [vmem:[%s283] ss:$-1 sm:$0xff]
    %v285 = vrot.slane %v284, 1
    %v286 = vlaneseq
    %v287 = vshrl.u32 %v286, 7
    %vm288 = vcmp.lt.s32.totalorder %v287, 7
    %289 = vst.msk [vmem:[%s276] sm:$0xff] %vm288, %v285
    %s290 = scalar_lea.vmem [#allocation1], 112
    %s291 = scalar_lea.vmem [#allocation0], 224
    %s292 = scalar_lea.vmem %s291, 7 [#allocation0]
    %v293 = vld [vmem:[%s292] ss:$-1 sm:$0xff]
    %v294 = vrot.slane %v293, 1
    %295 = vst [vmem:[%s290] sm:$0xff] %v294
    %s296 = scalar_lea.vmem %s291, 8 [#allocation0]
    %s297 = scalar_lea.vmem %s296, 7 [#allocation0]
    %v298 = vld [vmem:[%s297] ss:$-1 sm:$0xff]
    %v299 = vrot.slane %v298, 1
    %v300 = vlaneseq
    %v301 = vshrl.u32 %v300, 7
    %vm302 = vcmp.lt.s32.totalorder %v301, 7
    %303 = vst.msk [vmem:[%s290] sm:$0xff] %vm302, %v299
    %s304 = scalar_lea.vmem [#allocation1], 120
    %s305 = scalar_lea.vmem [#allocation0], 240
    %s306 = scalar_lea.vmem %s305, 7 [#allocation0]
    %v307 = vld [vmem:[%s306] ss:$-1 sm:$0xff]
    %v308 = vrot.slane %v307, 1
    %309 = vst [vmem:[%s304] sm:$0xff] %v308
    %s310 = scalar_lea.vmem %s305, 8 [#allocation0]
    %s311 = scalar_lea.vmem %s310, 7 [#allocation0]
    %v312 = vld [vmem:[%s311] ss:$-1 sm:$0xff]
    %v313 = vrot.slane %v312, 1
    %v314 = vlaneseq
    %v315 = vshrl.u32 %v314, 7
    %vm316 = vcmp.lt.s32.totalorder %v315, 7
    %317 = vst.msk [vmem:[%s304] sm:$0xff] %vm316, %v313
    // Predicated region
    $region36: #{reverse.17} parent=1 // pred_check
      _
    $region37: #{reverse.17} parent=1 // pred_check_branch
      %319 = sbr.rel (0) target = $region39
    $region38: #{reverse.17} parent=1 // pred_region
      // Predicated region
      $region40: #{reverse.17} parent=38 // pred_check
        _
      $region41: #{reverse.17} parent=38 // pred_check_branch
        %321 = sbr.rel (0) target = $region43
      $region42: #{reverse.17} parent=38 // pred_region
        // Predicated region
        $region55: #{reverse.17} parent=42 // pred_check
          _
        $region56: #{reverse.17} parent=42 // pred_check_branch
          %367 = sbr.rel (0) target = $region58
        $region57: #{reverse.17} parent=42 // pred_region
          loop: start=0, step=1, limit=1
          $region59: #{reverse.17} parent=57 // loop_pre_header
            _
          $region60: #{reverse.17} parent=57 // loop_header
            %s369 = sphi 0, %s373
            %p370 = scmp.ge.s32.totalorder %s369, 1
            %s374 = sphi [#allocation1], [#allocation1]
            %s375 = sphi %s1, %s1
          $region61: #{reverse.17} parent=57 // loop_header_branch
            %372 = sbr.rel (%p370) target = $region65
          $region62: #{reverse.17} parent=57 // loop_body
            %v376 = vld [vmem:[%s374] sm:$0xff]
            %377 = vst [vmem:[%s375] sm:$0xff] %v376
            %v378 = vld [vmem:[%s374 + $0x8] sm:$0xff]
            %379 = vst [vmem:[%s375 + $0x8] sm:$0xff] %v378
            %v380 = vld [vmem:[%s374 + $0x10] sm:$0xff]
            %381 = vst [vmem:[%s375 + $0x10] sm:$0xff] %v380
            %v382 = vld [vmem:[%s374 + $0x18] sm:$0xff]
            %383 = vst [vmem:[%s375 + $0x18] sm:$0xff] %v382
            %v384 = vld [vmem:[%s374 + $0x20] sm:$0xff]
            %385 = vst [vmem:[%s375 + $0x20] sm:$0xff] %v384
            %v386 = vld [vmem:[%s374 + $0x28] sm:$0xff]
            %387 = vst [vmem:[%s375 + $0x28] sm:$0xff] %v386
            %v388 = vld [vmem:[%s374 + $0x30] sm:$0xff]
            %389 = vst [vmem:[%s375 + $0x30] sm:$0xff] %v388
            %v390 = vld [vmem:[%s374 + $0x38] sm:$0xff]
            %391 = vst [vmem:[%s375 + $0x38] sm:$0xff] %v390
            %v392 = vld [vmem:[%s374 + $0x40] sm:$0xff]
            %393 = vst [vmem:[%s375 + $0x40] sm:$0xff] %v392
            %v394 = vld [vmem:[%s374 + $0x48] sm:$0xff]
            %395 = vst [vmem:[%s375 + $0x48] sm:$0xff] %v394
            %v396 = vld [vmem:[%s374 + $0x50] sm:$0xff]
            %397 = vst [vmem:[%s375 + $0x50] sm:$0xff] %v396
            %v398 = vld [vmem:[%s374 + $0x58] sm:$0xff]
            %399 = vst [vmem:[%s375 + $0x58] sm:$0xff] %v398
            %v400 = vld [vmem:[%s374 + $0x60] sm:$0xff]
            %401 = vst [vmem:[%s375 + $0x60] sm:$0xff] %v400
            %v402 = vld [vmem:[%s374 + $0x68] sm:$0xff]
            %403 = vst [vmem:[%s375 + $0x68] sm:$0xff] %v402
            %v404 = vld [vmem:[%s374 + $0x70] sm:$0xff]
            %405 = vst [vmem:[%s375 + $0x70] sm:$0xff] %v404
            %v406 = vld [vmem:[%s374 + $0x78] sm:$0xff]
            %407 = vst [vmem:[%s375 + $0x78] sm:$0xff] %v406
          $region63: #{reverse.17} parent=57 // loop_footer
            %s373 = sadd.s32 1, %s369
          $region64: #{reverse.17} parent=57 // loop_footer_branch
            %368 = sbr.rel target = $region60
          $region65: #{reverse.17} parent=57 // loop_exit
            _
        $region58: #{reverse.17} parent=42 // pred_fallthru
          _
        // Predicated region
        $region66: #{reverse.17} parent=42 // pred_check
          _
        $region67: #{reverse.17} parent=42 // pred_check_branch
          %409 = sbr.rel target = $region69
        $region68: #{reverse.17} parent=42 // pred_region
          _
        $region69: #{reverse.17} parent=42 // pred_fallthru
          _
      $region43: #{reverse.17} parent=38 // pred_fallthru
        _
      // Predicated region
      $region44: #{reverse.17} parent=38 // pred_check
        _
      $region45: #{reverse.17} parent=38 // pred_check_branch
        %323 = sbr.rel target = $region47
      $region46: #{reverse.17} parent=38 // pred_region
        %s325 = ssub.s32 256, 1
        loop: start=0, step=1, limit=1
        $region48: #{reverse.17} parent=46 // loop_pre_header
          _
        $region49: #{reverse.17} parent=46 // loop_header
          %s327 = sphi 0, %s331
          %p328 = scmp.ge.s32.totalorder %s327, 1
          %s332 = sphi [#allocation1], [#allocation1]
          %s333 = sphi %s1, %s1
        $region50: #{reverse.17} parent=46 // loop_header_branch
          %330 = sbr.rel (%p328) target = $region54
        $region51: #{reverse.17} parent=46 // loop_body
          %v334 = vld [vmem:[%s332] sm:%s325]
          %335 = vst [vmem:[%s333] sm:%s325] %v334
          %v336 = vld [vmem:[%s332 + $0x8] sm:%s325]
          %337 = vst [vmem:[%s333 + $0x8] sm:%s325] %v336
          %v338 = vld [vmem:[%s332 + $0x10] sm:%s325]
          %339 = vst [vmem:[%s333 + $0x10] sm:%s325] %v338
          %v340 = vld [vmem:[%s332 + $0x18] sm:%s325]
          %341 = vst [vmem:[%s333 + $0x18] sm:%s325] %v340
          %v342 = vld [vmem:[%s332 + $0x20] sm:%s325]
          %343 = vst [vmem:[%s333 + $0x20] sm:%s325] %v342
          %v344 = vld [vmem:[%s332 + $0x28] sm:%s325]
          %345 = vst [vmem:[%s333 + $0x28] sm:%s325] %v344
          %v346 = vld [vmem:[%s332 + $0x30] sm:%s325]
          %347 = vst [vmem:[%s333 + $0x30] sm:%s325] %v346
          %v348 = vld [vmem:[%s332 + $0x38] sm:%s325]
          %349 = vst [vmem:[%s333 + $0x38] sm:%s325] %v348
          %v350 = vld [vmem:[%s332 + $0x40] sm:%s325]
          %351 = vst [vmem:[%s333 + $0x40] sm:%s325] %v350
          %v352 = vld [vmem:[%s332 + $0x48] sm:%s325]
          %353 = vst [vmem:[%s333 + $0x48] sm:%s325] %v352
          %v354 = vld [vmem:[%s332 + $0x50] sm:%s325]
          %355 = vst [vmem:[%s333 + $0x50] sm:%s325] %v354
          %v356 = vld [vmem:[%s332 + $0x58] sm:%s325]
          %357 = vst [vmem:[%s333 + $0x58] sm:%s325] %v356
          %v358 = vld [vmem:[%s332 + $0x60] sm:%s325]
          %359 = vst [vmem:[%s333 + $0x60] sm:%s325] %v358
          %v360 = vld [vmem:[%s332 + $0x68] sm:%s325]
          %361 = vst [vmem:[%s333 + $0x68] sm:%s325] %v360
          %v362 = vld [vmem:[%s332 + $0x70] sm:%s325]
          %363 = vst [vmem:[%s333 + $0x70] sm:%s325] %v362
          %v364 = vld [vmem:[%s332 + $0x78] sm:%s325]
          %365 = vst [vmem:[%s333 + $0x78] sm:%s325] %v364
        $region52: #{reverse.17} parent=46 // loop_footer
          %s331 = sadd.s32 1, %s327
        $region53: #{reverse.17} parent=46 // loop_footer_branch
          %326 = sbr.rel target = $region49
        $region54: #{reverse.17} parent=46 // loop_exit
          _
      $region47: #{reverse.17} parent=38 // pred_fallthru
        _
    $region39: #{reverse.17} parent=1 // pred_fallthru
      _
    %410 = vnop

// kernel: fno_ensemble_rbc1_forward.21
$region0: #{fno_ensemble_rbc1_forward.21}
  #allocation0 [shape = 'u32[]', space=smem, size = 0x4, offset = 0x4, fixed_abs, tag = 'smem constant byte address 0x4 - core index']
  #allocation1 [shape = 'u32[144,128]{1,0:T(1,128)}', space=vmem, size = 0x12000, scoped, tag = 'internal scratch']
  %s0 = inlined_call_operand.vmem [shape: f32[2,8,256], index: 0, kind: input, shape index: {}]
  %s1 = inlined_call_operand.vmem [shape: f32[2,8,256], index: 1, kind: input, shape index: {}]
  %s2 = inlined_call_operand.vmem [shape: f32[8,8], index: 2, kind: input, shape index: {}]
  %s3 = inlined_call_operand.vmem [shape: f32[8,1], index: 3, kind: input, shape index: {}]
  %s4 = inlined_call_operand.vmem [shape: f32[2,8,256], index: 4, kind: output, shape index: {}]
  %s5 = sld [smem:[#allocation0]]
  $region49: #{fno_ensemble_rbc1_forward.21} parent=0
    _
  %s7 = ssub.s32 1, %s5
  %s8 = scalar_select 0, %s7, %s5
  loop: start=0, step=1, limit=4
  $region2: #{fno_ensemble_rbc1_forward.21} parent=0 // loop_pre_header
    _
  $region3: #{fno_ensemble_rbc1_forward.21} parent=0 // loop_header
    %s10 = sphi 0, %s14
    %p11 = scmp.ge.s32.totalorder %s10, 4
    %s17 = sphi 0, %s29
    %s18 = sphi 0, %s25
    %s19 = sphi 0, %s17
    %s20 = sphi 0, %s18
    %s21 = sphi 0, %s19
    %s22 = sphi 0, %s20
    %s34 = sphi 0, %s36
    %s37 = sphi 0, %s34
    %s38 = sphi 0, %s37
    %s54 = sphi 0, %s38
    %s62 = sphi 0, %s64
    %s65 = sphi 0, %s62
    %s66 = sphi 0, %s65
    %s82 = sphi 0, %s66
    %s86 = sphi 0, %s86
    %s88 = sphi 0, %s86
    %s89 = sphi 0, %s88
    %s103 = sphi 0, %s89
    %s107 = sphi 0, %s107
    %s109 = sphi 0, %s107
    %s110 = sphi 0, %s109
    %s124 = sphi 0, %s110
    %s132 = sphi 0, %s134
    %s135 = sphi 0, %s132
    %s136 = sphi 0, %s135
    %s152 = sphi 0, %s136
  $region4: #{fno_ensemble_rbc1_forward.21} parent=0 // loop_header_branch
    %13 = sbr.rel (%p11) target = $region8
  $region5: #{fno_ensemble_rbc1_forward.21} parent=0 // loop_body
    %s15 = ssub.s32 %s10, 1
    %s16 = ssub.s32 %s10, 2
    %s23 = sadd.s32 1, %s18
    %p24 = scmp.ge.s32.totalorder %s23, 1
    %s25 = scalar_select %p24, 0, %s23
    %s26 = sadd.s32 1, %s17
    %s27 = scalar_select %p24, %s26, %s17
    %p28 = scmp.ge.s32.totalorder %s27, 2
    %s29 = scalar_select %p28, 0, %s27
    %s30 = ssub.s32 %s17, %s29
    %s31 = ssub.s32 %s18, %s25
    %s32 = sor.u32 %s30, %s31
    %p33 = scmp.eq.s32.totalorder %s32, 0
    %s35 = sadd.s32 %s34, 1
    %s36 = scalar_select %p33, %s34, %s35
    %p39 = pneg %p33
    %p40 = scmp.eq.s32.totalorder %s10, 1
    %p41 = por %p39, %p40
    %p42 = scmp.ne.s32.totalorder %s34, %s37
    %p43 = scmp.eq.s32.totalorder %s10, 0
    %p44 = por %p42, %p43
    %p45 = scmp.ne.s32.totalorder %s34, %s37
    %p46 = scmp.eq.s32.totalorder %s15, 1
    %p47 = por %p45, %p46
    %p48 = scmp.ne.s32.totalorder %s37, %s38
    %p49 = scmp.eq.s32.totalorder %s15, 0
    %p50 = por %p48, %p49
    %p51 = scmp.ne.s32.totalorder %s37, %s38
    %p52 = scmp.eq.s32.totalorder %s16, 1
    %p53 = por %p51, %p52
    %p55 = scmp.ne.s32.totalorder %s38, %s54
    %p56 = scmp.eq.s32.totalorder %s16, 0
    %p57 = por %p55, %p56
    %s58 = ssub.s32 %s17, %s29
    %s59 = ssub.s32 %s18, %s25
    %s60 = sor.u32 %s58, %s59
    %p61 = scmp.eq.s32.totalorder %s60, 0
    %s63 = sadd.s32 %s62, 1
    %s64 = scalar_select %p61, %s62, %s63
    %p67 = pneg %p61
    %p68 = scmp.eq.s32.totalorder %s10, 1
    %p69 = por %p67, %p68
    %p70 = scmp.ne.s32.totalorder %s62, %s65
    %p71 = scmp.eq.s32.totalorder %s10, 0
    %p72 = por %p70, %p71
    %p73 = scmp.ne.s32.totalorder %s62, %s65
    %p74 = scmp.eq.s32.totalorder %s15, 1
    %p75 = por %p73, %p74
    %p76 = scmp.ne.s32.totalorder %s65, %s66
    %p77 = scmp.eq.s32.totalorder %s15, 0
    %p78 = por %p76, %p77
    %p79 = scmp.ne.s32.totalorder %s65, %s66
    %p80 = scmp.eq.s32.totalorder %s16, 1
    %p81 = por %p79, %p80
    %p83 = scmp.ne.s32.totalorder %s66, %s82
    %p84 = scmp.eq.s32.totalorder %s16, 0
    %p85 = por %p83, %p84
    %s87 = sadd.s32 %s86, 1
    %p90 = scmp.eq.s32.totalorder %s10, 1
    %p91 = scmp.ne.s32.totalorder %s86, %s88
    %p92 = scmp.eq.s32.totalorder %s10, 0
    %p93 = por %p91, %p92
    %p94 = scmp.ne.s32.totalorder %s86, %s88
    %p95 = scmp.eq.s32.totalorder %s15, 1
    %p96 = por %p94, %p95
    %p97 = scmp.ne.s32.totalorder %s88, %s89
    %p98 = scmp.eq.s32.totalorder %s15, 0
    %p99 = por %p97, %p98
    %p100 = scmp.ne.s32.totalorder %s88, %s89
    %p101 = scmp.eq.s32.totalorder %s16, 1
    %p102 = por %p100, %p101
    %p104 = scmp.ne.s32.totalorder %s89, %s103
    %p105 = scmp.eq.s32.totalorder %s16, 0
    %p106 = por %p104, %p105
    %s108 = sadd.s32 %s107, 1
    %p111 = scmp.eq.s32.totalorder %s10, 1
    %p112 = scmp.ne.s32.totalorder %s107, %s109
    %p113 = scmp.eq.s32.totalorder %s10, 0
    %p114 = por %p112, %p113
    %p115 = scmp.ne.s32.totalorder %s107, %s109
    %p116 = scmp.eq.s32.totalorder %s15, 1
    %p117 = por %p115, %p116
    %p118 = scmp.ne.s32.totalorder %s109, %s110
    %p119 = scmp.eq.s32.totalorder %s15, 0
    %p120 = por %p118, %p119
    %p121 = scmp.ne.s32.totalorder %s109, %s110
    %p122 = scmp.eq.s32.totalorder %s16, 1
    %p123 = por %p121, %p122
    %p125 = scmp.ne.s32.totalorder %s110, %s124
    %p126 = scmp.eq.s32.totalorder %s16, 0
    %p127 = por %p125, %p126
    %s128 = ssub.s32 %s17, %s29
    %s129 = ssub.s32 %s18, %s25
    %s130 = sor.u32 %s128, %s129
    %p131 = scmp.eq.s32.totalorder %s130, 0
    %s133 = sadd.s32 %s132, 1
    %s134 = scalar_select %p131, %s132, %s133
    %p137 = pneg %p131
    %p138 = scmp.eq.s32.totalorder %s10, 1
    %p139 = por %p137, %p138
    %p140 = scmp.ne.s32.totalorder %s132, %s135
    %p141 = scmp.eq.s32.totalorder %s10, 0
    %p142 = por %p140, %p141
    %p143 = scmp.ne.s32.totalorder %s132, %s135
    %p144 = scmp.eq.s32.totalorder %s15, 1
    %p145 = por %p143, %p144
    %p146 = scmp.ne.s32.totalorder %s135, %s136
    %p147 = scmp.eq.s32.totalorder %s15, 0
    %p148 = por %p146, %p147
    %p149 = scmp.ne.s32.totalorder %s135, %s136
    %p150 = scmp.eq.s32.totalorder %s16, 1
    %p151 = por %p149, %p150
    %p153 = scmp.ne.s32.totalorder %s136, %s152
    %p154 = scmp.eq.s32.totalorder %s16, 0
    %p155 = por %p153, %p154
    %p156 = scmp.le.s32.totalorder 1, %s10
    %p157 = scmp.lt.s32.totalorder %s10, 3
    %p158 = pnand %p156, %p157
    %p159 = pneg %p158
    // Predicated region
    $region9: #{fno_ensemble_rbc1_forward.21} parent=5 // pred_check
      _
    $region10: #{fno_ensemble_rbc1_forward.21} parent=5 // pred_check_branch
      %161 = sbr.rel (%p158) target = $region12
    $region11: #{fno_ensemble_rbc1_forward.21} parent=5 // pred_region
      %s162 = ssub.s32 %s10, 1
      // Predicated region
      $region13: #{fno_ensemble_rbc1_forward.21} parent=11 // pred_check
        %p163 = pneg %p99
      $region14: #{fno_ensemble_rbc1_forward.21} parent=11 // pred_check_branch
        %165 = sbr.rel (%p163) target = $region16
      $region15: #{fno_ensemble_rbc1_forward.21} parent=11 // pred_region
        _
      $region16: #{fno_ensemble_rbc1_forward.21} parent=11 // pred_fallthru
        _
      // Predicated region
      $region17: #{fno_ensemble_rbc1_forward.21} parent=11 // pred_check
        %p166 = pneg %p120
      $region18: #{fno_ensemble_rbc1_forward.21} parent=11 // pred_check_branch
        %168 = sbr.rel (%p166) target = $region20
      $region19: #{fno_ensemble_rbc1_forward.21} parent=11 // pred_region
        _
      $region20: #{fno_ensemble_rbc1_forward.21} parent=11 // pred_fallthru
        _
    $region12: #{fno_ensemble_rbc1_forward.21} parent=5 // pred_fallthru
      _
    %p169 = scmp.lt.s32.totalorder %s10, 2
    // Predicated region
    $region21: #{fno_ensemble_rbc1_forward.21} parent=5 // pred_check
      %p170 = pneg %p169
    $region22: #{fno_ensemble_rbc1_forward.21} parent=5 // pred_check_branch
      %172 = sbr.rel (%p170) target = $region24
    $region23: #{fno_ensemble_rbc1_forward.21} parent=5 // pred_region
      // Predicated region
      $region25: #{fno_ensemble_rbc1_forward.21} parent=23 // pred_check
        %p173 = pneg %p44
      $region26: #{fno_ensemble_rbc1_forward.21} parent=23 // pred_check_branch
        %175 = sbr.rel (%p173) target = $region28
      $region27: #{fno_ensemble_rbc1_forward.21} parent=23 // pred_region
        %s176 = smul.u32 2, %s18
        %p177 = scmp.lt.s32.totalorder %s17, 1
        %s178 = scalar_select %p177, %s17, 1
        %p179 = scmp.lt.s32.totalorder %s176, 1
        %s180 = scalar_select %p179, %s176, 1
        %s181 = smul.addr %s178, 2
        %s182 = sadd.s32 %s180, %s181
        %s183 = smul.addr %s182, 8
        %s184 = scalar_lea.vmem %s0, %s183
        %s185 = smul.u32 2, %s18
      $region28: #{fno_ensemble_rbc1_forward.21} parent=23 // pred_fallthru
        _
      // Predicated region
      $region29: #{fno_ensemble_rbc1_forward.21} parent=23 // pred_check
        %p186 = pneg %p72
      $region30: #{fno_ensemble_rbc1_forward.21} parent=23 // pred_check_branch
        %188 = sbr.rel (%p186) target = $region32
      $region31: #{fno_ensemble_rbc1_forward.21} parent=23 // pred_region
        %s189 = smul.u32 2, %s18
        %p190 = scmp.lt.s32.totalorder %s17, 1
        %s191 = scalar_select %p190, %s17, 1
        %p192 = scmp.lt.s32.totalorder %s189, 1
        %s193 = scalar_select %p192, %s189, 1
        %s194 = smul.addr %s191, 2
        %s195 = sadd.s32 %s193, %s194
        %s196 = smul.addr %s195, 8
        %s197 = scalar_lea.vmem %s1, %s196
        %s198 = smul.u32 2, %s18
      $region32: #{fno_ensemble_rbc1_forward.21} parent=23 // pred_fallthru
        _
    $region24: #{fno_ensemble_rbc1_forward.21} parent=5 // pred_fallthru
      _
    %p199 = scmp.le.s32.totalorder 1, %s10
    %p200 = scmp.lt.s32.totalorder %s10, 3
    %p201 = pnand %p199, %p200
    %p202 = pneg %p201
    // Predicated region
    $region33: #{fno_ensemble_rbc1_forward.21} parent=5 // pred_check
      _
    $region34: #{fno_ensemble_rbc1_forward.21} parent=5 // pred_check_branch
      %204 = sbr.rel (%p201) target = $region36
    $region35: #{fno_ensemble_rbc1_forward.21} parent=5 // pred_region
      %s205 = ssub.s32 %s10, 1
      %s206 = smul.u32 2, %s20
      %p207 = scmp.lt.s32.totalorder %s19, 1
      %s208 = scalar_select %p207, %s19, 1
      %p209 = scmp.lt.s32.totalorder %s206, 1
      %s210 = scalar_select %p209, %s206, 1
      %s211 = smul.addr %s208, 2
      %s212 = sadd.s32 %s210, %s211
      %s213 = smul.addr %s212, 8
      %s214 = scalar_lea.vmem %s0, %s213
      %p215 = pneg %p50
      %p216 = pneg %p47
      %s217 = smul.u32 2, %s20
      %p218 = scmp.lt.s32.totalorder %s19, 1
      %s219 = scalar_select %p218, %s19, 1
      %p220 = scmp.lt.s32.totalorder %s217, 1
      %s221 = scalar_select %p220, %s217, 1
      %s222 = smul.addr %s219, 2
      %s223 = sadd.s32 %s221, %s222
      %s224 = smul.addr %s223, 8
      %s225 = scalar_lea.vmem %s1, %s224
      %p226 = pneg %p78
      %p227 = pneg %p75
      %p228 = pneg %p99
      %p229 = pneg %p96
      %p230 = pneg %p120
      %p231 = pneg %p117
      %p232 = pneg %p148
      %p233 = pneg %p145
      %s234 = smul.u32 2, %s20
      %p235 = scmp.lt.s32.totalorder %s19, 1
      %s236 = scalar_select %p235, %s19, 1
      %p237 = scmp.lt.s32.totalorder %s234, 1
      %s238 = scalar_select %p237, %s234, 1
      %s239 = smul.addr %s236, 2
      %s240 = sadd.s32 %s238, %s239
      %s241 = smul.addr %s240, 8
      %s242 = scalar_lea.vmem %s4, %s241
      %s243 = smul.u32 2, %s20
      %p244 = scmp.lt.s32.totalorder %s19, 1
      %s245 = scalar_select %p244, %s19, 1
      %p246 = scmp.lt.s32.totalorder %s243, 1
      %s247 = scalar_select %p246, %s243, 1
      %s248 = smul.addr %s245, 2
      %s249 = sadd.s32 %s247, %s248
      %s250 = smul.addr %s249, 8
      %s251 = scalar_lea.vmem %s0, %s250
      %s252 = smul.u32 2, %s20
      %s253 = smul.u32 2, %s20
      %p254 = scmp.lt.s32.totalorder %s19, 1
      %s255 = scalar_select %p254, %s19, 1
      %p256 = scmp.lt.s32.totalorder %s253, 1
      %s257 = scalar_select %p256, %s253, 1
      %s258 = smul.addr %s255, 2
      %s259 = sadd.s32 %s257, %s258
      %s260 = smul.addr %s259, 8
      %s261 = scalar_lea.vmem %s1, %s260
      %s262 = smul.u32 2, %s20
      %s263 = smul.u32 2, %s20
      %p264 = scmp.lt.s32.totalorder %s19, 1
      %s265 = scalar_select %p264, %s19, 1
      %p266 = scmp.lt.s32.totalorder %s263, 1
      %s267 = scalar_select %p266, %s263, 1
      %s268 = smul.addr %s265, 2
      %s269 = sadd.s32 %s267, %s268
      %s270 = smul.addr %s269, 8
      %s271 = scalar_lea.vmem %s4, %s270
      %s272 = smul.u32 2, %s20
      %v273 = vld [vmem:[%s2] sm:$0xff]
      %v274 = vld [vmem:[%s251] sm:$0xff]
      %v275 = vld [vmem:[%s251 + $0x8] sm:$0xff]
      %v276 = vld [vmem:[%s3] sm:$0xff]
      %278 = vset.pattern.permute.xlu0 0
      %279 = vperm.xlu0 %278, %v276
      %v280 = vpop.permute.xlu0 %279
      %vm282 = vcmask 64512
      %v284 = vsel %vm282, %v273, 0
      %286 = vmatprep.subr.mxu0 0.0
      %287 = vmatpush1.msra.mxu0 0.0
      %288 = vmatprep.subr.mxu0 0.0
      %289 = vmatpush1.msra.mxu0 0.0
      %290 = vmatprep.subr.mxu0 0.0
      %291 = vmatpush1.msra.mxu0 0.0
      %292 = vmatprep.subr.mxu0 0.0
      %293 = vmatpush1.msra.mxu0 0.0
      %294 = vmatprep.subr.mxu0 0.0
      %295 = vmatpush1.msra.mxu0 0.0
      %296 = vmatprep.subr.mxu0 0.0
      %297 = vmatpush1.msra.mxu0 0.0
      %298 = vmatprep.subr.mxu0 0.0
      %299 = vmatpush1.msra.mxu0 0.0
      %300 = vmatprep.subr.mxu0 0.0
      %301 = vmatpush1.msra.mxu0 0.0
      %302 = vmatprep.subr.mxu0 0.0
      %303 = vmatpush1.msra.mxu0 0.0
      %304 = vmatprep.subr.mxu0 0.0
      %305 = vmatpush1.msra.mxu0 0.0
      %306 = vmatprep.subr.mxu0 0.0
      %307 = vmatpush1.msra.mxu0 0.0
      %308 = vmatprep.subr.mxu0 0.0
      %309 = vmatpush1.msra.mxu0 0.0
      %310 = vmatprep.subr.mxu0 0.0
      %311 = vmatpush1.msra.mxu0 0.0
      %312 = vmatprep.subr.mxu0 0.0
      %313 = vmatpush1.msra.mxu0 0.0
      %314 = vmatprep.subr.mxu0 0.0
      %315 = vmatpush1.msra.mxu0 0.0
      %316 = vmatprep.subr.mxu0 %v275
      %317 = vmatpush1.msra.mxu0 %v274
      %318 = vmatprep.subr.mxu0 0.0
      %319 = vmatpush2.msra.mxu0 0.0
      %320 = vmatprep.subr.mxu0 0.0
      %321 = vmatpush2.msra.mxu0 0.0
      %322 = vmatprep.subr.mxu0 0.0
      %323 = vmatpush2.msra.mxu0 0.0
      %324 = vmatprep.subr.mxu0 0.0
      %325 = vmatpush2.msra.mxu0 0.0
      %326 = vmatprep.subr.mxu0 0.0
      %327 = vmatpush2.msra.mxu0 0.0
      %328 = vmatprep.subr.mxu0 0.0
      %329 = vmatpush2.msra.mxu0 0.0
      %330 = vmatprep.subr.mxu0 0.0
      %331 = vmatpush2.msra.mxu0 0.0
      %332 = vmatprep.subr.mxu0 0.0
      %333 = vmatpush2.msra.mxu0 0.0
      %334 = vmatprep.subr.mxu0 0.0
      %335 = vmatpush2.msra.mxu0 0.0
      %336 = vmatprep.subr.mxu0 0.0
      %337 = vmatpush2.msra.mxu0 0.0
      %338 = vmatprep.subr.mxu0 0.0
      %339 = vmatpush2.msra.mxu0 0.0
      %340 = vmatprep.subr.mxu0 0.0
      %341 = vmatpush2.msra.mxu0 0.0
      %342 = vmatprep.subr.mxu0 0.0
      %343 = vmatpush2.msra.mxu0 0.0
      %344 = vmatprep.subr.mxu0 0.0
      %345 = vmatpush2.msra.mxu0 0.0
      %346 = vmatprep.subr.mxu0 0.0
      %347 = vmatpush2.msra.mxu0 0.0
      %348 = vmatprep.subr.mxu0 0.0
      %349 = vmatpush2.msra.mxu0 0.0
      %350 = vmatprep.mubr.f32.mxu0 0.0
      %351 = vmatmul.mubr.f32.gmra.mxu0 %v284
      %v352 = vpop.f32.mrf.mxu0
      %v353 = vadd.f32 %v280, %v352
      %v354 = vpop.f32.mrf.mxu0
      %v355 = vadd.f32 %v280, %v354
      %356 = vdwg.mxu0
      %v357 = vld [vmem:[%s261] sm:$0xff]
      %v358 = vld [vmem:[%s261 + $0x8] sm:$0xff]
      %v359 = vadd.f32 %v353, %v357
      %v360 = vadd.f32 %v355, %v358
      %v361 = vmul.f32 %v359, 0.5
      %v362 = vmul.f32 %v360, 0.5
      %v363 = vmul.f32 %v359, 0.70710677
      %v364 = vmul.f32 %v360, 0.70710677
      %v365 = vand.u32 2147483647, %v363
      %v366 = vand.u32 2147483647, %v364
      %v367 = vmul.f32 %v365, 0.3275911
      %v368 = vmul.f32 %v366, 0.3275911
      %v369 = vadd.f32 %v367, 1.0
      %v370 = vadd.f32 %v368, 1.0
      %v371 = vrcp.pop %v369
      %v372 = vrcp.pop %v370
      %v373 = vmul.f32 %v371, 1.0614054
      %v374 = vmul.f32 %v372, 1.0614054
      %v375 = vadd.f32 %v373, -1.4531521
      %v376 = vadd.f32 %v374, -1.4531521
      %v377 = vmul.f32 %v371, %v375
      %v378 = vmul.f32 %v372, %v376
      %v379 = vadd.f32 %v377, 1.4214138
      %v380 = vadd.f32 %v378, 1.4214138
      %v381 = vmul.f32 %v371, %v379
      %v382 = vmul.f32 %v372, %v380
      %v383 = vadd.f32 %v381, -0.28449672
      %v384 = vadd.f32 %v382, -0.28449672
      %v385 = vmul.f32 %v371, %v383
      %v386 = vmul.f32 %v372, %v384
      %v387 = vadd.f32 %v385, 0.2548296
      %v388 = vadd.f32 %v386, 0.2548296
      %v389 = vmul.f32 %v371, %v387
      %v390 = vmul.f32 %v372, %v388
      %v391 = vsub.f32 0.0, %v365
      %v392 = vsub.f32 0.0, %v366
      %v393 = vmul.f32 %v391, %v365
      %v394 = vmul.f32 %v392, %v366
      %v395 = vmul.f32 %v393, 1.442695
      %v396 = vpow.pop %v395
      %v397 = vmul.f32 %v394, 1.442695
      %v398 = vpow.pop %v397
      %v399 = vmul.f32 %v389, %v396
      %v400 = vmul.f32 %v390, %v398
      %v401 = vsub.f32 1.0, %v399
      %v402 = vsub.f32 1.0, %v400
      %vm403 = vcmp.lt.f32.partialorder %v363, 0.0
      %vm404 = vcmp.lt.f32.partialorder %v364, 0.0
      %v405 = vsub.f32 0.0, %v401
      %v406 = vsub.f32 0.0, %v402
      %v407 = vsel %vm403, %v405, %v401
      %v408 = vsel %vm404, %v406, %v402
      %v409 = vadd.f32 %v407, 1.0
      %v410 = vadd.f32 %v408, 1.0
      %v411 = vmul.f32 %v361, %v409
      %v412 = vmul.f32 %v362, %v410
      %413 = vst [vmem:[%s271] sm:$0xff] %v411
      %414 = vst [vmem:[%s271 + $0x8] sm:$0xff] %v412
      %s415 = smul.u32 2, %s20
      %p416 = scmp.lt.s32.totalorder %s19, 1
      %s417 = scalar_select %p416, %s19, 1
      %p418 = scmp.lt.s32.totalorder %s415, 1
      %s419 = scalar_select %p418, %s415, 1
      %s420 = smul.addr %s417, 2
      %s421 = sadd.s32 %s419, %s420
      %s422 = smul.addr %s421, 8
      %s423 = scalar_lea.vmem %s4, %s422
      // Predicated region
      $region37: #{fno_ensemble_rbc1_forward.21} parent=35 // pred_check
        %p424 = pneg %p145
      $region38: #{fno_ensemble_rbc1_forward.21} parent=35 // pred_check_branch
        %426 = sbr.rel (%p424) target = $region40
      $region39: #{fno_ensemble_rbc1_forward.21} parent=35 // pred_region
        %s427 = smul.u32 2, %s20
      $region40: #{fno_ensemble_rbc1_forward.21} parent=35 // pred_fallthru
        _
    $region36: #{fno_ensemble_rbc1_forward.21} parent=5 // pred_fallthru
      _
    %p428 = scmp.le.s32.totalorder 2, %s10
    // Predicated region
    $region41: #{fno_ensemble_rbc1_forward.21} parent=5 // pred_check
      %p429 = pneg %p428
    $region42: #{fno_ensemble_rbc1_forward.21} parent=5 // pred_check_branch
      %431 = sbr.rel (%p429) target = $region44
    $region43: #{fno_ensemble_rbc1_forward.21} parent=5 // pred_region
      %s432 = ssub.s32 %s10, 2
      // Predicated region
      $region45: #{fno_ensemble_rbc1_forward.21} parent=43 // pred_check
        %p433 = pneg %p151
      $region46: #{fno_ensemble_rbc1_forward.21} parent=43 // pred_check_branch
        %435 = sbr.rel (%p433) target = $region48
      $region47: #{fno_ensemble_rbc1_forward.21} parent=43 // pred_region
        %s436 = smul.u32 2, %s22
        %p437 = scmp.lt.s32.totalorder %s21, 1
        %s438 = scalar_select %p437, %s21, 1
        %p439 = scmp.lt.s32.totalorder %s436, 1
        %s440 = scalar_select %p439, %s436, 1
        %s441 = smul.addr %s438, 2
        %s442 = sadd.s32 %s440, %s441
        %s443 = smul.addr %s442, 8
        %s444 = scalar_lea.vmem %s4, %s443
      $region48: #{fno_ensemble_rbc1_forward.21} parent=43 // pred_fallthru
        _
    $region44: #{fno_ensemble_rbc1_forward.21} parent=5 // pred_fallthru
      _
  $region6: #{fno_ensemble_rbc1_forward.21} parent=0 // loop_footer
    %s14 = sadd.s32 1, %s10
  $region7: #{fno_ensemble_rbc1_forward.21} parent=0 // loop_footer_branch
    %9 = sbr.rel target = $region3
  $region8: #{fno_ensemble_rbc1_forward.21} parent=0 // loop_exit
    _

// kernel: fno_ensemble_rbc1_forward.23
$region0: #{fno_ensemble_rbc1_forward.23}
  #allocation0 [shape = 'u32[]', space=smem, size = 0x4, offset = 0x4, fixed_abs, tag = 'smem constant byte address 0x4 - core index']
  #allocation1 [shape = 'u32[144,128]{1,0:T(1,128)}', space=vmem, size = 0x12000, scoped, tag = 'internal scratch']
  %s0 = inlined_call_operand.vmem [shape: f32[2,8,256], index: 0, kind: input, shape index: {}]
  %s1 = inlined_call_operand.vmem [shape: f32[2,8,256], index: 1, kind: input, shape index: {}]
  %s2 = inlined_call_operand.vmem [shape: f32[8,8], index: 2, kind: input, shape index: {}]
  %s3 = inlined_call_operand.vmem [shape: f32[8,1], index: 3, kind: input, shape index: {}]
  %s4 = inlined_call_operand.vmem [shape: f32[2,8,256], index: 4, kind: output, shape index: {}]
  %s5 = sld [smem:[#allocation0]]
  $region49: #{fno_ensemble_rbc1_forward.23} parent=0
    _
  %s7 = ssub.s32 1, %s5
  %s8 = scalar_select 0, %s7, %s5
  loop: start=0, step=1, limit=4
  $region2: #{fno_ensemble_rbc1_forward.23} parent=0 // loop_pre_header
    _
  $region3: #{fno_ensemble_rbc1_forward.23} parent=0 // loop_header
    %s10 = sphi 0, %s14
    %p11 = scmp.ge.s32.totalorder %s10, 4
    %s17 = sphi 0, %s29
    %s18 = sphi 0, %s25
    %s19 = sphi 0, %s17
    %s20 = sphi 0, %s18
    %s21 = sphi 0, %s19
    %s22 = sphi 0, %s20
    %s34 = sphi 0, %s36
    %s37 = sphi 0, %s34
    %s38 = sphi 0, %s37
    %s54 = sphi 0, %s38
    %s62 = sphi 0, %s64
    %s65 = sphi 0, %s62
    %s66 = sphi 0, %s65
    %s82 = sphi 0, %s66
    %s86 = sphi 0, %s86
    %s88 = sphi 0, %s86
    %s89 = sphi 0, %s88
    %s103 = sphi 0, %s89
    %s107 = sphi 0, %s107
    %s109 = sphi 0, %s107
    %s110 = sphi 0, %s109
    %s124 = sphi 0, %s110
    %s132 = sphi 0, %s134
    %s135 = sphi 0, %s132
    %s136 = sphi 0, %s135
    %s152 = sphi 0, %s136
  $region4: #{fno_ensemble_rbc1_forward.23} parent=0 // loop_header_branch
    %13 = sbr.rel (%p11) target = $region8
  $region5: #{fno_ensemble_rbc1_forward.23} parent=0 // loop_body
    %s15 = ssub.s32 %s10, 1
    %s16 = ssub.s32 %s10, 2
    %s23 = sadd.s32 1, %s18
    %p24 = scmp.ge.s32.totalorder %s23, 1
    %s25 = scalar_select %p24, 0, %s23
    %s26 = sadd.s32 1, %s17
    %s27 = scalar_select %p24, %s26, %s17
    %p28 = scmp.ge.s32.totalorder %s27, 2
    %s29 = scalar_select %p28, 0, %s27
    %s30 = ssub.s32 %s17, %s29
    %s31 = ssub.s32 %s18, %s25
    %s32 = sor.u32 %s30, %s31
    %p33 = scmp.eq.s32.totalorder %s32, 0
    %s35 = sadd.s32 %s34, 1
    %s36 = scalar_select %p33, %s34, %s35
    %p39 = pneg %p33
    %p40 = scmp.eq.s32.totalorder %s10, 1
    %p41 = por %p39, %p40
    %p42 = scmp.ne.s32.totalorder %s34, %s37
    %p43 = scmp.eq.s32.totalorder %s10, 0
    %p44 = por %p42, %p43
    %p45 = scmp.ne.s32.totalorder %s34, %s37
    %p46 = scmp.eq.s32.totalorder %s15, 1
    %p47 = por %p45, %p46
    %p48 = scmp.ne.s32.totalorder %s37, %s38
    %p49 = scmp.eq.s32.totalorder %s15, 0
    %p50 = por %p48, %p49
    %p51 = scmp.ne.s32.totalorder %s37, %s38
    %p52 = scmp.eq.s32.totalorder %s16, 1
    %p53 = por %p51, %p52
    %p55 = scmp.ne.s32.totalorder %s38, %s54
    %p56 = scmp.eq.s32.totalorder %s16, 0
    %p57 = por %p55, %p56
    %s58 = ssub.s32 %s17, %s29
    %s59 = ssub.s32 %s18, %s25
    %s60 = sor.u32 %s58, %s59
    %p61 = scmp.eq.s32.totalorder %s60, 0
    %s63 = sadd.s32 %s62, 1
    %s64 = scalar_select %p61, %s62, %s63
    %p67 = pneg %p61
    %p68 = scmp.eq.s32.totalorder %s10, 1
    %p69 = por %p67, %p68
    %p70 = scmp.ne.s32.totalorder %s62, %s65
    %p71 = scmp.eq.s32.totalorder %s10, 0
    %p72 = por %p70, %p71
    %p73 = scmp.ne.s32.totalorder %s62, %s65
    %p74 = scmp.eq.s32.totalorder %s15, 1
    %p75 = por %p73, %p74
    %p76 = scmp.ne.s32.totalorder %s65, %s66
    %p77 = scmp.eq.s32.totalorder %s15, 0
    %p78 = por %p76, %p77
    %p79 = scmp.ne.s32.totalorder %s65, %s66
    %p80 = scmp.eq.s32.totalorder %s16, 1
    %p81 = por %p79, %p80
    %p83 = scmp.ne.s32.totalorder %s66, %s82
    %p84 = scmp.eq.s32.totalorder %s16, 0
    %p85 = por %p83, %p84
    %s87 = sadd.s32 %s86, 1
    %p90 = scmp.eq.s32.totalorder %s10, 1
    %p91 = scmp.ne.s32.totalorder %s86, %s88
    %p92 = scmp.eq.s32.totalorder %s10, 0
    %p93 = por %p91, %p92
    %p94 = scmp.ne.s32.totalorder %s86, %s88
    %p95 = scmp.eq.s32.totalorder %s15, 1
    %p96 = por %p94, %p95
    %p97 = scmp.ne.s32.totalorder %s88, %s89
    %p98 = scmp.eq.s32.totalorder %s15, 0
    %p99 = por %p97, %p98
    %p100 = scmp.ne.s32.totalorder %s88, %s89
    %p101 = scmp.eq.s32.totalorder %s16, 1
    %p102 = por %p100, %p101
    %p104 = scmp.ne.s32.totalorder %s89, %s103
    %p105 = scmp.eq.s32.totalorder %s16, 0
    %p106 = por %p104, %p105
    %s108 = sadd.s32 %s107, 1
    %p111 = scmp.eq.s32.totalorder %s10, 1
    %p112 = scmp.ne.s32.totalorder %s107, %s109
    %p113 = scmp.eq.s32.totalorder %s10, 0
    %p114 = por %p112, %p113
    %p115 = scmp.ne.s32.totalorder %s107, %s109
    %p116 = scmp.eq.s32.totalorder %s15, 1
    %p117 = por %p115, %p116
    %p118 = scmp.ne.s32.totalorder %s109, %s110
    %p119 = scmp.eq.s32.totalorder %s15, 0
    %p120 = por %p118, %p119
    %p121 = scmp.ne.s32.totalorder %s109, %s110
    %p122 = scmp.eq.s32.totalorder %s16, 1
    %p123 = por %p121, %p122
    %p125 = scmp.ne.s32.totalorder %s110, %s124
    %p126 = scmp.eq.s32.totalorder %s16, 0
    %p127 = por %p125, %p126
    %s128 = ssub.s32 %s17, %s29
    %s129 = ssub.s32 %s18, %s25
    %s130 = sor.u32 %s128, %s129
    %p131 = scmp.eq.s32.totalorder %s130, 0
    %s133 = sadd.s32 %s132, 1
    %s134 = scalar_select %p131, %s132, %s133
    %p137 = pneg %p131
    %p138 = scmp.eq.s32.totalorder %s10, 1
    %p139 = por %p137, %p138
    %p140 = scmp.ne.s32.totalorder %s132, %s135
    %p141 = scmp.eq.s32.totalorder %s10, 0
    %p142 = por %p140, %p141
    %p143 = scmp.ne.s32.totalorder %s132, %s135
    %p144 = scmp.eq.s32.totalorder %s15, 1
    %p145 = por %p143, %p144
    %p146 = scmp.ne.s32.totalorder %s135, %s136
    %p147 = scmp.eq.s32.totalorder %s15, 0
    %p148 = por %p146, %p147
    %p149 = scmp.ne.s32.totalorder %s135, %s136
    %p150 = scmp.eq.s32.totalorder %s16, 1
    %p151 = por %p149, %p150
    %p153 = scmp.ne.s32.totalorder %s136, %s152
    %p154 = scmp.eq.s32.totalorder %s16, 0
    %p155 = por %p153, %p154
    %p156 = scmp.le.s32.totalorder 1, %s10
    %p157 = scmp.lt.s32.totalorder %s10, 3
    %p158 = pnand %p156, %p157
    %p159 = pneg %p158
    // Predicated region
    $region9: #{fno_ensemble_rbc1_forward.23} parent=5 // pred_check
      _
    $region10: #{fno_ensemble_rbc1_forward.23} parent=5 // pred_check_branch
      %161 = sbr.rel (%p158) target = $region12
    $region11: #{fno_ensemble_rbc1_forward.23} parent=5 // pred_region
      %s162 = ssub.s32 %s10, 1
      // Predicated region
      $region13: #{fno_ensemble_rbc1_forward.23} parent=11 // pred_check
        %p163 = pneg %p99
      $region14: #{fno_ensemble_rbc1_forward.23} parent=11 // pred_check_branch
        %165 = sbr.rel (%p163) target = $region16
      $region15: #{fno_ensemble_rbc1_forward.23} parent=11 // pred_region
        _
      $region16: #{fno_ensemble_rbc1_forward.23} parent=11 // pred_fallthru
        _
      // Predicated region
      $region17: #{fno_ensemble_rbc1_forward.23} parent=11 // pred_check
        %p166 = pneg %p120
      $region18: #{fno_ensemble_rbc1_forward.23} parent=11 // pred_check_branch
        %168 = sbr.rel (%p166) target = $region20
      $region19: #{fno_ensemble_rbc1_forward.23} parent=11 // pred_region
        _
      $region20: #{fno_ensemble_rbc1_forward.23} parent=11 // pred_fallthru
        _
    $region12: #{fno_ensemble_rbc1_forward.23} parent=5 // pred_fallthru
      _
    %p169 = scmp.lt.s32.totalorder %s10, 2
    // Predicated region
    $region21: #{fno_ensemble_rbc1_forward.23} parent=5 // pred_check
      %p170 = pneg %p169
    $region22: #{fno_ensemble_rbc1_forward.23} parent=5 // pred_check_branch
      %172 = sbr.rel (%p170) target = $region24
    $region23: #{fno_ensemble_rbc1_forward.23} parent=5 // pred_region
      // Predicated region
      $region25: #{fno_ensemble_rbc1_forward.23} parent=23 // pred_check
        %p173 = pneg %p44
      $region26: #{fno_ensemble_rbc1_forward.23} parent=23 // pred_check_branch
        %175 = sbr.rel (%p173) target = $region28
      $region27: #{fno_ensemble_rbc1_forward.23} parent=23 // pred_region
        %s176 = smul.u32 2, %s18
        %p177 = scmp.lt.s32.totalorder %s17, 1
        %s178 = scalar_select %p177, %s17, 1
        %p179 = scmp.lt.s32.totalorder %s176, 1
        %s180 = scalar_select %p179, %s176, 1
        %s181 = smul.addr %s178, 2
        %s182 = sadd.s32 %s180, %s181
        %s183 = smul.addr %s182, 8
        %s184 = scalar_lea.vmem %s0, %s183
        %s185 = smul.u32 2, %s18
      $region28: #{fno_ensemble_rbc1_forward.23} parent=23 // pred_fallthru
        _
      // Predicated region
      $region29: #{fno_ensemble_rbc1_forward.23} parent=23 // pred_check
        %p186 = pneg %p72
      $region30: #{fno_ensemble_rbc1_forward.23} parent=23 // pred_check_branch
        %188 = sbr.rel (%p186) target = $region32
      $region31: #{fno_ensemble_rbc1_forward.23} parent=23 // pred_region
        %s189 = smul.u32 2, %s18
        %p190 = scmp.lt.s32.totalorder %s17, 1
        %s191 = scalar_select %p190, %s17, 1
        %p192 = scmp.lt.s32.totalorder %s189, 1
        %s193 = scalar_select %p192, %s189, 1
        %s194 = smul.addr %s191, 2
        %s195 = sadd.s32 %s193, %s194
        %s196 = smul.addr %s195, 8
        %s197 = scalar_lea.vmem %s1, %s196
        %s198 = smul.u32 2, %s18
      $region32: #{fno_ensemble_rbc1_forward.23} parent=23 // pred_fallthru
        _
    $region24: #{fno_ensemble_rbc1_forward.23} parent=5 // pred_fallthru
      _
    %p199 = scmp.le.s32.totalorder 1, %s10
    %p200 = scmp.lt.s32.totalorder %s10, 3
    %p201 = pnand %p199, %p200
    %p202 = pneg %p201
    // Predicated region
    $region33: #{fno_ensemble_rbc1_forward.23} parent=5 // pred_check
      _
    $region34: #{fno_ensemble_rbc1_forward.23} parent=5 // pred_check_branch
      %204 = sbr.rel (%p201) target = $region36
    $region35: #{fno_ensemble_rbc1_forward.23} parent=5 // pred_region
      %s205 = ssub.s32 %s10, 1
      %s206 = smul.u32 2, %s20
      %p207 = scmp.lt.s32.totalorder %s19, 1
      %s208 = scalar_select %p207, %s19, 1
      %p209 = scmp.lt.s32.totalorder %s206, 1
      %s210 = scalar_select %p209, %s206, 1
      %s211 = smul.addr %s208, 2
      %s212 = sadd.s32 %s210, %s211
      %s213 = smul.addr %s212, 8
      %s214 = scalar_lea.vmem %s0, %s213
      %p215 = pneg %p50
      %p216 = pneg %p47
      %s217 = smul.u32 2, %s20
      %p218 = scmp.lt.s32.totalorder %s19, 1
      %s219 = scalar_select %p218, %s19, 1
      %p220 = scmp.lt.s32.totalorder %s217, 1
      %s221 = scalar_select %p220, %s217, 1
      %s222 = smul.addr %s219, 2
      %s223 = sadd.s32 %s221, %s222
      %s224 = smul.addr %s223, 8
      %s225 = scalar_lea.vmem %s1, %s224
      %p226 = pneg %p78
      %p227 = pneg %p75
      %p228 = pneg %p99
      %p229 = pneg %p96
      %p230 = pneg %p120
      %p231 = pneg %p117
      %p232 = pneg %p148
      %p233 = pneg %p145
      %s234 = smul.u32 2, %s20
      %p235 = scmp.lt.s32.totalorder %s19, 1
      %s236 = scalar_select %p235, %s19, 1
      %p237 = scmp.lt.s32.totalorder %s234, 1
      %s238 = scalar_select %p237, %s234, 1
      %s239 = smul.addr %s236, 2
      %s240 = sadd.s32 %s238, %s239
      %s241 = smul.addr %s240, 8
      %s242 = scalar_lea.vmem %s4, %s241
      %s243 = smul.u32 2, %s20
      %p244 = scmp.lt.s32.totalorder %s19, 1
      %s245 = scalar_select %p244, %s19, 1
      %p246 = scmp.lt.s32.totalorder %s243, 1
      %s247 = scalar_select %p246, %s243, 1
      %s248 = smul.addr %s245, 2
      %s249 = sadd.s32 %s247, %s248
      %s250 = smul.addr %s249, 8
      %s251 = scalar_lea.vmem %s0, %s250
      %s252 = smul.u32 2, %s20
      %s253 = smul.u32 2, %s20
      %p254 = scmp.lt.s32.totalorder %s19, 1
      %s255 = scalar_select %p254, %s19, 1
      %p256 = scmp.lt.s32.totalorder %s253, 1
      %s257 = scalar_select %p256, %s253, 1
      %s258 = smul.addr %s255, 2
      %s259 = sadd.s32 %s257, %s258
      %s260 = smul.addr %s259, 8
      %s261 = scalar_lea.vmem %s1, %s260
      %s262 = smul.u32 2, %s20
      %s263 = smul.u32 2, %s20
      %p264 = scmp.lt.s32.totalorder %s19, 1
      %s265 = scalar_select %p264, %s19, 1
      %p266 = scmp.lt.s32.totalorder %s263, 1
      %s267 = scalar_select %p266, %s263, 1
      %s268 = smul.addr %s265, 2
      %s269 = sadd.s32 %s267, %s268
      %s270 = smul.addr %s269, 8
      %s271 = scalar_lea.vmem %s4, %s270
      %s272 = smul.u32 2, %s20
      %v273 = vld [vmem:[%s2] sm:$0xff]
      %v274 = vld [vmem:[%s251] sm:$0xff]
      %v275 = vld [vmem:[%s251 + $0x8] sm:$0xff]
      %v276 = vld [vmem:[%s3] sm:$0xff]
      %278 = vset.pattern.permute.xlu0 0
      %279 = vperm.xlu0 %278, %v276
      %v280 = vpop.permute.xlu0 %279
      %vm282 = vcmask 64512
      %v284 = vsel %vm282, %v273, 0
      %286 = vmatprep.subr.mxu0 0.0
      %287 = vmatpush1.msra.mxu0 0.0
      %288 = vmatprep.subr.mxu0 0.0
      %289 = vmatpush1.msra.mxu0 0.0
      %290 = vmatprep.subr.mxu0 0.0
      %291 = vmatpush1.msra.mxu0 0.0
      %292 = vmatprep.subr.mxu0 0.0
      %293 = vmatpush1.msra.mxu0 0.0
      %294 = vmatprep.subr.mxu0 0.0
      %295 = vmatpush1.msra.mxu0 0.0
      %296 = vmatprep.subr.mxu0 0.0
      %297 = vmatpush1.msra.mxu0 0.0
      %298 = vmatprep.subr.mxu0 0.0
      %299 = vmatpush1.msra.mxu0 0.0
      %300 = vmatprep.subr.mxu0 0.0
      %301 = vmatpush1.msra.mxu0 0.0
      %302 = vmatprep.subr.mxu0 0.0
      %303 = vmatpush1.msra.mxu0 0.0
      %304 = vmatprep.subr.mxu0 0.0
      %305 = vmatpush1.msra.mxu0 0.0
      %306 = vmatprep.subr.mxu0 0.0
      %307 = vmatpush1.msra.mxu0 0.0
      %308 = vmatprep.subr.mxu0 0.0
      %309 = vmatpush1.msra.mxu0 0.0
      %310 = vmatprep.subr.mxu0 0.0
      %311 = vmatpush1.msra.mxu0 0.0
      %312 = vmatprep.subr.mxu0 0.0
      %313 = vmatpush1.msra.mxu0 0.0
      %314 = vmatprep.subr.mxu0 0.0
      %315 = vmatpush1.msra.mxu0 0.0
      %316 = vmatprep.subr.mxu0 %v275
      %317 = vmatpush1.msra.mxu0 %v274
      %318 = vmatprep.subr.mxu0 0.0
      %319 = vmatpush2.msra.mxu0 0.0
      %320 = vmatprep.subr.mxu0 0.0
      %321 = vmatpush2.msra.mxu0 0.0
      %322 = vmatprep.subr.mxu0 0.0
      %323 = vmatpush2.msra.mxu0 0.0
      %324 = vmatprep.subr.mxu0 0.0
      %325 = vmatpush2.msra.mxu0 0.0
      %326 = vmatprep.subr.mxu0 0.0
      %327 = vmatpush2.msra.mxu0 0.0
      %328 = vmatprep.subr.mxu0 0.0
      %329 = vmatpush2.msra.mxu0 0.0
      %330 = vmatprep.subr.mxu0 0.0
      %331 = vmatpush2.msra.mxu0 0.0
      %332 = vmatprep.subr.mxu0 0.0
      %333 = vmatpush2.msra.mxu0 0.0
      %334 = vmatprep.subr.mxu0 0.0
      %335 = vmatpush2.msra.mxu0 0.0
      %336 = vmatprep.subr.mxu0 0.0
      %337 = vmatpush2.msra.mxu0 0.0
      %338 = vmatprep.subr.mxu0 0.0
      %339 = vmatpush2.msra.mxu0 0.0
      %340 = vmatprep.subr.mxu0 0.0
      %341 = vmatpush2.msra.mxu0 0.0
      %342 = vmatprep.subr.mxu0 0.0
      %343 = vmatpush2.msra.mxu0 0.0
      %344 = vmatprep.subr.mxu0 0.0
      %345 = vmatpush2.msra.mxu0 0.0
      %346 = vmatprep.subr.mxu0 0.0
      %347 = vmatpush2.msra.mxu0 0.0
      %348 = vmatprep.subr.mxu0 0.0
      %349 = vmatpush2.msra.mxu0 0.0
      %350 = vmatprep.mubr.f32.mxu0 0.0
      %351 = vmatmul.mubr.f32.gmra.mxu0 %v284
      %v352 = vpop.f32.mrf.mxu0
      %v353 = vadd.f32 %v280, %v352
      %v354 = vpop.f32.mrf.mxu0
      %v355 = vadd.f32 %v280, %v354
      %356 = vdwg.mxu0
      %v357 = vld [vmem:[%s261] sm:$0xff]
      %v358 = vld [vmem:[%s261 + $0x8] sm:$0xff]
      %v359 = vadd.f32 %v353, %v357
      %v360 = vadd.f32 %v355, %v358
      %361 = vst [vmem:[%s271] sm:$0xff] %v359
      %362 = vst [vmem:[%s271 + $0x8] sm:$0xff] %v360
      %s363 = smul.u32 2, %s20
      %p364 = scmp.lt.s32.totalorder %s19, 1
      %s365 = scalar_select %p364, %s19, 1
      %p366 = scmp.lt.s32.totalorder %s363, 1
      %s367 = scalar_select %p366, %s363, 1
      %s368 = smul.addr %s365, 2
      %s369 = sadd.s32 %s367, %s368
      %s370 = smul.addr %s369, 8
      %s371 = scalar_lea.vmem %s4, %s370
      // Predicated region
      $region37: #{fno_ensemble_rbc1_forward.23} parent=35 // pred_check
        %p372 = pneg %p145
      $region38: #{fno_ensemble_rbc1_forward.23} parent=35 // pred_check_branch
        %374 = sbr.rel (%p372) target = $region40
      $region39: #{fno_ensemble_rbc1_forward.23} parent=35 // pred_region
        %s375 = smul.u32 2, %s20
      $region40: #{fno_ensemble_rbc1_forward.23} parent=35 // pred_fallthru
        _
    $region36: #{fno_ensemble_rbc1_forward.23} parent=5 // pred_fallthru
      _
    %p376 = scmp.le.s32.totalorder 2, %s10
    // Predicated region
    $region41: #{fno_ensemble_rbc1_forward.23} parent=5 // pred_check
      %p377 = pneg %p376
    $region42: #{fno_ensemble_rbc1_forward.23} parent=5 // pred_check_branch
      %379 = sbr.rel (%p377) target = $region44
    $region43: #{fno_ensemble_rbc1_forward.23} parent=5 // pred_region
      %s380 = ssub.s32 %s10, 2
      // Predicated region
      $region45: #{fno_ensemble_rbc1_forward.23} parent=43 // pred_check
        %p381 = pneg %p151
      $region46: #{fno_ensemble_rbc1_forward.23} parent=43 // pred_check_branch
        %383 = sbr.rel (%p381) target = $region48
      $region47: #{fno_ensemble_rbc1_forward.23} parent=43 // pred_region
        %s384 = smul.u32 2, %s22
        %p385 = scmp.lt.s32.totalorder %s21, 1
        %s386 = scalar_select %p385, %s21, 1
        %p387 = scmp.lt.s32.totalorder %s384, 1
        %s388 = scalar_select %p387, %s384, 1
        %s389 = smul.addr %s386, 2
        %s390 = sadd.s32 %s388, %s389
        %s391 = smul.addr %s390, 8
        %s392 = scalar_lea.vmem %s4, %s391
      $region48: #{fno_ensemble_rbc1_forward.23} parent=43 // pred_fallthru
        _
    $region44: #{fno_ensemble_rbc1_forward.23} parent=5 // pred_fallthru
      _
  $region6: #{fno_ensemble_rbc1_forward.23} parent=0 // loop_footer
    %s14 = sadd.s32 1, %s10
  $region7: #{fno_ensemble_rbc1_forward.23} parent=0 // loop_footer_branch
    %9 = sbr.rel target = $region3
  $region8: #{fno_ensemble_rbc1_forward.23} parent=0 // loop_exit
    _

// kernel: fno_ensemble_rbc1_forward.37
$region0: #{fno_ensemble_rbc1_forward.37}
  #allocation0 [shape = 'u32[]', space=smem, size = 0x4, offset = 0x4, fixed_abs, tag = 'smem constant byte address 0x4 - core index']
  #allocation1 [shape = 'u32[144,128]{1,0:T(1,128)}', space=vmem, size = 0x12000, scoped, tag = 'internal scratch']
  %s0 = inlined_call_operand.vmem [shape: f32[2,8,256], index: 0, kind: input, shape index: {}]
  %s1 = inlined_call_operand.vmem [shape: f32[128,8], index: 1, kind: input, shape index: {}]
  %s2 = inlined_call_operand.vmem [shape: f32[128,1], index: 2, kind: input, shape index: {}]
  %s3 = inlined_call_operand.vmem [shape: f32[3,128], index: 3, kind: input, shape index: {}]
  %s4 = inlined_call_operand.vmem [shape: f32[3,1], index: 4, kind: input, shape index: {}]
  %s5 = inlined_call_operand.vmem [shape: f32[2,3,256], index: 5, kind: output, shape index: {}]
  %s6 = sld [smem:[#allocation0]]
  $region53: #{fno_ensemble_rbc1_forward.37} parent=0
    _
  %s8 = ssub.s32 1, %s6
  %s9 = scalar_select 0, %s8, %s6
  loop: start=0, step=1, limit=4
  $region2: #{fno_ensemble_rbc1_forward.37} parent=0 // loop_pre_header
    _
  $region3: #{fno_ensemble_rbc1_forward.37} parent=0 // loop_header
    %s11 = sphi 0, %s15
    %p12 = scmp.ge.s32.totalorder %s11, 4
    %s18 = sphi 0, %s30
    %s19 = sphi 0, %s26
    %s20 = sphi 0, %s18
    %s21 = sphi 0, %s19
    %s22 = sphi 0, %s20
    %s23 = sphi 0, %s21
    %s35 = sphi 0, %s37
    %s38 = sphi 0, %s35
    %s39 = sphi 0, %s38
    %s55 = sphi 0, %s39
    %s59 = sphi 0, %s59
    %s61 = sphi 0, %s59
    %s62 = sphi 0, %s61
    %s76 = sphi 0, %s62
    %s80 = sphi 0, %s80
    %s82 = sphi 0, %s80
    %s83 = sphi 0, %s82
    %s97 = sphi 0, %s83
    %s101 = sphi 0, %s101
    %s103 = sphi 0, %s101
    %s104 = sphi 0, %s103
    %s118 = sphi 0, %s104
    %s122 = sphi 0, %s122
    %s124 = sphi 0, %s122
    %s125 = sphi 0, %s124
    %s139 = sphi 0, %s125
    %s147 = sphi 0, %s149
    %s150 = sphi 0, %s147
    %s151 = sphi 0, %s150
    %s167 = sphi 0, %s151
  $region4: #{fno_ensemble_rbc1_forward.37} parent=0 // loop_header_branch
    %14 = sbr.rel (%p12) target = $region8
  $region5: #{fno_ensemble_rbc1_forward.37} parent=0 // loop_body
    %s16 = ssub.s32 %s11, 1
    %s17 = ssub.s32 %s11, 2
    %s24 = sadd.s32 1, %s19
    %p25 = scmp.ge.s32.totalorder %s24, 1
    %s26 = scalar_select %p25, 0, %s24
    %s27 = sadd.s32 1, %s18
    %s28 = scalar_select %p25, %s27, %s18
    %p29 = scmp.ge.s32.totalorder %s28, 2
    %s30 = scalar_select %p29, 0, %s28
    %s31 = ssub.s32 %s18, %s30
    %s32 = ssub.s32 %s19, %s26
    %s33 = sor.u32 %s31, %s32
    %p34 = scmp.eq.s32.totalorder %s33, 0
    %s36 = sadd.s32 %s35, 1
    %s37 = scalar_select %p34, %s35, %s36
    %p40 = pneg %p34
    %p41 = scmp.eq.s32.totalorder %s11, 1
    %p42 = por %p40, %p41
    %p43 = scmp.ne.s32.totalorder %s35, %s38
    %p44 = scmp.eq.s32.totalorder %s11, 0
    %p45 = por %p43, %p44
    %p46 = scmp.ne.s32.totalorder %s35, %s38
    %p47 = scmp.eq.s32.totalorder %s16, 1
    %p48 = por %p46, %p47
    %p49 = scmp.ne.s32.totalorder %s38, %s39
    %p50 = scmp.eq.s32.totalorder %s16, 0
    %p51 = por %p49, %p50
    %p52 = scmp.ne.s32.totalorder %s38, %s39
    %p53 = scmp.eq.s32.totalorder %s17, 1
    %p54 = por %p52, %p53
    %p56 = scmp.ne.s32.totalorder %s39, %s55
    %p57 = scmp.eq.s32.totalorder %s17, 0
    %p58 = por %p56, %p57
    %s60 = sadd.s32 %s59, 1
    %p63 = scmp.eq.s32.totalorder %s11, 1
    %p64 = scmp.ne.s32.totalorder %s59, %s61
    %p65 = scmp.eq.s32.totalorder %s11, 0
    %p66 = por %p64, %p65
    %p67 = scmp.ne.s32.totalorder %s59, %s61
    %p68 = scmp.eq.s32.totalorder %s16, 1
    %p69 = por %p67, %p68
    %p70 = scmp.ne.s32.totalorder %s61, %s62
    %p71 = scmp.eq.s32.totalorder %s16, 0
    %p72 = por %p70, %p71
    %p73 = scmp.ne.s32.totalorder %s61, %s62
    %p74 = scmp.eq.s32.totalorder %s17, 1
    %p75 = por %p73, %p74
    %p77 = scmp.ne.s32.totalorder %s62, %s76
    %p78 = scmp.eq.s32.totalorder %s17, 0
    %p79 = por %p77, %p78
    %s81 = sadd.s32 %s80, 1
    %p84 = scmp.eq.s32.totalorder %s11, 1
    %p85 = scmp.ne.s32.totalorder %s80, %s82
    %p86 = scmp.eq.s32.totalorder %s11, 0
    %p87 = por %p85, %p86
    %p88 = scmp.ne.s32.totalorder %s80, %s82
    %p89 = scmp.eq.s32.totalorder %s16, 1
    %p90 = por %p88, %p89
    %p91 = scmp.ne.s32.totalorder %s82, %s83
    %p92 = scmp.eq.s32.totalorder %s16, 0
    %p93 = por %p91, %p92
    %p94 = scmp.ne.s32.totalorder %s82, %s83
    %p95 = scmp.eq.s32.totalorder %s17, 1
    %p96 = por %p94, %p95
    %p98 = scmp.ne.s32.totalorder %s83, %s97
    %p99 = scmp.eq.s32.totalorder %s17, 0
    %p100 = por %p98, %p99
    %s102 = sadd.s32 %s101, 1
    %p105 = scmp.eq.s32.totalorder %s11, 1
    %p106 = scmp.ne.s32.totalorder %s101, %s103
    %p107 = scmp.eq.s32.totalorder %s11, 0
    %p108 = por %p106, %p107
    %p109 = scmp.ne.s32.totalorder %s101, %s103
    %p110 = scmp.eq.s32.totalorder %s16, 1
    %p111 = por %p109, %p110
    %p112 = scmp.ne.s32.totalorder %s103, %s104
    %p113 = scmp.eq.s32.totalorder %s16, 0
    %p114 = por %p112, %p113
    %p115 = scmp.ne.s32.totalorder %s103, %s104
    %p116 = scmp.eq.s32.totalorder %s17, 1
    %p117 = por %p115, %p116
    %p119 = scmp.ne.s32.totalorder %s104, %s118
    %p120 = scmp.eq.s32.totalorder %s17, 0
    %p121 = por %p119, %p120
    %s123 = sadd.s32 %s122, 1
    %p126 = scmp.eq.s32.totalorder %s11, 1
    %p127 = scmp.ne.s32.totalorder %s122, %s124
    %p128 = scmp.eq.s32.totalorder %s11, 0
    %p129 = por %p127, %p128
    %p130 = scmp.ne.s32.totalorder %s122, %s124
    %p131 = scmp.eq.s32.totalorder %s16, 1
    %p132 = por %p130, %p131
    %p133 = scmp.ne.s32.totalorder %s124, %s125
    %p134 = scmp.eq.s32.totalorder %s16, 0
    %p135 = por %p133, %p134
    %p136 = scmp.ne.s32.totalorder %s124, %s125
    %p137 = scmp.eq.s32.totalorder %s17, 1
    %p138 = por %p136, %p137
    %p140 = scmp.ne.s32.totalorder %s125, %s139
    %p141 = scmp.eq.s32.totalorder %s17, 0
    %p142 = por %p140, %p141
    %s143 = ssub.s32 %s18, %s30
    %s144 = ssub.s32 %s19, %s26
    %s145 = sor.u32 %s143, %s144
    %p146 = scmp.eq.s32.totalorder %s145, 0
    %s148 = sadd.s32 %s147, 1
    %s149 = scalar_select %p146, %s147, %s148
    %p152 = pneg %p146
    %p153 = scmp.eq.s32.totalorder %s11, 1
    %p154 = por %p152, %p153
    %p155 = scmp.ne.s32.totalorder %s147, %s150
    %p156 = scmp.eq.s32.totalorder %s11, 0
    %p157 = por %p155, %p156
    %p158 = scmp.ne.s32.totalorder %s147, %s150
    %p159 = scmp.eq.s32.totalorder %s16, 1
    %p160 = por %p158, %p159
    %p161 = scmp.ne.s32.totalorder %s150, %s151
    %p162 = scmp.eq.s32.totalorder %s16, 0
    %p163 = por %p161, %p162
    %p164 = scmp.ne.s32.totalorder %s150, %s151
    %p165 = scmp.eq.s32.totalorder %s17, 1
    %p166 = por %p164, %p165
    %p168 = scmp.ne.s32.totalorder %s151, %s167
    %p169 = scmp.eq.s32.totalorder %s17, 0
    %p170 = por %p168, %p169
    %p171 = scmp.le.s32.totalorder 1, %s11
    %p172 = scmp.lt.s32.totalorder %s11, 3
    %p173 = pnand %p171, %p172
    %p174 = pneg %p173
    // Predicated region
    $region9: #{fno_ensemble_rbc1_forward.37} parent=5 // pred_check
      _
    $region10: #{fno_ensemble_rbc1_forward.37} parent=5 // pred_check_branch
      %176 = sbr.rel (%p173) target = $region12
    $region11: #{fno_ensemble_rbc1_forward.37} parent=5 // pred_region
      %s177 = ssub.s32 %s11, 1
      // Predicated region
      $region13: #{fno_ensemble_rbc1_forward.37} parent=11 // pred_check
        %p178 = pneg %p72
      $region14: #{fno_ensemble_rbc1_forward.37} parent=11 // pred_check_branch
        %180 = sbr.rel (%p178) target = $region16
      $region15: #{fno_ensemble_rbc1_forward.37} parent=11 // pred_region
        _
      $region16: #{fno_ensemble_rbc1_forward.37} parent=11 // pred_fallthru
        _
      // Predicated region
      $region17: #{fno_ensemble_rbc1_forward.37} parent=11 // pred_check
        %p181 = pneg %p93
      $region18: #{fno_ensemble_rbc1_forward.37} parent=11 // pred_check_branch
        %183 = sbr.rel (%p181) target = $region20
      $region19: #{fno_ensemble_rbc1_forward.37} parent=11 // pred_region
        _
      $region20: #{fno_ensemble_rbc1_forward.37} parent=11 // pred_fallthru
        _
      // Predicated region
      $region21: #{fno_ensemble_rbc1_forward.37} parent=11 // pred_check
        %p184 = pneg %p114
      $region22: #{fno_ensemble_rbc1_forward.37} parent=11 // pred_check_branch
        %186 = sbr.rel (%p184) target = $region24
      $region23: #{fno_ensemble_rbc1_forward.37} parent=11 // pred_region
        _
      $region24: #{fno_ensemble_rbc1_forward.37} parent=11 // pred_fallthru
        _
      // Predicated region
      $region25: #{fno_ensemble_rbc1_forward.37} parent=11 // pred_check
        %p187 = pneg %p135
      $region26: #{fno_ensemble_rbc1_forward.37} parent=11 // pred_check_branch
        %189 = sbr.rel (%p187) target = $region28
      $region27: #{fno_ensemble_rbc1_forward.37} parent=11 // pred_region
        _
      $region28: #{fno_ensemble_rbc1_forward.37} parent=11 // pred_fallthru
        _
    $region12: #{fno_ensemble_rbc1_forward.37} parent=5 // pred_fallthru
      _
    %p190 = scmp.lt.s32.totalorder %s11, 2
    // Predicated region
    $region29: #{fno_ensemble_rbc1_forward.37} parent=5 // pred_check
      %p191 = pneg %p190
    $region30: #{fno_ensemble_rbc1_forward.37} parent=5 // pred_check_branch
      %193 = sbr.rel (%p191) target = $region32
    $region31: #{fno_ensemble_rbc1_forward.37} parent=5 // pred_region
      // Predicated region
      $region33: #{fno_ensemble_rbc1_forward.37} parent=31 // pred_check
        %p194 = pneg %p45
      $region34: #{fno_ensemble_rbc1_forward.37} parent=31 // pred_check_branch
        %196 = sbr.rel (%p194) target = $region36
      $region35: #{fno_ensemble_rbc1_forward.37} parent=31 // pred_region
        %s197 = smul.u32 2, %s19
        %p198 = scmp.lt.s32.totalorder %s18, 1
        %s199 = scalar_select %p198, %s18, 1
        %p200 = scmp.lt.s32.totalorder %s197, 1
        %s201 = scalar_select %p200, %s197, 1
        %s202 = smul.addr %s199, 2
        %s203 = sadd.s32 %s201, %s202
        %s204 = smul.addr %s203, 8
        %s205 = scalar_lea.vmem %s0, %s204
        %s206 = smul.u32 2, %s19
      $region36: #{fno_ensemble_rbc1_forward.37} parent=31 // pred_fallthru
        _
    $region32: #{fno_ensemble_rbc1_forward.37} parent=5 // pred_fallthru
      _
    %p207 = scmp.le.s32.totalorder 1, %s11
    %p208 = scmp.lt.s32.totalorder %s11, 3
    %p209 = pnand %p207, %p208
    %p210 = pneg %p209
    // Predicated region
    $region37: #{fno_ensemble_rbc1_forward.37} parent=5 // pred_check
      _
    $region38: #{fno_ensemble_rbc1_forward.37} parent=5 // pred_check_branch
      %212 = sbr.rel (%p209) target = $region40
    $region39: #{fno_ensemble_rbc1_forward.37} parent=5 // pred_region
      %s213 = ssub.s32 %s11, 1
      %s214 = smul.u32 2, %s21
      %p215 = scmp.lt.s32.totalorder %s20, 1
      %s216 = scalar_select %p215, %s20, 1
      %p217 = scmp.lt.s32.totalorder %s214, 1
      %s218 = scalar_select %p217, %s214, 1
      %s219 = smul.addr %s216, 2
      %s220 = sadd.s32 %s218, %s219
      %s221 = smul.addr %s220, 8
      %s222 = scalar_lea.vmem %s0, %s221
      %p223 = pneg %p51
      %p224 = pneg %p48
      %p225 = pneg %p72
      %p226 = pneg %p69
      %p227 = pneg %p93
      %p228 = pneg %p90
      %p229 = pneg %p114
      %p230 = pneg %p111
      %p231 = pneg %p135
      %p232 = pneg %p132
      %p233 = pneg %p163
      %p234 = pneg %p160
      %s235 = smul.u32 2, %s21
      %p236 = scmp.lt.s32.totalorder %s20, 1
      %s237 = scalar_select %p236, %s20, 1
      %p238 = scmp.lt.s32.totalorder %s235, 1
      %s239 = scalar_select %p238, %s235, 1
      %s240 = smul.addr %s237, 2
      %s241 = sadd.s32 %s239, %s240
      %s242 = smul.addr %s241, 4
      %s243 = scalar_lea.vmem %s5, %s242
      %s244 = smul.u32 2, %s21
      %p245 = scmp.lt.s32.totalorder %s20, 1
      %s246 = scalar_select %p245, %s20, 1
      %p247 = scmp.lt.s32.totalorder %s244, 1
      %s248 = scalar_select %p247, %s244, 1
      %s249 = smul.addr %s246, 2
      %s250 = sadd.s32 %s248, %s249
      %s251 = smul.addr %s250, 8
      %s252 = scalar_lea.vmem %s0, %s251
      %s253 = smul.u32 2, %s21
      %s254 = smul.u32 2, %s21
      %p255 = scmp.lt.s32.totalorder %s20, 1
      %s256 = scalar_select %p255, %s20, 1
      %p257 = scmp.lt.s32.totalorder %s254, 1
      %s258 = scalar_select %p257, %s254, 1
      %s259 = smul.addr %s256, 2
      %s260 = sadd.s32 %s258, %s259
      %s261 = smul.addr %s260, 4
      %s262 = scalar_lea.vmem %s5, %s261
      %s263 = smul.u32 2, %s21
      %v264 = vld [vmem:[%s1] sm:$0xff]
      %v265 = vld [vmem:[%s1 + $0x8] sm:$0xff]
      %v266 = vld [vmem:[%s1 + $0x10] sm:$0xff]
      %v267 = vld [vmem:[%s1 + $0x18] sm:$0xff]
      %v268 = vld [vmem:[%s1 + $0x20] sm:$0xff]
      %v269 = vld [vmem:[%s1 + $0x28] sm:$0xff]
      %v270 = vld [vmem:[%s1 + $0x30] sm:$0xff]
      %v271 = vld [vmem:[%s1 + $0x38] sm:$0xff]
      %v272 = vld [vmem:[%s1 + $0x40] sm:$0xff]
      %v273 = vld [vmem:[%s1 + $0x48] sm:$0xff]
      %v274 = vld [vmem:[%s1 + $0x50] sm:$0xff]
      %v275 = vld [vmem:[%s1 + $0x58] sm:$0xff]
      %v276 = vld [vmem:[%s1 + $0x60] sm:$0xff]
      %v277 = vld [vmem:[%s1 + $0x68] sm:$0xff]
      %v278 = vld [vmem:[%s1 + $0x70] sm:$0xff]
      %v279 = vld [vmem:[%s1 + $0x78] sm:$0xff]
      %v280 = vld [vmem:[%s252] sm:$0xff]
      %v281 = vld [vmem:[%s252 + $0x8] sm:$0xff]
      %v282 = vld [vmem:[%s2] sm:$0xff]
      %v283 = vld [vmem:[%s2 + $0x8] sm:$0xff]
      %v284 = vld [vmem:[%s2 + $0x10] sm:$0xff]
      %v285 = vld [vmem:[%s2 + $0x18] sm:$0xff]
      %v286 = vld [vmem:[%s2 + $0x20] sm:$0xff]
      %v287 = vld [vmem:[%s2 + $0x28] sm:$0xff]
      %v288 = vld [vmem:[%s2 + $0x30] sm:$0xff]
      %v289 = vld [vmem:[%s2 + $0x38] sm:$0xff]
      %v290 = vld [vmem:[%s2 + $0x40] sm:$0xff]
      %v291 = vld [vmem:[%s2 + $0x48] sm:$0xff]
      %v292 = vld [vmem:[%s2 + $0x50] sm:$0xff]
      %v293 = vld [vmem:[%s2 + $0x58] sm:$0xff]
      %v294 = vld [vmem:[%s2 + $0x60] sm:$0xff]
      %v295 = vld [vmem:[%s2 + $0x68] sm:$0xff]
      %v296 = vld [vmem:[%s2 + $0x70] sm:$0xff]
      %v297 = vld [vmem:[%s2 + $0x78] sm:$0xff]
      %299 = vset.pattern.permute.xlu0 0
      %300 = vperm.xlu0 %299, %v282
      %v301 = vpop.permute.xlu0 %300
      %304 = vset.pattern.permute.xlu0 0
      %305 = vperm.xlu0 %304, %v283
      %v306 = vpop.permute.xlu0 %305
      %309 = vset.pattern.permute.xlu0 0
      %310 = vperm.xlu0 %309, %v284
      %v311 = vpop.permute.xlu0 %310
      %314 = vset.pattern.permute.xlu0 0
      %315 = vperm.xlu0 %314, %v285
      %v316 = vpop.permute.xlu0 %315
      %319 = vset.pattern.permute.xlu0 0
      %320 = vperm.xlu0 %319, %v286
      %v321 = vpop.permute.xlu0 %320
      %324 = vset.pattern.permute.xlu0 0
      %325 = vperm.xlu0 %324, %v287
      %v326 = vpop.permute.xlu0 %325
      %329 = vset.pattern.permute.xlu0 0
      %330 = vperm.xlu0 %329, %v288
      %v331 = vpop.permute.xlu0 %330
      %334 = vset.pattern.permute.xlu0 0
      %335 = vperm.xlu0 %334, %v289
      %v336 = vpop.permute.xlu0 %335
      %339 = vset.pattern.permute.xlu0 0
      %340 = vperm.xlu0 %339, %v290
      %v341 = vpop.permute.xlu0 %340
      %344 = vset.pattern.permute.xlu0 0
      %345 = vperm.xlu0 %344, %v291
      %v346 = vpop.permute.xlu0 %345
      %349 = vset.pattern.permute.xlu0 0
      %350 = vperm.xlu0 %349, %v292
      %v351 = vpop.permute.xlu0 %350
      %354 = vset.pattern.permute.xlu0 0
      %355 = vperm.xlu0 %354, %v293
      %v356 = vpop.permute.xlu0 %355
      %359 = vset.pattern.permute.xlu0 0
      %360 = vperm.xlu0 %359, %v294
      %v361 = vpop.permute.xlu0 %360
      %364 = vset.pattern.permute.xlu0 0
      %365 = vperm.xlu0 %364, %v295
      %v366 = vpop.permute.xlu0 %365
      %369 = vset.pattern.permute.xlu0 0
      %370 = vperm.xlu0 %369, %v296
      %v371 = vpop.permute.xlu0 %370
      %374 = vset.pattern.permute.xlu0 0
      %375 = vperm.xlu0 %374, %v297
      %v376 = vpop.permute.xlu0 %375
      %vm378 = vcmask 64512
      %v380 = vsel %vm378, %v264, 0
      %v383 = vsel %vm378, %v265, 0
      %v386 = vsel %vm378, %v266, 0
      %v389 = vsel %vm378, %v267, 0
      %v392 = vsel %vm378, %v268, 0
      %v395 = vsel %vm378, %v269, 0
      %v398 = vsel %vm378, %v270, 0
      %v401 = vsel %vm378, %v271, 0
      %v404 = vsel %vm378, %v272, 0
      %v407 = vsel %vm378, %v273, 0
      %v410 = vsel %vm378, %v274, 0
      %v413 = vsel %vm378, %v275, 0
      %v416 = vsel %vm378, %v276, 0
      %v419 = vsel %vm378, %v277, 0
      %v422 = vsel %vm378, %v278, 0
      %v425 = vsel %vm378, %v279, 0
      %427 = vmatprep.subr.mxu0 0.0
      %428 = vmatpush1.msra.mxu0 0.0
      %429 = vmatprep.subr.mxu0 0.0
      %430 = vmatpush1.msra.mxu0 0.0
      %431 = vmatprep.subr.mxu0 0.0
      %432 = vmatpush1.msra.mxu0 0.0
      %433 = vmatprep.subr.mxu0 0.0
      %434 = vmatpush1.msra.mxu0 0.0
      %435 = vmatprep.subr.mxu0 0.0
      %436 = vmatpush1.msra.mxu0 0.0
      %437 = vmatprep.subr.mxu0 0.0
      %438 = vmatpush1.msra.mxu0 0.0
      %439 = vmatprep.subr.mxu0 0.0
      %440 = vmatpush1.msra.mxu0 0.0
      %441 = vmatprep.subr.mxu0 0.0
      %442 = vmatpush1.msra.mxu0 0.0
      %443 = vmatprep.subr.mxu0 0.0
      %444 = vmatpush1.msra.mxu0 0.0
      %445 = vmatprep.subr.mxu0 0.0
      %446 = vmatpush1.msra.mxu0 0.0
      %447 = vmatprep.subr.mxu0 0.0
      %448 = vmatpush1.msra.mxu0 0.0
      %449 = vmatprep.subr.mxu0 0.0
      %450 = vmatpush1.msra.mxu0 0.0
      %451 = vmatprep.subr.mxu0 0.0
      %452 = vmatpush1.msra.mxu0 0.0
      %453 = vmatprep.subr.mxu0 0.0
      %454 = vmatpush1.msra.mxu0 0.0
      %455 = vmatprep.subr.mxu0 0.0
      %456 = vmatpush1.msra.mxu0 0.0
      %457 = vmatprep.subr.mxu0 %v281
      %458 = vmatpush1.msra.mxu0 %v280
      %459 = vmatprep.subr.mxu0 0.0
      %460 = vmatpush2.msra.mxu0 0.0
      %461 = vmatprep.subr.mxu0 0.0
      %462 = vmatpush2.msra.mxu0 0.0
      %463 = vmatprep.subr.mxu0 0.0
      %464 = vmatpush2.msra.mxu0 0.0
      %465 = vmatprep.subr.mxu0 0.0
      %466 = vmatpush2.msra.mxu0 0.0
      %467 = vmatprep.subr.mxu0 0.0
      %468 = vmatpush2.msra.mxu0 0.0
      %469 = vmatprep.subr.mxu0 0.0
      %470 = vmatpush2.msra.mxu0 0.0
      %471 = vmatprep.subr.mxu0 0.0
      %472 = vmatpush2.msra.mxu0 0.0
      %473 = vmatprep.subr.mxu0 0.0
      %474 = vmatpush2.msra.mxu0 0.0
      %475 = vmatprep.subr.mxu0 0.0
      %476 = vmatpush2.msra.mxu0 0.0
      %477 = vmatprep.subr.mxu0 0.0
      %478 = vmatpush2.msra.mxu0 0.0
      %479 = vmatprep.subr.mxu0 0.0
      %480 = vmatpush2.msra.mxu0 0.0
      %481 = vmatprep.subr.mxu0 0.0
      %482 = vmatpush2.msra.mxu0 0.0
      %483 = vmatprep.subr.mxu0 0.0
      %484 = vmatpush2.msra.mxu0 0.0
      %485 = vmatprep.subr.mxu0 0.0
      %486 = vmatpush2.msra.mxu0 0.0
      %487 = vmatprep.subr.mxu0 0.0
      %488 = vmatpush2.msra.mxu0 0.0
      %489 = vmatprep.subr.mxu0 0.0
      %490 = vmatpush2.msra.mxu0 0.0
      %491 = vmatprep.mubr.f32.mxu0 0.0
      %492 = vmatmul.mubr.f32.gmra.mxu0 %v380
      %v493 = vpop.f32.mrf.mxu0
      %v494 = vadd.f32 %v301, %v493
      %v495 = vpop.f32.mrf.mxu0
      %v496 = vadd.f32 %v301, %v495
      %497 = vmatprep.mubr.f32.mxu0 0.0
      %498 = vmatmul.mubr.f32.gmra.mxu0 %v383
      %v499 = vpop.f32.mrf.mxu0
      %v500 = vadd.f32 %v306, %v499
      %v501 = vpop.f32.mrf.mxu0
      %v502 = vadd.f32 %v306, %v501
      %503 = vmatprep.mubr.f32.mxu0 0.0
      %504 = vmatmul.mubr.f32.gmra.mxu0 %v386
      %v505 = vpop.f32.mrf.mxu0
      %v506 = vadd.f32 %v311, %v505
      %v507 = vpop.f32.mrf.mxu0
      %v508 = vadd.f32 %v311, %v507
      %509 = vmatprep.mubr.f32.mxu0 0.0
      %510 = vmatmul.mubr.f32.gmra.mxu0 %v389
      %v511 = vpop.f32.mrf.mxu0
      %v512 = vadd.f32 %v316, %v511
      %v513 = vpop.f32.mrf.mxu0
      %v514 = vadd.f32 %v316, %v513
      %515 = vmatprep.mubr.f32.mxu0 0.0
      %516 = vmatmul.mubr.f32.gmra.mxu0 %v392
      %v517 = vpop.f32.mrf.mxu0
      %v518 = vadd.f32 %v321, %v517
      %v519 = vpop.f32.mrf.mxu0
      %v520 = vadd.f32 %v321, %v519
      %521 = vmatprep.mubr.f32.mxu0 0.0
      %522 = vmatmul.mubr.f32.gmra.mxu0 %v395
      %v523 = vpop.f32.mrf.mxu0
      %v524 = vadd.f32 %v326, %v523
      %v525 = vpop.f32.mrf.mxu0
      %v526 = vadd.f32 %v326, %v525
      %527 = vmatprep.mubr.f32.mxu0 0.0
      %528 = vmatmul.mubr.f32.gmra.mxu0 %v398
      %v529 = vpop.f32.mrf.mxu0
      %v530 = vadd.f32 %v331, %v529
      %v531 = vpop.f32.mrf.mxu0
      %v532 = vadd.f32 %v331, %v531
      %533 = vmatprep.mubr.f32.mxu0 0.0
      %534 = vmatmul.mubr.f32.gmra.mxu0 %v401
      %v535 = vpop.f32.mrf.mxu0
      %v536 = vadd.f32 %v336, %v535
      %v537 = vpop.f32.mrf.mxu0
      %v538 = vadd.f32 %v336, %v537
      %539 = vmatprep.mubr.f32.mxu0 0.0
      %540 = vmatmul.mubr.f32.gmra.mxu0 %v404
      %v541 = vpop.f32.mrf.mxu0
      %v542 = vadd.f32 %v341, %v541
      %v543 = vpop.f32.mrf.mxu0
      %v544 = vadd.f32 %v341, %v543
      %545 = vmatprep.mubr.f32.mxu0 0.0
      %546 = vmatmul.mubr.f32.gmra.mxu0 %v407
      %v547 = vpop.f32.mrf.mxu0
      %v548 = vadd.f32 %v346, %v547
      %v549 = vpop.f32.mrf.mxu0
      %v550 = vadd.f32 %v346, %v549
      %551 = vmatprep.mubr.f32.mxu0 0.0
      %552 = vmatmul.mubr.f32.gmra.mxu0 %v410
      %v553 = vpop.f32.mrf.mxu0
      %v554 = vadd.f32 %v351, %v553
      %v555 = vpop.f32.mrf.mxu0
      %v556 = vadd.f32 %v351, %v555
      %557 = vmatprep.mubr.f32.mxu0 0.0
      %558 = vmatmul.mubr.f32.gmra.mxu0 %v413
      %v559 = vpop.f32.mrf.mxu0
      %v560 = vadd.f32 %v356, %v559
      %v561 = vpop.f32.mrf.mxu0
      %v562 = vadd.f32 %v356, %v561
      %563 = vmatprep.mubr.f32.mxu0 0.0
      %564 = vmatmul.mubr.f32.gmra.mxu0 %v416
      %v565 = vpop.f32.mrf.mxu0
      %v566 = vadd.f32 %v361, %v565
      %v567 = vpop.f32.mrf.mxu0
      %v568 = vadd.f32 %v361, %v567
      %569 = vmatprep.mubr.f32.mxu0 0.0
      %570 = vmatmul.mubr.f32.gmra.mxu0 %v419
      %v571 = vpop.f32.mrf.mxu0
      %v572 = vadd.f32 %v366, %v571
      %v573 = vpop.f32.mrf.mxu0
      %v574 = vadd.f32 %v366, %v573
      %575 = vmatprep.mubr.f32.mxu0 0.0
      %576 = vmatmul.mubr.f32.gmra.mxu0 %v422
      %v577 = vpop.f32.mrf.mxu0
      %v578 = vadd.f32 %v371, %v577
      %v579 = vpop.f32.mrf.mxu0
      %v580 = vadd.f32 %v371, %v579
      %581 = vmatprep.mubr.f32.mxu0 0.0
      %582 = vmatmul.mubr.f32.gmra.mxu0 %v425
      %v583 = vpop.f32.mrf.mxu0
      %v584 = vadd.f32 %v376, %v583
      %v585 = vpop.f32.mrf.mxu0
      %v586 = vadd.f32 %v376, %v585
      %587 = vdwg.mxu0
      %v588 = vmul.f32 %v494, 0.5
      %v589 = vmul.f32 %v496, 0.5
      %v590 = vmul.f32 %v500, 0.5
      %v591 = vmul.f32 %v502, 0.5
      %v592 = vmul.f32 %v506, 0.5
      %v593 = vmul.f32 %v508, 0.5
      %v594 = vmul.f32 %v512, 0.5
      %v595 = vmul.f32 %v514, 0.5
      %v596 = vmul.f32 %v518, 0.5
      %v597 = vmul.f32 %v520, 0.5
      %v598 = vmul.f32 %v524, 0.5
      %v599 = vmul.f32 %v526, 0.5
      %v600 = vmul.f32 %v530, 0.5
      %v601 = vmul.f32 %v532, 0.5
      %v602 = vmul.f32 %v536, 0.5
      %v603 = vmul.f32 %v538, 0.5
      %v604 = vmul.f32 %v542, 0.5
      %v605 = vmul.f32 %v544, 0.5
      %v606 = vmul.f32 %v548, 0.5
      %v607 = vmul.f32 %v550, 0.5
      %v608 = vmul.f32 %v554, 0.5
      %v609 = vmul.f32 %v556, 0.5
      %v610 = vmul.f32 %v560, 0.5
      %v611 = vmul.f32 %v562, 0.5
      %v612 = vmul.f32 %v566, 0.5
      %v613 = vmul.f32 %v568, 0.5
      %v614 = vmul.f32 %v572, 0.5
      %v615 = vmul.f32 %v574, 0.5
      %v616 = vmul.f32 %v578, 0.5
      %v617 = vmul.f32 %v580, 0.5
      %v618 = vmul.f32 %v584, 0.5
      %v619 = vmul.f32 %v586, 0.5
      %v620 = vmul.f32 %v494, 0.70710677
      %v621 = vmul.f32 %v496, 0.70710677
      %v622 = vmul.f32 %v500, 0.70710677
      %v623 = vmul.f32 %v502, 0.70710677
      %v624 = vmul.f32 %v506, 0.70710677
      %v625 = vmul.f32 %v508, 0.70710677
      %v626 = vmul.f32 %v512, 0.70710677
      %v627 = vmul.f32 %v514, 0.70710677
      %v628 = vmul.f32 %v518, 0.70710677
      %v629 = vmul.f32 %v520, 0.70710677
      %v630 = vmul.f32 %v524, 0.70710677
      %v631 = vmul.f32 %v526, 0.70710677
      %v632 = vmul.f32 %v530, 0.70710677
      %v633 = vmul.f32 %v532, 0.70710677
      %v634 = vmul.f32 %v536, 0.70710677
      %v635 = vmul.f32 %v538, 0.70710677
      %v636 = vmul.f32 %v542, 0.70710677
      %v637 = vmul.f32 %v544, 0.70710677
      %v638 = vmul.f32 %v548, 0.70710677
      %v639 = vmul.f32 %v550, 0.70710677
      %v640 = vmul.f32 %v554, 0.70710677
      %v641 = vmul.f32 %v556, 0.70710677
      %v642 = vmul.f32 %v560, 0.70710677
      %v643 = vmul.f32 %v562, 0.70710677
      %v644 = vmul.f32 %v566, 0.70710677
      %v645 = vmul.f32 %v568, 0.70710677
      %v646 = vmul.f32 %v572, 0.70710677
      %v647 = vmul.f32 %v574, 0.70710677
      %v648 = vmul.f32 %v578, 0.70710677
      %v649 = vmul.f32 %v580, 0.70710677
      %v650 = vmul.f32 %v584, 0.70710677
      %v651 = vmul.f32 %v586, 0.70710677
      %v652 = vand.u32 2147483647, %v620
      %v653 = vand.u32 2147483647, %v621
      %v654 = vand.u32 2147483647, %v622
      %v655 = vand.u32 2147483647, %v623
      %v656 = vand.u32 2147483647, %v624
      %v657 = vand.u32 2147483647, %v625
      %v658 = vand.u32 2147483647, %v626
      %v659 = vand.u32 2147483647, %v627
      %v660 = vand.u32 2147483647, %v628
      %v661 = vand.u32 2147483647, %v629
      %v662 = vand.u32 2147483647, %v630
      %v663 = vand.u32 2147483647, %v631
      %v664 = vand.u32 2147483647, %v632
      %v665 = vand.u32 2147483647, %v633
      %v666 = vand.u32 2147483647, %v634
      %v667 = vand.u32 2147483647, %v635
      %v668 = vand.u32 2147483647, %v636
      %v669 = vand.u32 2147483647, %v637
      %v670 = vand.u32 2147483647, %v638
      %v671 = vand.u32 2147483647, %v639
      %v672 = vand.u32 2147483647, %v640
      %v673 = vand.u32 2147483647, %v641
      %v674 = vand.u32 2147483647, %v642
      %v675 = vand.u32 2147483647, %v643
      %v676 = vand.u32 2147483647, %v644
      %v677 = vand.u32 2147483647, %v645
      %v678 = vand.u32 2147483647, %v646
      %v679 = vand.u32 2147483647, %v647
      %v680 = vand.u32 2147483647, %v648
      %v681 = vand.u32 2147483647, %v649
      %v682 = vand.u32 2147483647, %v650
      %v683 = vand.u32 2147483647, %v651
      %v684 = vmul.f32 %v652, 0.3275911
      %v685 = vmul.f32 %v653, 0.3275911
      %v686 = vmul.f32 %v654, 0.3275911
      %v687 = vmul.f32 %v655, 0.3275911
      %v688 = vmul.f32 %v656, 0.3275911
      %v689 = vmul.f32 %v657, 0.3275911
      %v690 = vmul.f32 %v658, 0.3275911
      %v691 = vmul.f32 %v659, 0.3275911
      %v692 = vmul.f32 %v660, 0.3275911
      %v693 = vmul.f32 %v661, 0.3275911
      %v694 = vmul.f32 %v662, 0.3275911
      %v695 = vmul.f32 %v663, 0.3275911
      %v696 = vmul.f32 %v664, 0.3275911
      %v697 = vmul.f32 %v665, 0.3275911
      %v698 = vmul.f32 %v666, 0.3275911
      %v699 = vmul.f32 %v667, 0.3275911
      %v700 = vmul.f32 %v668, 0.3275911
      %v701 = vmul.f32 %v669, 0.3275911
      %v702 = vmul.f32 %v670, 0.3275911
      %v703 = vmul.f32 %v671, 0.3275911
      %v704 = vmul.f32 %v672, 0.3275911
      %v705 = vmul.f32 %v673, 0.3275911
      %v706 = vmul.f32 %v674, 0.3275911
      %v707 = vmul.f32 %v675, 0.3275911
      %v708 = vmul.f32 %v676, 0.3275911
      %v709 = vmul.f32 %v677, 0.3275911
      %v710 = vmul.f32 %v678, 0.3275911
      %v711 = vmul.f32 %v679, 0.3275911
      %v712 = vmul.f32 %v680, 0.3275911
      %v713 = vmul.f32 %v681, 0.3275911
      %v714 = vmul.f32 %v682, 0.3275911
      %v715 = vmul.f32 %v683, 0.3275911
      %v716 = vadd.f32 %v684, 1.0
      %v717 = vadd.f32 %v685, 1.0
      %v718 = vadd.f32 %v686, 1.0
      %v719 = vadd.f32 %v687, 1.0
      %v720 = vadd.f32 %v688, 1.0
      %v721 = vadd.f32 %v689, 1.0
      %v722 = vadd.f32 %v690, 1.0
      %v723 = vadd.f32 %v691, 1.0
      %v724 = vadd.f32 %v692, 1.0
      %v725 = vadd.f32 %v693, 1.0
      %v726 = vadd.f32 %v694, 1.0
      %v727 = vadd.f32 %v695, 1.0
      %v728 = vadd.f32 %v696, 1.0
      %v729 = vadd.f32 %v697, 1.0
      %v730 = vadd.f32 %v698, 1.0
      %v731 = vadd.f32 %v699, 1.0
      %v732 = vadd.f32 %v700, 1.0
      %v733 = vadd.f32 %v701, 1.0
      %v734 = vadd.f32 %v702, 1.0
      %v735 = vadd.f32 %v703, 1.0
      %v736 = vadd.f32 %v704, 1.0
      %v737 = vadd.f32 %v705, 1.0
      %v738 = vadd.f32 %v706, 1.0
      %v739 = vadd.f32 %v707, 1.0
      %v740 = vadd.f32 %v708, 1.0
      %v741 = vadd.f32 %v709, 1.0
      %v742 = vadd.f32 %v710, 1.0
      %v743 = vadd.f32 %v711, 1.0
      %v744 = vadd.f32 %v712, 1.0
      %v745 = vadd.f32 %v713, 1.0
      %v746 = vadd.f32 %v714, 1.0
      %v747 = vadd.f32 %v715, 1.0
      %v748 = vrcp.pop %v716
      %v749 = vrcp.pop %v717
      %v750 = vrcp.pop %v718
      %v751 = vrcp.pop %v719
      %v752 = vrcp.pop %v720
      %v753 = vrcp.pop %v721
      %v754 = vrcp.pop %v722
      %v755 = vrcp.pop %v723
      %v756 = vrcp.pop %v724
      %v757 = vrcp.pop %v725
      %v758 = vrcp.pop %v726
      %v759 = vrcp.pop %v727
      %v760 = vrcp.pop %v728
      %v761 = vrcp.pop %v729
      %v762 = vrcp.pop %v730
      %v763 = vrcp.pop %v731
      %v764 = vrcp.pop %v732
      %v765 = vrcp.pop %v733
      %v766 = vrcp.pop %v734
      %v767 = vrcp.pop %v735
      %v768 = vrcp.pop %v736
      %v769 = vrcp.pop %v737
      %v770 = vrcp.pop %v738
      %v771 = vrcp.pop %v739
      %v772 = vrcp.pop %v740
      %v773 = vrcp.pop %v741
      %v774 = vrcp.pop %v742
      %v775 = vrcp.pop %v743
      %v776 = vrcp.pop %v744
      %v777 = vrcp.pop %v745
      %v778 = vrcp.pop %v746
      %v779 = vrcp.pop %v747
      %v780 = vmul.f32 %v748, 1.0614054
      %v781 = vmul.f32 %v749, 1.0614054
      %v782 = vmul.f32 %v750, 1.0614054
      %v783 = vmul.f32 %v751, 1.0614054
      %v784 = vmul.f32 %v752, 1.0614054
      %v785 = vmul.f32 %v753, 1.0614054
      %v786 = vmul.f32 %v754, 1.0614054
      %v787 = vmul.f32 %v755, 1.0614054
      %v788 = vmul.f32 %v756, 1.0614054
      %v789 = vmul.f32 %v757, 1.0614054
      %v790 = vmul.f32 %v758, 1.0614054
      %v791 = vmul.f32 %v759, 1.0614054
      %v792 = vmul.f32 %v760, 1.0614054
      %v793 = vmul.f32 %v761, 1.0614054
      %v794 = vmul.f32 %v762, 1.0614054
      %v795 = vmul.f32 %v763, 1.0614054
      %v796 = vmul.f32 %v764, 1.0614054
      %v797 = vmul.f32 %v765, 1.0614054
      %v798 = vmul.f32 %v766, 1.0614054
      %v799 = vmul.f32 %v767, 1.0614054
      %v800 = vmul.f32 %v768, 1.0614054
      %v801 = vmul.f32 %v769, 1.0614054
      %v802 = vmul.f32 %v770, 1.0614054
      %v803 = vmul.f32 %v771, 1.0614054
      %v804 = vmul.f32 %v772, 1.0614054
      %v805 = vmul.f32 %v773, 1.0614054
      %v806 = vmul.f32 %v774, 1.0614054
      %v807 = vmul.f32 %v775, 1.0614054
      %v808 = vmul.f32 %v776, 1.0614054
      %v809 = vmul.f32 %v777, 1.0614054
      %v810 = vmul.f32 %v778, 1.0614054
      %v811 = vmul.f32 %v779, 1.0614054
      %v812 = vadd.f32 %v780, -1.4531521
      %v813 = vadd.f32 %v781, -1.4531521
      %v814 = vadd.f32 %v782, -1.4531521
      %v815 = vadd.f32 %v783, -1.4531521
      %v816 = vadd.f32 %v784, -1.4531521
      %v817 = vadd.f32 %v785, -1.4531521
      %v818 = vadd.f32 %v786, -1.4531521
      %v819 = vadd.f32 %v787, -1.4531521
      %v820 = vadd.f32 %v788, -1.4531521
      %v821 = vadd.f32 %v789, -1.4531521
      %v822 = vadd.f32 %v790, -1.4531521
      %v823 = vadd.f32 %v791, -1.4531521
      %v824 = vadd.f32 %v792, -1.4531521
      %v825 = vadd.f32 %v793, -1.4531521
      %v826 = vadd.f32 %v794, -1.4531521
      %v827 = vadd.f32 %v795, -1.4531521
      %v828 = vadd.f32 %v796, -1.4531521
      %v829 = vadd.f32 %v797, -1.4531521
      %v830 = vadd.f32 %v798, -1.4531521
      %v831 = vadd.f32 %v799, -1.4531521
      %v832 = vadd.f32 %v800, -1.4531521
      %v833 = vadd.f32 %v801, -1.4531521
      %v834 = vadd.f32 %v802, -1.4531521
      %v835 = vadd.f32 %v803, -1.4531521
      %v836 = vadd.f32 %v804, -1.4531521
      %v837 = vadd.f32 %v805, -1.4531521
      %v838 = vadd.f32 %v806, -1.4531521
      %v839 = vadd.f32 %v807, -1.4531521
      %v840 = vadd.f32 %v808, -1.4531521
      %v841 = vadd.f32 %v809, -1.4531521
      %v842 = vadd.f32 %v810, -1.4531521
      %v843 = vadd.f32 %v811, -1.4531521
      %v844 = vmul.f32 %v748, %v812
      %v845 = vmul.f32 %v749, %v813
      %v846 = vmul.f32 %v750, %v814
      %v847 = vmul.f32 %v751, %v815
      %v848 = vmul.f32 %v752, %v816
      %v849 = vmul.f32 %v753, %v817
      %v850 = vmul.f32 %v754, %v818
      %v851 = vmul.f32 %v755, %v819
      %v852 = vmul.f32 %v756, %v820
      %v853 = vmul.f32 %v757, %v821
      %v854 = vmul.f32 %v758, %v822
      %v855 = vmul.f32 %v759, %v823
      %v856 = vmul.f32 %v760, %v824
      %v857 = vmul.f32 %v761, %v825
      %v858 = vmul.f32 %v762, %v826
      %v859 = vmul.f32 %v763, %v827
      %v860 = vmul.f32 %v764, %v828
      %v861 = vmul.f32 %v765, %v829
      %v862 = vmul.f32 %v766, %v830
      %v863 = vmul.f32 %v767, %v831
      %v864 = vmul.f32 %v768, %v832
      %v865 = vmul.f32 %v769, %v833
      %v866 = vmul.f32 %v770, %v834
      %v867 = vmul.f32 %v771, %v835
      %v868 = vmul.f32 %v772, %v836
      %v869 = vmul.f32 %v773, %v837
      %v870 = vmul.f32 %v774, %v838
      %v871 = vmul.f32 %v775, %v839
      %v872 = vmul.f32 %v776, %v840
      %v873 = vmul.f32 %v777, %v841
      %v874 = vmul.f32 %v778, %v842
      %v875 = vmul.f32 %v779, %v843
      %v876 = vadd.f32 %v844, 1.4214138
      %v877 = vadd.f32 %v845, 1.4214138
      %v878 = vadd.f32 %v846, 1.4214138
      %v879 = vadd.f32 %v847, 1.4214138
      %v880 = vadd.f32 %v848, 1.4214138
      %v881 = vadd.f32 %v849, 1.4214138
      %v882 = vadd.f32 %v850, 1.4214138
      %v883 = vadd.f32 %v851, 1.4214138
      %v884 = vadd.f32 %v852, 1.4214138
      %v885 = vadd.f32 %v853, 1.4214138
      %v886 = vadd.f32 %v854, 1.4214138
      %v887 = vadd.f32 %v855, 1.4214138
      %v888 = vadd.f32 %v856, 1.4214138
      %v889 = vadd.f32 %v857, 1.4214138
      %v890 = vadd.f32 %v858, 1.4214138
      %v891 = vadd.f32 %v859, 1.4214138
      %v892 = vadd.f32 %v860, 1.4214138
      %v893 = vadd.f32 %v861, 1.4214138
      %v894 = vadd.f32 %v862, 1.4214138
      %v895 = vadd.f32 %v863, 1.4214138
      %v896 = vadd.f32 %v864, 1.4214138
      %v897 = vadd.f32 %v865, 1.4214138
      %v898 = vadd.f32 %v866, 1.4214138
      %v899 = vadd.f32 %v867, 1.4214138
      %v900 = vadd.f32 %v868, 1.4214138
      %v901 = vadd.f32 %v869, 1.4214138
      %v902 = vadd.f32 %v870, 1.4214138
      %v903 = vadd.f32 %v871, 1.4214138
      %v904 = vadd.f32 %v872, 1.4214138
      %v905 = vadd.f32 %v873, 1.4214138
      %v906 = vadd.f32 %v874, 1.4214138
      %v907 = vadd.f32 %v875, 1.4214138
      %v908 = vmul.f32 %v748, %v876
      %v909 = vmul.f32 %v749, %v877
      %v910 = vmul.f32 %v750, %v878
      %v911 = vmul.f32 %v751, %v879
      %v912 = vmul.f32 %v752, %v880
      %v913 = vmul.f32 %v753, %v881
      %v914 = vmul.f32 %v754, %v882
      %v915 = vmul.f32 %v755, %v883
      %v916 = vmul.f32 %v756, %v884
      %v917 = vmul.f32 %v757, %v885
      %v918 = vmul.f32 %v758, %v886
      %v919 = vmul.f32 %v759, %v887
      %v920 = vmul.f32 %v760, %v888
      %v921 = vmul.f32 %v761, %v889
      %v922 = vmul.f32 %v762, %v890
      %v923 = vmul.f32 %v763, %v891
      %v924 = vmul.f32 %v764, %v892
      %v925 = vmul.f32 %v765, %v893
      %v926 = vmul.f32 %v766, %v894
      %v927 = vmul.f32 %v767, %v895
      %v928 = vmul.f32 %v768, %v896
      %v929 = vmul.f32 %v769, %v897
      %v930 = vmul.f32 %v770, %v898
      %v931 = vmul.f32 %v771, %v899
      %v932 = vmul.f32 %v772, %v900
      %v933 = vmul.f32 %v773, %v901
      %v934 = vmul.f32 %v774, %v902
      %v935 = vmul.f32 %v775, %v903
      %v936 = vmul.f32 %v776, %v904
      %v937 = vmul.f32 %v777, %v905
      %v938 = vmul.f32 %v778, %v906
      %v939 = vmul.f32 %v779, %v907
      %v940 = vadd.f32 %v908, -0.28449672
      %v941 = vadd.f32 %v909, -0.28449672
      %v942 = vadd.f32 %v910, -0.28449672
      %v943 = vadd.f32 %v911, -0.28449672
      %v944 = vadd.f32 %v912, -0.28449672
      %v945 = vadd.f32 %v913, -0.28449672
      %v946 = vadd.f32 %v914, -0.28449672
      %v947 = vadd.f32 %v915, -0.28449672
      %v948 = vadd.f32 %v916, -0.28449672
      %v949 = vadd.f32 %v917, -0.28449672
      %v950 = vadd.f32 %v918, -0.28449672
      %v951 = vadd.f32 %v919, -0.28449672
      %v952 = vadd.f32 %v920, -0.28449672
      %v953 = vadd.f32 %v921, -0.28449672
      %v954 = vadd.f32 %v922, -0.28449672
      %v955 = vadd.f32 %v923, -0.28449672
      %v956 = vadd.f32 %v924, -0.28449672
      %v957 = vadd.f32 %v925, -0.28449672
      %v958 = vadd.f32 %v926, -0.28449672
      %v959 = vadd.f32 %v927, -0.28449672
      %v960 = vadd.f32 %v928, -0.28449672
      %v961 = vadd.f32 %v929, -0.28449672
      %v962 = vadd.f32 %v930, -0.28449672
      %v963 = vadd.f32 %v931, -0.28449672
      %v964 = vadd.f32 %v932, -0.28449672
      %v965 = vadd.f32 %v933, -0.28449672
      %v966 = vadd.f32 %v934, -0.28449672
      %v967 = vadd.f32 %v935, -0.28449672
      %v968 = vadd.f32 %v936, -0.28449672
      %v969 = vadd.f32 %v937, -0.28449672
      %v970 = vadd.f32 %v938, -0.28449672
      %v971 = vadd.f32 %v939, -0.28449672
      %v972 = vmul.f32 %v748, %v940
      %v973 = vmul.f32 %v749, %v941
      %v974 = vmul.f32 %v750, %v942
      %v975 = vmul.f32 %v751, %v943
      %v976 = vmul.f32 %v752, %v944
      %v977 = vmul.f32 %v753, %v945
      %v978 = vmul.f32 %v754, %v946
      %v979 = vmul.f32 %v755, %v947
      %v980 = vmul.f32 %v756, %v948
      %v981 = vmul.f32 %v757, %v949
      %v982 = vmul.f32 %v758, %v950
      %v983 = vmul.f32 %v759, %v951
      %v984 = vmul.f32 %v760, %v952
      %v985 = vmul.f32 %v761, %v953
      %v986 = vmul.f32 %v762, %v954
      %v987 = vmul.f32 %v763, %v955
      %v988 = vmul.f32 %v764, %v956
      %v989 = vmul.f32 %v765, %v957
      %v990 = vmul.f32 %v766, %v958
      %v991 = vmul.f32 %v767, %v959
      %v992 = vmul.f32 %v768, %v960
      %v993 = vmul.f32 %v769, %v961
      %v994 = vmul.f32 %v770, %v962
      %v995 = vmul.f32 %v771, %v963
      %v996 = vmul.f32 %v772, %v964
      %v997 = vmul.f32 %v773, %v965
      %v998 = vmul.f32 %v774, %v966
      %v999 = vmul.f32 %v775, %v967
      %v1000 = vmul.f32 %v776, %v968
      %v1001 = vmul.f32 %v777, %v969
      %v1002 = vmul.f32 %v778, %v970
      %v1003 = vmul.f32 %v779, %v971
      %v1004 = vadd.f32 %v972, 0.2548296
      %v1005 = vadd.f32 %v973, 0.2548296
      %v1006 = vadd.f32 %v974, 0.2548296
      %v1007 = vadd.f32 %v975, 0.2548296
      %v1008 = vadd.f32 %v976, 0.2548296
      %v1009 = vadd.f32 %v977, 0.2548296
      %v1010 = vadd.f32 %v978, 0.2548296
      %v1011 = vadd.f32 %v979, 0.2548296
      %v1012 = vadd.f32 %v980, 0.2548296
      %v1013 = vadd.f32 %v981, 0.2548296
      %v1014 = vadd.f32 %v982, 0.2548296
      %v1015 = vadd.f32 %v983, 0.2548296
      %v1016 = vadd.f32 %v984, 0.2548296
      %v1017 = vadd.f32 %v985, 0.2548296
      %v1018 = vadd.f32 %v986, 0.2548296
      %v1019 = vadd.f32 %v987, 0.2548296
      %v1020 = vadd.f32 %v988, 0.2548296
      %v1021 = vadd.f32 %v989, 0.2548296
      %v1022 = vadd.f32 %v990, 0.2548296
      %v1023 = vadd.f32 %v991, 0.2548296
      %v1024 = vadd.f32 %v992, 0.2548296
      %v1025 = vadd.f32 %v993, 0.2548296
      %v1026 = vadd.f32 %v994, 0.2548296
      %v1027 = vadd.f32 %v995, 0.2548296
      %v1028 = vadd.f32 %v996, 0.2548296
      %v1029 = vadd.f32 %v997, 0.2548296
      %v1030 = vadd.f32 %v998, 0.2548296
      %v1031 = vadd.f32 %v999, 0.2548296
      %v1032 = vadd.f32 %v1000, 0.2548296
      %v1033 = vadd.f32 %v1001, 0.2548296
      %v1034 = vadd.f32 %v1002, 0.2548296
      %v1035 = vadd.f32 %v1003, 0.2548296
      %v1036 = vmul.f32 %v748, %v1004
      %v1037 = vmul.f32 %v749, %v1005
      %v1038 = vmul.f32 %v750, %v1006
      %v1039 = vmul.f32 %v751, %v1007
      %v1040 = vmul.f32 %v752, %v1008
      %v1041 = vmul.f32 %v753, %v1009
      %v1042 = vmul.f32 %v754, %v1010
      %v1043 = vmul.f32 %v755, %v1011
      %v1044 = vmul.f32 %v756, %v1012
      %v1045 = vmul.f32 %v757, %v1013
      %v1046 = vmul.f32 %v758, %v1014
      %v1047 = vmul.f32 %v759, %v1015
      %v1048 = vmul.f32 %v760, %v1016
      %v1049 = vmul.f32 %v761, %v1017
      %v1050 = vmul.f32 %v762, %v1018
      %v1051 = vmul.f32 %v763, %v1019
      %v1052 = vmul.f32 %v764, %v1020
      %v1053 = vmul.f32 %v765, %v1021
      %v1054 = vmul.f32 %v766, %v1022
      %v1055 = vmul.f32 %v767, %v1023
      %v1056 = vmul.f32 %v768, %v1024
      %v1057 = vmul.f32 %v769, %v1025
      %v1058 = vmul.f32 %v770, %v1026
      %v1059 = vmul.f32 %v771, %v1027
      %v1060 = vmul.f32 %v772, %v1028
      %v1061 = vmul.f32 %v773, %v1029
      %v1062 = vmul.f32 %v774, %v1030
      %v1063 = vmul.f32 %v775, %v1031
      %v1064 = vmul.f32 %v776, %v1032
      %v1065 = vmul.f32 %v777, %v1033
      %v1066 = vmul.f32 %v778, %v1034
      %v1067 = vmul.f32 %v779, %v1035
      %v1068 = vsub.f32 0.0, %v652
      %v1069 = vsub.f32 0.0, %v653
      %v1070 = vsub.f32 0.0, %v654
      %v1071 = vsub.f32 0.0, %v655
      %v1072 = vsub.f32 0.0, %v656
      %v1073 = vsub.f32 0.0, %v657
      %v1074 = vsub.f32 0.0, %v658
      %v1075 = vsub.f32 0.0, %v659
      %v1076 = vsub.f32 0.0, %v660
      %v1077 = vsub.f32 0.0, %v661
      %v1078 = vsub.f32 0.0, %v662
      %v1079 = vsub.f32 0.0, %v663
      %v1080 = vsub.f32 0.0, %v664
      %v1081 = vsub.f32 0.0, %v665
      %v1082 = vsub.f32 0.0, %v666
      %v1083 = vsub.f32 0.0, %v667
      %v1084 = vsub.f32 0.0, %v668
      %v1085 = vsub.f32 0.0, %v669
      %v1086 = vsub.f32 0.0, %v670
      %v1087 = vsub.f32 0.0, %v671
      %v1088 = vsub.f32 0.0, %v672
      %v1089 = vsub.f32 0.0, %v673
      %v1090 = vsub.f32 0.0, %v674
      %v1091 = vsub.f32 0.0, %v675
      %v1092 = vsub.f32 0.0, %v676
      %v1093 = vsub.f32 0.0, %v677
      %v1094 = vsub.f32 0.0, %v678
      %v1095 = vsub.f32 0.0, %v679
      %v1096 = vsub.f32 0.0, %v680
      %v1097 = vsub.f32 0.0, %v681
      %v1098 = vsub.f32 0.0, %v682
      %v1099 = vsub.f32 0.0, %v683
      %v1100 = vmul.f32 %v1068, %v652
      %v1101 = vmul.f32 %v1069, %v653
      %v1102 = vmul.f32 %v1070, %v654
      %v1103 = vmul.f32 %v1071, %v655
      %v1104 = vmul.f32 %v1072, %v656
      %v1105 = vmul.f32 %v1073, %v657
      %v1106 = vmul.f32 %v1074, %v658
      %v1107 = vmul.f32 %v1075, %v659
      %v1108 = vmul.f32 %v1076, %v660
      %v1109 = vmul.f32 %v1077, %v661
      %v1110 = vmul.f32 %v1078, %v662
      %v1111 = vmul.f32 %v1079, %v663
      %v1112 = vmul.f32 %v1080, %v664
      %v1113 = vmul.f32 %v1081, %v665
      %v1114 = vmul.f32 %v1082, %v666
      %v1115 = vmul.f32 %v1083, %v667
      %v1116 = vmul.f32 %v1084, %v668
      %v1117 = vmul.f32 %v1085, %v669
      %v1118 = vmul.f32 %v1086, %v670
      %v1119 = vmul.f32 %v1087, %v671
      %v1120 = vmul.f32 %v1088, %v672
      %v1121 = vmul.f32 %v1089, %v673
      %v1122 = vmul.f32 %v1090, %v674
      %v1123 = vmul.f32 %v1091, %v675
      %v1124 = vmul.f32 %v1092, %v676
      %v1125 = vmul.f32 %v1093, %v677
      %v1126 = vmul.f32 %v1094, %v678
      %v1127 = vmul.f32 %v1095, %v679
      %v1128 = vmul.f32 %v1096, %v680
      %v1129 = vmul.f32 %v1097, %v681
      %v1130 = vmul.f32 %v1098, %v682
      %v1131 = vmul.f32 %v1099, %v683
      %v1132 = vmul.f32 %v1100, 1.442695
      %v1133 = vpow.pop %v1132
      %v1134 = vmul.f32 %v1101, 1.442695
      %v1135 = vpow.pop %v1134
      %v1136 = vmul.f32 %v1102, 1.442695
      %v1137 = vpow.pop %v1136
      %v1138 = vmul.f32 %v1103, 1.442695
      %v1139 = vpow.pop %v1138
      %v1140 = vmul.f32 %v1104, 1.442695
      %v1141 = vpow.pop %v1140
      %v1142 = vmul.f32 %v1105, 1.442695
      %v1143 = vpow.pop %v1142
      %v1144 = vmul.f32 %v1106, 1.442695
      %v1145 = vpow.pop %v1144
      %v1146 = vmul.f32 %v1107, 1.442695
      %v1147 = vpow.pop %v1146
      %v1148 = vmul.f32 %v1108, 1.442695
      %v1149 = vpow.pop %v1148
      %v1150 = vmul.f32 %v1109, 1.442695
      %v1151 = vpow.pop %v1150
      %v1152 = vmul.f32 %v1110, 1.442695
      %v1153 = vpow.pop %v1152
      %v1154 = vmul.f32 %v1111, 1.442695
      %v1155 = vpow.pop %v1154
      %v1156 = vmul.f32 %v1112, 1.442695
      %v1157 = vpow.pop %v1156
      %v1158 = vmul.f32 %v1113, 1.442695
      %v1159 = vpow.pop %v1158
      %v1160 = vmul.f32 %v1114, 1.442695
      %v1161 = vpow.pop %v1160
      %v1162 = vmul.f32 %v1115, 1.442695
      %v1163 = vpow.pop %v1162
      %v1164 = vmul.f32 %v1116, 1.442695
      %v1165 = vpow.pop %v1164
      %v1166 = vmul.f32 %v1117, 1.442695
      %v1167 = vpow.pop %v1166
      %v1168 = vmul.f32 %v1118, 1.442695
      %v1169 = vpow.pop %v1168
      %v1170 = vmul.f32 %v1119, 1.442695
      %v1171 = vpow.pop %v1170
      %v1172 = vmul.f32 %v1120, 1.442695
      %v1173 = vpow.pop %v1172
      %v1174 = vmul.f32 %v1121, 1.442695
      %v1175 = vpow.pop %v1174
      %v1176 = vmul.f32 %v1122, 1.442695
      %v1177 = vpow.pop %v1176
      %v1178 = vmul.f32 %v1123, 1.442695
      %v1179 = vpow.pop %v1178
      %v1180 = vmul.f32 %v1124, 1.442695
      %v1181 = vpow.pop %v1180
      %v1182 = vmul.f32 %v1125, 1.442695
      %v1183 = vpow.pop %v1182
      %v1184 = vmul.f32 %v1126, 1.442695
      %v1185 = vpow.pop %v1184
      %v1186 = vmul.f32 %v1127, 1.442695
      %v1187 = vpow.pop %v1186
      %v1188 = vmul.f32 %v1128, 1.442695
      %v1189 = vpow.pop %v1188
      %v1190 = vmul.f32 %v1129, 1.442695
      %v1191 = vpow.pop %v1190
      %v1192 = vmul.f32 %v1130, 1.442695
      %v1193 = vpow.pop %v1192
      %v1194 = vmul.f32 %v1131, 1.442695
      %v1195 = vpow.pop %v1194
      %v1196 = vmul.f32 %v1036, %v1133
      %v1197 = vmul.f32 %v1037, %v1135
      %v1198 = vmul.f32 %v1038, %v1137
      %v1199 = vmul.f32 %v1039, %v1139
      %v1200 = vmul.f32 %v1040, %v1141
      %v1201 = vmul.f32 %v1041, %v1143
      %v1202 = vmul.f32 %v1042, %v1145
      %v1203 = vmul.f32 %v1043, %v1147
      %v1204 = vmul.f32 %v1044, %v1149
      %v1205 = vmul.f32 %v1045, %v1151
      %v1206 = vmul.f32 %v1046, %v1153
      %v1207 = vmul.f32 %v1047, %v1155
      %v1208 = vmul.f32 %v1048, %v1157
      %v1209 = vmul.f32 %v1049, %v1159
      %v1210 = vmul.f32 %v1050, %v1161
      %v1211 = vmul.f32 %v1051, %v1163
      %v1212 = vmul.f32 %v1052, %v1165
      %v1213 = vmul.f32 %v1053, %v1167
      %v1214 = vmul.f32 %v1054, %v1169
      %v1215 = vmul.f32 %v1055, %v1171
      %v1216 = vmul.f32 %v1056, %v1173
      %v1217 = vmul.f32 %v1057, %v1175
      %v1218 = vmul.f32 %v1058, %v1177
      %v1219 = vmul.f32 %v1059, %v1179
      %v1220 = vmul.f32 %v1060, %v1181
      %v1221 = vmul.f32 %v1061, %v1183
      %v1222 = vmul.f32 %v1062, %v1185
      %v1223 = vmul.f32 %v1063, %v1187
      %v1224 = vmul.f32 %v1064, %v1189
      %v1225 = vmul.f32 %v1065, %v1191
      %v1226 = vmul.f32 %v1066, %v1193
      %v1227 = vmul.f32 %v1067, %v1195
      %v1228 = vsub.f32 1.0, %v1196
      %v1229 = vsub.f32 1.0, %v1197
      %v1230 = vsub.f32 1.0, %v1198
      %v1231 = vsub.f32 1.0, %v1199
      %v1232 = vsub.f32 1.0, %v1200
      %v1233 = vsub.f32 1.0, %v1201
      %v1234 = vsub.f32 1.0, %v1202
      %v1235 = vsub.f32 1.0, %v1203
      %v1236 = vsub.f32 1.0, %v1204
      %v1237 = vsub.f32 1.0, %v1205
      %v1238 = vsub.f32 1.0, %v1206
      %v1239 = vsub.f32 1.0, %v1207
      %v1240 = vsub.f32 1.0, %v1208
      %v1241 = vsub.f32 1.0, %v1209
      %v1242 = vsub.f32 1.0, %v1210
      %v1243 = vsub.f32 1.0, %v1211
      %v1244 = vsub.f32 1.0, %v1212
      %v1245 = vsub.f32 1.0, %v1213
      %v1246 = vsub.f32 1.0, %v1214
      %v1247 = vsub.f32 1.0, %v1215
      %v1248 = vsub.f32 1.0, %v1216
      %v1249 = vsub.f32 1.0, %v1217
      %v1250 = vsub.f32 1.0, %v1218
      %v1251 = vsub.f32 1.0, %v1219
      %v1252 = vsub.f32 1.0, %v1220
      %v1253 = vsub.f32 1.0, %v1221
      %v1254 = vsub.f32 1.0, %v1222
      %v1255 = vsub.f32 1.0, %v1223
      %v1256 = vsub.f32 1.0, %v1224
      %v1257 = vsub.f32 1.0, %v1225
      %v1258 = vsub.f32 1.0, %v1226
      %v1259 = vsub.f32 1.0, %v1227
      %vm1260 = vcmp.lt.f32.partialorder %v620, 0.0
      %vm1261 = vcmp.lt.f32.partialorder %v621, 0.0
      %vm1262 = vcmp.lt.f32.partialorder %v622, 0.0
      %vm1263 = vcmp.lt.f32.partialorder %v623, 0.0
      %vm1264 = vcmp.lt.f32.partialorder %v624, 0.0
      %vm1265 = vcmp.lt.f32.partialorder %v625, 0.0
      %vm1266 = vcmp.lt.f32.partialorder %v626, 0.0
      %vm1267 = vcmp.lt.f32.partialorder %v627, 0.0
      %vm1268 = vcmp.lt.f32.partialorder %v628, 0.0
      %vm1269 = vcmp.lt.f32.partialorder %v629, 0.0
      %vm1270 = vcmp.lt.f32.partialorder %v630, 0.0
      %vm1271 = vcmp.lt.f32.partialorder %v631, 0.0
      %vm1272 = vcmp.lt.f32.partialorder %v632, 0.0
      %vm1273 = vcmp.lt.f32.partialorder %v633, 0.0
      %vm1274 = vcmp.lt.f32.partialorder %v634, 0.0
      %vm1275 = vcmp.lt.f32.partialorder %v635, 0.0
      %vm1276 = vcmp.lt.f32.partialorder %v636, 0.0
      %vm1277 = vcmp.lt.f32.partialorder %v637, 0.0
      %vm1278 = vcmp.lt.f32.partialorder %v638, 0.0
      %vm1279 = vcmp.lt.f32.partialorder %v639, 0.0
      %vm1280 = vcmp.lt.f32.partialorder %v640, 0.0
      %vm1281 = vcmp.lt.f32.partialorder %v641, 0.0
      %vm1282 = vcmp.lt.f32.partialorder %v642, 0.0
      %vm1283 = vcmp.lt.f32.partialorder %v643, 0.0
      %vm1284 = vcmp.lt.f32.partialorder %v644, 0.0
      %vm1285 = vcmp.lt.f32.partialorder %v645, 0.0
      %vm1286 = vcmp.lt.f32.partialorder %v646, 0.0
      %vm1287 = vcmp.lt.f32.partialorder %v647, 0.0
      %vm1288 = vcmp.lt.f32.partialorder %v648, 0.0
      %vm1289 = vcmp.lt.f32.partialorder %v649, 0.0
      %vm1290 = vcmp.lt.f32.partialorder %v650, 0.0
      %vm1291 = vcmp.lt.f32.partialorder %v651, 0.0
      %v1292 = vsub.f32 0.0, %v1228
      %v1293 = vsub.f32 0.0, %v1229
      %v1294 = vsub.f32 0.0, %v1230
      %v1295 = vsub.f32 0.0, %v1231
      %v1296 = vsub.f32 0.0, %v1232
      %v1297 = vsub.f32 0.0, %v1233
      %v1298 = vsub.f32 0.0, %v1234
      %v1299 = vsub.f32 0.0, %v1235
      %v1300 = vsub.f32 0.0, %v1236
      %v1301 = vsub.f32 0.0, %v1237
      %v1302 = vsub.f32 0.0, %v1238
      %v1303 = vsub.f32 0.0, %v1239
      %v1304 = vsub.f32 0.0, %v1240
      %v1305 = vsub.f32 0.0, %v1241
      %v1306 = vsub.f32 0.0, %v1242
      %v1307 = vsub.f32 0.0, %v1243
      %v1308 = vsub.f32 0.0, %v1244
      %v1309 = vsub.f32 0.0, %v1245
      %v1310 = vsub.f32 0.0, %v1246
      %v1311 = vsub.f32 0.0, %v1247
      %v1312 = vsub.f32 0.0, %v1248
      %v1313 = vsub.f32 0.0, %v1249
      %v1314 = vsub.f32 0.0, %v1250
      %v1315 = vsub.f32 0.0, %v1251
      %v1316 = vsub.f32 0.0, %v1252
      %v1317 = vsub.f32 0.0, %v1253
      %v1318 = vsub.f32 0.0, %v1254
      %v1319 = vsub.f32 0.0, %v1255
      %v1320 = vsub.f32 0.0, %v1256
      %v1321 = vsub.f32 0.0, %v1257
      %v1322 = vsub.f32 0.0, %v1258
      %v1323 = vsub.f32 0.0, %v1259
      %v1324 = vsel %vm1260, %v1292, %v1228
      %v1325 = vsel %vm1261, %v1293, %v1229
      %v1326 = vsel %vm1262, %v1294, %v1230
      %v1327 = vsel %vm1263, %v1295, %v1231
      %v1328 = vsel %vm1264, %v1296, %v1232
      %v1329 = vsel %vm1265, %v1297, %v1233
      %v1330 = vsel %vm1266, %v1298, %v1234
      %v1331 = vsel %vm1267, %v1299, %v1235
      %v1332 = vsel %vm1268, %v1300, %v1236
      %v1333 = vsel %vm1269, %v1301, %v1237
      %v1334 = vsel %vm1270, %v1302, %v1238
      %v1335 = vsel %vm1271, %v1303, %v1239
      %v1336 = vsel %vm1272, %v1304, %v1240
      %v1337 = vsel %vm1273, %v1305, %v1241
      %v1338 = vsel %vm1274, %v1306, %v1242
      %v1339 = vsel %vm1275, %v1307, %v1243
      %v1340 = vsel %vm1276, %v1308, %v1244
      %v1341 = vsel %vm1277, %v1309, %v1245
      %v1342 = vsel %vm1278, %v1310, %v1246
      %v1343 = vsel %vm1279, %v1311, %v1247
      %v1344 = vsel %vm1280, %v1312, %v1248
      %v1345 = vsel %vm1281, %v1313, %v1249
      %v1346 = vsel %vm1282, %v1314, %v1250
      %v1347 = vsel %vm1283, %v1315, %v1251
      %v1348 = vsel %vm1284, %v1316, %v1252
      %v1349 = vsel %vm1285, %v1317, %v1253
      %v1350 = vsel %vm1286, %v1318, %v1254
      %v1351 = vsel %vm1287, %v1319, %v1255
      %v1352 = vsel %vm1288, %v1320, %v1256
      %v1353 = vsel %vm1289, %v1321, %v1257
      %v1354 = vsel %vm1290, %v1322, %v1258
      %v1355 = vsel %vm1291, %v1323, %v1259
      %v1356 = vadd.f32 %v1324, 1.0
      %v1357 = vadd.f32 %v1325, 1.0
      %v1358 = vadd.f32 %v1326, 1.0
      %v1359 = vadd.f32 %v1327, 1.0
      %v1360 = vadd.f32 %v1328, 1.0
      %v1361 = vadd.f32 %v1329, 1.0
      %v1362 = vadd.f32 %v1330, 1.0
      %v1363 = vadd.f32 %v1331, 1.0
      %v1364 = vadd.f32 %v1332, 1.0
      %v1365 = vadd.f32 %v1333, 1.0
      %v1366 = vadd.f32 %v1334, 1.0
      %v1367 = vadd.f32 %v1335, 1.0
      %v1368 = vadd.f32 %v1336, 1.0
      %v1369 = vadd.f32 %v1337, 1.0
      %v1370 = vadd.f32 %v1338, 1.0
      %v1371 = vadd.f32 %v1339, 1.0
      %v1372 = vadd.f32 %v1340, 1.0
      %v1373 = vadd.f32 %v1341, 1.0
      %v1374 = vadd.f32 %v1342, 1.0
      %v1375 = vadd.f32 %v1343, 1.0
      %v1376 = vadd.f32 %v1344, 1.0
      %v1377 = vadd.f32 %v1345, 1.0
      %v1378 = vadd.f32 %v1346, 1.0
      %v1379 = vadd.f32 %v1347, 1.0
      %v1380 = vadd.f32 %v1348, 1.0
      %v1381 = vadd.f32 %v1349, 1.0
      %v1382 = vadd.f32 %v1350, 1.0
      %v1383 = vadd.f32 %v1351, 1.0
      %v1384 = vadd.f32 %v1352, 1.0
      %v1385 = vadd.f32 %v1353, 1.0
      %v1386 = vadd.f32 %v1354, 1.0
      %v1387 = vadd.f32 %v1355, 1.0
      %v1388 = vmul.f32 %v588, %v1356
      %v1389 = vmul.f32 %v589, %v1357
      %v1390 = vmul.f32 %v590, %v1358
      %v1391 = vmul.f32 %v591, %v1359
      %v1392 = vmul.f32 %v592, %v1360
      %v1393 = vmul.f32 %v593, %v1361
      %v1394 = vmul.f32 %v594, %v1362
      %v1395 = vmul.f32 %v595, %v1363
      %v1396 = vmul.f32 %v596, %v1364
      %v1397 = vmul.f32 %v597, %v1365
      %v1398 = vmul.f32 %v598, %v1366
      %v1399 = vmul.f32 %v599, %v1367
      %v1400 = vmul.f32 %v600, %v1368
      %v1401 = vmul.f32 %v601, %v1369
      %v1402 = vmul.f32 %v602, %v1370
      %v1403 = vmul.f32 %v603, %v1371
      %v1404 = vmul.f32 %v604, %v1372
      %v1405 = vmul.f32 %v605, %v1373
      %v1406 = vmul.f32 %v606, %v1374
      %v1407 = vmul.f32 %v607, %v1375
      %v1408 = vmul.f32 %v608, %v1376
      %v1409 = vmul.f32 %v609, %v1377
      %v1410 = vmul.f32 %v610, %v1378
      %v1411 = vmul.f32 %v611, %v1379
      %v1412 = vmul.f32 %v612, %v1380
      %v1413 = vmul.f32 %v613, %v1381
      %v1414 = vmul.f32 %v614, %v1382
      %v1415 = vmul.f32 %v615, %v1383
      %v1416 = vmul.f32 %v616, %v1384
      %v1417 = vmul.f32 %v617, %v1385
      %v1418 = vmul.f32 %v618, %v1386
      %v1419 = vmul.f32 %v619, %v1387
      %v1420 = vld [vmem:[%s3] sm:$0x7]
      %v1421 = vld [vmem:[%s4] sm:$0x7]
      %1423 = vset.pattern.permute.xlu0 0
      %1424 = vperm.xlu0 %1423, %v1421
      %v1425 = vpop.permute.xlu0 %1424
      %1427 = vmatprep.subr.mxu0 %v1419
      %1428 = vmatpush1.msra.mxu0 %v1418
      %1429 = vmatprep.subr.mxu0 %v1417
      %1430 = vmatpush1.msra.mxu0 %v1416
      %1431 = vmatprep.subr.mxu0 %v1415
      %1432 = vmatpush1.msra.mxu0 %v1414
      %1433 = vmatprep.subr.mxu0 %v1413
      %1434 = vmatpush1.msra.mxu0 %v1412
      %1435 = vmatprep.subr.mxu0 %v1411
      %1436 = vmatpush1.msra.mxu0 %v1410
      %1437 = vmatprep.subr.mxu0 %v1409
      %1438 = vmatpush1.msra.mxu0 %v1408
      %1439 = vmatprep.subr.mxu0 %v1407
      %1440 = vmatpush1.msra.mxu0 %v1406
      %1441 = vmatprep.subr.mxu0 %v1405
      %1442 = vmatpush1.msra.mxu0 %v1404
      %1443 = vmatprep.subr.mxu0 %v1403
      %1444 = vmatpush1.msra.mxu0 %v1402
      %1445 = vmatprep.subr.mxu0 %v1401
      %1446 = vmatpush1.msra.mxu0 %v1400
      %1447 = vmatprep.subr.mxu0 %v1399
      %1448 = vmatpush1.msra.mxu0 %v1398
      %1449 = vmatprep.subr.mxu0 %v1397
      %1450 = vmatpush1.msra.mxu0 %v1396
      %1451 = vmatprep.subr.mxu0 %v1395
      %1452 = vmatpush1.msra.mxu0 %v1394
      %1453 = vmatprep.subr.mxu0 %v1393
      %1454 = vmatpush1.msra.mxu0 %v1392
      %1455 = vmatprep.subr.mxu0 %v1391
      %1456 = vmatpush1.msra.mxu0 %v1390
      %1457 = vmatprep.subr.mxu0 %v1389
      %1458 = vmatpush1.msra.mxu0 %v1388
      %1459 = vmatprep.subr.mxu0 0.0
      %1460 = vmatpush2.msra.mxu0 0.0
      %1461 = vmatprep.subr.mxu0 0.0
      %1462 = vmatpush2.msra.mxu0 0.0
      %1463 = vmatprep.subr.mxu0 0.0
      %1464 = vmatpush2.msra.mxu0 0.0
      %1465 = vmatprep.subr.mxu0 0.0
      %1466 = vmatpush2.msra.mxu0 0.0
      %1467 = vmatprep.subr.mxu0 0.0
      %1468 = vmatpush2.msra.mxu0 0.0
      %1469 = vmatprep.subr.mxu0 0.0
      %1470 = vmatpush2.msra.mxu0 0.0
      %1471 = vmatprep.subr.mxu0 0.0
      %1472 = vmatpush2.msra.mxu0 0.0
      %1473 = vmatprep.subr.mxu0 0.0
      %1474 = vmatpush2.msra.mxu0 0.0
      %1475 = vmatprep.subr.mxu0 0.0
      %1476 = vmatpush2.msra.mxu0 0.0
      %1477 = vmatprep.subr.mxu0 0.0
      %1478 = vmatpush2.msra.mxu0 0.0
      %1479 = vmatprep.subr.mxu0 0.0
      %1480 = vmatpush2.msra.mxu0 0.0
      %1481 = vmatprep.subr.mxu0 0.0
      %1482 = vmatpush2.msra.mxu0 0.0
      %1483 = vmatprep.subr.mxu0 0.0
      %1484 = vmatpush2.msra.mxu0 0.0
      %1485 = vmatprep.subr.mxu0 0.0
      %1486 = vmatpush2.msra.mxu0 0.0
      %1487 = vmatprep.subr.mxu0 0.0
      %1488 = vmatpush2.msra.mxu0 0.0
      %1489 = vmatprep.subr.mxu0 0.0
      %1490 = vmatpush2.msra.mxu0 0.0
      %1491 = vmatprep.mubr.f32.mxu0 0.0
      %1492 = vmatmul.mubr.f32.gmra.mxu0 %v1420
      %v1493 = vpop.f32.mrf.mxu0
      %v1494 = vadd.f32 %v1425, %v1493
      %v1495 = vpop.f32.mrf.mxu0
      %v1496 = vadd.f32 %v1425, %v1495
      %1497 = vdwg.mxu0
      %v1500 = vcombine.low %v1494, %v1496
      %1502 = vst [vmem:[%s262] sm:$0x77] %v1500
      %s1503 = smul.u32 2, %s21
      %p1504 = scmp.lt.s32.totalorder %s20, 1
      %s1505 = scalar_select %p1504, %s20, 1
      %p1506 = scmp.lt.s32.totalorder %s1503, 1
      %s1507 = scalar_select %p1506, %s1503, 1
      %s1508 = smul.addr %s1505, 2
      %s1509 = sadd.s32 %s1507, %s1508
      %s1510 = smul.addr %s1509, 4
      %s1511 = scalar_lea.vmem %s5, %s1510
      // Predicated region
      $region41: #{fno_ensemble_rbc1_forward.37} parent=39 // pred_check
        %p1512 = pneg %p160
      $region42: #{fno_ensemble_rbc1_forward.37} parent=39 // pred_check_branch
        %1514 = sbr.rel (%p1512) target = $region44
      $region43: #{fno_ensemble_rbc1_forward.37} parent=39 // pred_region
        %s1515 = smul.u32 2, %s21
      $region44: #{fno_ensemble_rbc1_forward.37} parent=39 // pred_fallthru
        _
    $region40: #{fno_ensemble_rbc1_forward.37} parent=5 // pred_fallthru
      _
    %p1516 = scmp.le.s32.totalorder 2, %s11
    // Predicated region
    $region45: #{fno_ensemble_rbc1_forward.37} parent=5 // pred_check
      %p1517 = pneg %p1516
    $region46: #{fno_ensemble_rbc1_forward.37} parent=5 // pred_check_branch
      %1519 = sbr.rel (%p1517) target = $region48
    $region47: #{fno_ensemble_rbc1_forward.37} parent=5 // pred_region
      %s1520 = ssub.s32 %s11, 2
      // Predicated region
      $region49: #{fno_ensemble_rbc1_forward.37} parent=47 // pred_check
        %p1521 = pneg %p166
      $region50: #{fno_ensemble_rbc1_forward.37} parent=47 // pred_check_branch
        %1523 = sbr.rel (%p1521) target = $region52
      $region51: #{fno_ensemble_rbc1_forward.37} parent=47 // pred_region
        %s1524 = smul.u32 2, %s23
        %p1525 = scmp.lt.s32.totalorder %s22, 1
        %s1526 = scalar_select %p1525, %s22, 1
        %p1527 = scmp.lt.s32.totalorder %s1524, 1
        %s1528 = scalar_select %p1527, %s1524, 1
        %s1529 = smul.addr %s1526, 2
        %s1530 = sadd.s32 %s1528, %s1529
        %s1531 = smul.addr %s1530, 4
        %s1532 = scalar_lea.vmem %s5, %s1531
      $region52: #{fno_ensemble_rbc1_forward.37} parent=47 // pred_fallthru
        _
    $region48: #{fno_ensemble_rbc1_forward.37} parent=5 // pred_fallthru
      _
  $region6: #{fno_ensemble_rbc1_forward.37} parent=0 // loop_footer
    %s15 = sadd.s32 1, %s11
  $region7: #{fno_ensemble_rbc1_forward.37} parent=0 // loop_footer_branch
    %10 = sbr.rel target = $region3
  $region8: #{fno_ensemble_rbc1_forward.37} parent=0 // loop_exit
    _

// kernel: fno_ensemble_rbc1_forward.25
$region0: #{fno_ensemble_rbc1_forward.25}
  #allocation0 [shape = 'u32[]', space=smem, size = 0x4, offset = 0x4, fixed_abs, tag = 'smem constant byte address 0x4 - core index']
  #allocation1 [shape = 'u32[144,128]{1,0:T(1,128)}', space=vmem, size = 0x12000, scoped, tag = 'internal scratch']
  %s0 = inlined_call_operand.vmem [shape: f32[2,10,256], index: 0, kind: input, shape index: {}]
  %s1 = inlined_call_operand.vmem [shape: f32[2,8,256], index: 1, kind: input, shape index: {}]
  %s2 = inlined_call_operand.vmem [shape: f32[8,10], index: 2, kind: input, shape index: {}]
  %s3 = inlined_call_operand.vmem [shape: f32[8,1], index: 3, kind: input, shape index: {}]
  %s4 = inlined_call_operand.vmem [shape: f32[2,8,256], index: 4, kind: output, shape index: {}]
  %s5 = sld [smem:[#allocation0]]
  $region49: #{fno_ensemble_rbc1_forward.25} parent=0
    _
  %s7 = ssub.s32 1, %s5
  %s8 = scalar_select 0, %s7, %s5
  loop: start=0, step=1, limit=4
  $region2: #{fno_ensemble_rbc1_forward.25} parent=0 // loop_pre_header
    _
  $region3: #{fno_ensemble_rbc1_forward.25} parent=0 // loop_header
    %s10 = sphi 0, %s14
    %p11 = scmp.ge.s32.totalorder %s10, 4
    %s17 = sphi 0, %s29
    %s18 = sphi 0, %s25
    %s19 = sphi 0, %s17
    %s20 = sphi 0, %s18
    %s21 = sphi 0, %s19
    %s22 = sphi 0, %s20
    %s34 = sphi 0, %s36
    %s37 = sphi 0, %s34
    %s38 = sphi 0, %s37
    %s54 = sphi 0, %s38
    %s62 = sphi 0, %s64
    %s65 = sphi 0, %s62
    %s66 = sphi 0, %s65
    %s82 = sphi 0, %s66
    %s86 = sphi 0, %s86
    %s88 = sphi 0, %s86
    %s89 = sphi 0, %s88
    %s103 = sphi 0, %s89
    %s107 = sphi 0, %s107
    %s109 = sphi 0, %s107
    %s110 = sphi 0, %s109
    %s124 = sphi 0, %s110
    %s132 = sphi 0, %s134
    %s135 = sphi 0, %s132
    %s136 = sphi 0, %s135
    %s152 = sphi 0, %s136
  $region4: #{fno_ensemble_rbc1_forward.25} parent=0 // loop_header_branch
    %13 = sbr.rel (%p11) target = $region8
  $region5: #{fno_ensemble_rbc1_forward.25} parent=0 // loop_body
    %s15 = ssub.s32 %s10, 1
    %s16 = ssub.s32 %s10, 2
    %s23 = sadd.s32 1, %s18
    %p24 = scmp.ge.s32.totalorder %s23, 1
    %s25 = scalar_select %p24, 0, %s23
    %s26 = sadd.s32 1, %s17
    %s27 = scalar_select %p24, %s26, %s17
    %p28 = scmp.ge.s32.totalorder %s27, 2
    %s29 = scalar_select %p28, 0, %s27
    %s30 = ssub.s32 %s17, %s29
    %s31 = ssub.s32 %s18, %s25
    %s32 = sor.u32 %s30, %s31
    %p33 = scmp.eq.s32.totalorder %s32, 0
    %s35 = sadd.s32 %s34, 1
    %s36 = scalar_select %p33, %s34, %s35
    %p39 = pneg %p33
    %p40 = scmp.eq.s32.totalorder %s10, 1
    %p41 = por %p39, %p40
    %p42 = scmp.ne.s32.totalorder %s34, %s37
    %p43 = scmp.eq.s32.totalorder %s10, 0
    %p44 = por %p42, %p43
    %p45 = scmp.ne.s32.totalorder %s34, %s37
    %p46 = scmp.eq.s32.totalorder %s15, 1
    %p47 = por %p45, %p46
    %p48 = scmp.ne.s32.totalorder %s37, %s38
    %p49 = scmp.eq.s32.totalorder %s15, 0
    %p50 = por %p48, %p49
    %p51 = scmp.ne.s32.totalorder %s37, %s38
    %p52 = scmp.eq.s32.totalorder %s16, 1
    %p53 = por %p51, %p52
    %p55 = scmp.ne.s32.totalorder %s38, %s54
    %p56 = scmp.eq.s32.totalorder %s16, 0
    %p57 = por %p55, %p56
    %s58 = ssub.s32 %s17, %s29
    %s59 = ssub.s32 %s18, %s25
    %s60 = sor.u32 %s58, %s59
    %p61 = scmp.eq.s32.totalorder %s60, 0
    %s63 = sadd.s32 %s62, 1
    %s64 = scalar_select %p61, %s62, %s63
    %p67 = pneg %p61
    %p68 = scmp.eq.s32.totalorder %s10, 1
    %p69 = por %p67, %p68
    %p70 = scmp.ne.s32.totalorder %s62, %s65
    %p71 = scmp.eq.s32.totalorder %s10, 0
    %p72 = por %p70, %p71
    %p73 = scmp.ne.s32.totalorder %s62, %s65
    %p74 = scmp.eq.s32.totalorder %s15, 1
    %p75 = por %p73, %p74
    %p76 = scmp.ne.s32.totalorder %s65, %s66
    %p77 = scmp.eq.s32.totalorder %s15, 0
    %p78 = por %p76, %p77
    %p79 = scmp.ne.s32.totalorder %s65, %s66
    %p80 = scmp.eq.s32.totalorder %s16, 1
    %p81 = por %p79, %p80
    %p83 = scmp.ne.s32.totalorder %s66, %s82
    %p84 = scmp.eq.s32.totalorder %s16, 0
    %p85 = por %p83, %p84
    %s87 = sadd.s32 %s86, 1
    %p90 = scmp.eq.s32.totalorder %s10, 1
    %p91 = scmp.ne.s32.totalorder %s86, %s88
    %p92 = scmp.eq.s32.totalorder %s10, 0
    %p93 = por %p91, %p92
    %p94 = scmp.ne.s32.totalorder %s86, %s88
    %p95 = scmp.eq.s32.totalorder %s15, 1
    %p96 = por %p94, %p95
    %p97 = scmp.ne.s32.totalorder %s88, %s89
    %p98 = scmp.eq.s32.totalorder %s15, 0
    %p99 = por %p97, %p98
    %p100 = scmp.ne.s32.totalorder %s88, %s89
    %p101 = scmp.eq.s32.totalorder %s16, 1
    %p102 = por %p100, %p101
    %p104 = scmp.ne.s32.totalorder %s89, %s103
    %p105 = scmp.eq.s32.totalorder %s16, 0
    %p106 = por %p104, %p105
    %s108 = sadd.s32 %s107, 1
    %p111 = scmp.eq.s32.totalorder %s10, 1
    %p112 = scmp.ne.s32.totalorder %s107, %s109
    %p113 = scmp.eq.s32.totalorder %s10, 0
    %p114 = por %p112, %p113
    %p115 = scmp.ne.s32.totalorder %s107, %s109
    %p116 = scmp.eq.s32.totalorder %s15, 1
    %p117 = por %p115, %p116
    %p118 = scmp.ne.s32.totalorder %s109, %s110
    %p119 = scmp.eq.s32.totalorder %s15, 0
    %p120 = por %p118, %p119
    %p121 = scmp.ne.s32.totalorder %s109, %s110
    %p122 = scmp.eq.s32.totalorder %s16, 1
    %p123 = por %p121, %p122
    %p125 = scmp.ne.s32.totalorder %s110, %s124
    %p126 = scmp.eq.s32.totalorder %s16, 0
    %p127 = por %p125, %p126
    %s128 = ssub.s32 %s17, %s29
    %s129 = ssub.s32 %s18, %s25
    %s130 = sor.u32 %s128, %s129
    %p131 = scmp.eq.s32.totalorder %s130, 0
    %s133 = sadd.s32 %s132, 1
    %s134 = scalar_select %p131, %s132, %s133
    %p137 = pneg %p131
    %p138 = scmp.eq.s32.totalorder %s10, 1
    %p139 = por %p137, %p138
    %p140 = scmp.ne.s32.totalorder %s132, %s135
    %p141 = scmp.eq.s32.totalorder %s10, 0
    %p142 = por %p140, %p141
    %p143 = scmp.ne.s32.totalorder %s132, %s135
    %p144 = scmp.eq.s32.totalorder %s15, 1
    %p145 = por %p143, %p144
    %p146 = scmp.ne.s32.totalorder %s135, %s136
    %p147 = scmp.eq.s32.totalorder %s15, 0
    %p148 = por %p146, %p147
    %p149 = scmp.ne.s32.totalorder %s135, %s136
    %p150 = scmp.eq.s32.totalorder %s16, 1
    %p151 = por %p149, %p150
    %p153 = scmp.ne.s32.totalorder %s136, %s152
    %p154 = scmp.eq.s32.totalorder %s16, 0
    %p155 = por %p153, %p154
    %p156 = scmp.le.s32.totalorder 1, %s10
    %p157 = scmp.lt.s32.totalorder %s10, 3
    %p158 = pnand %p156, %p157
    %p159 = pneg %p158
    // Predicated region
    $region9: #{fno_ensemble_rbc1_forward.25} parent=5 // pred_check
      _
    $region10: #{fno_ensemble_rbc1_forward.25} parent=5 // pred_check_branch
      %161 = sbr.rel (%p158) target = $region12
    $region11: #{fno_ensemble_rbc1_forward.25} parent=5 // pred_region
      %s162 = ssub.s32 %s10, 1
      // Predicated region
      $region13: #{fno_ensemble_rbc1_forward.25} parent=11 // pred_check
        %p163 = pneg %p99
      $region14: #{fno_ensemble_rbc1_forward.25} parent=11 // pred_check_branch
        %165 = sbr.rel (%p163) target = $region16
      $region15: #{fno_ensemble_rbc1_forward.25} parent=11 // pred_region
        _
      $region16: #{fno_ensemble_rbc1_forward.25} parent=11 // pred_fallthru
        _
      // Predicated region
      $region17: #{fno_ensemble_rbc1_forward.25} parent=11 // pred_check
        %p166 = pneg %p120
      $region18: #{fno_ensemble_rbc1_forward.25} parent=11 // pred_check_branch
        %168 = sbr.rel (%p166) target = $region20
      $region19: #{fno_ensemble_rbc1_forward.25} parent=11 // pred_region
        _
      $region20: #{fno_ensemble_rbc1_forward.25} parent=11 // pred_fallthru
        _
    $region12: #{fno_ensemble_rbc1_forward.25} parent=5 // pred_fallthru
      _
    %p169 = scmp.lt.s32.totalorder %s10, 2
    // Predicated region
    $region21: #{fno_ensemble_rbc1_forward.25} parent=5 // pred_check
      %p170 = pneg %p169
    $region22: #{fno_ensemble_rbc1_forward.25} parent=5 // pred_check_branch
      %172 = sbr.rel (%p170) target = $region24
    $region23: #{fno_ensemble_rbc1_forward.25} parent=5 // pred_region
      // Predicated region
      $region25: #{fno_ensemble_rbc1_forward.25} parent=23 // pred_check
        %p173 = pneg %p44
      $region26: #{fno_ensemble_rbc1_forward.25} parent=23 // pred_check_branch
        %175 = sbr.rel (%p173) target = $region28
      $region27: #{fno_ensemble_rbc1_forward.25} parent=23 // pred_region
        %s176 = smul.u32 2, %s18
        %p177 = scmp.lt.s32.totalorder %s17, 1
        %s178 = scalar_select %p177, %s17, 1
        %p179 = scmp.lt.s32.totalorder %s176, 1
        %s180 = scalar_select %p179, %s176, 1
        %s181 = smul.addr %s178, 4
        %s182 = sadd.s32 %s180, %s181
        %s183 = smul.addr %s182, 8
        %s184 = scalar_lea.vmem %s0, %s183
        %s185 = smul.u32 2, %s18
      $region28: #{fno_ensemble_rbc1_forward.25} parent=23 // pred_fallthru
        _
      // Predicated region
      $region29: #{fno_ensemble_rbc1_forward.25} parent=23 // pred_check
        %p186 = pneg %p72
      $region30: #{fno_ensemble_rbc1_forward.25} parent=23 // pred_check_branch
        %188 = sbr.rel (%p186) target = $region32
      $region31: #{fno_ensemble_rbc1_forward.25} parent=23 // pred_region
        %s189 = smul.u32 2, %s18
        %p190 = scmp.lt.s32.totalorder %s17, 1
        %s191 = scalar_select %p190, %s17, 1
        %p192 = scmp.lt.s32.totalorder %s189, 1
        %s193 = scalar_select %p192, %s189, 1
        %s194 = smul.addr %s191, 2
        %s195 = sadd.s32 %s193, %s194
        %s196 = smul.addr %s195, 8
        %s197 = scalar_lea.vmem %s1, %s196
        %s198 = smul.u32 2, %s18
      $region32: #{fno_ensemble_rbc1_forward.25} parent=23 // pred_fallthru
        _
    $region24: #{fno_ensemble_rbc1_forward.25} parent=5 // pred_fallthru
      _
    %p199 = scmp.le.s32.totalorder 1, %s10
    %p200 = scmp.lt.s32.totalorder %s10, 3
    %p201 = pnand %p199, %p200
    %p202 = pneg %p201
    // Predicated region
    $region33: #{fno_ensemble_rbc1_forward.25} parent=5 // pred_check
      _
    $region34: #{fno_ensemble_rbc1_forward.25} parent=5 // pred_check_branch
      %204 = sbr.rel (%p201) target = $region36
    $region35: #{fno_ensemble_rbc1_forward.25} parent=5 // pred_region
      %s205 = ssub.s32 %s10, 1
      %s206 = smul.u32 2, %s20
      %p207 = scmp.lt.s32.totalorder %s19, 1
      %s208 = scalar_select %p207, %s19, 1
      %p209 = scmp.lt.s32.totalorder %s206, 1
      %s210 = scalar_select %p209, %s206, 1
      %s211 = smul.addr %s208, 4
      %s212 = sadd.s32 %s210, %s211
      %s213 = smul.addr %s212, 8
      %s214 = scalar_lea.vmem %s0, %s213
      %p215 = pneg %p50
      %p216 = pneg %p47
      %s217 = smul.u32 2, %s20
      %p218 = scmp.lt.s32.totalorder %s19, 1
      %s219 = scalar_select %p218, %s19, 1
      %p220 = scmp.lt.s32.totalorder %s217, 1
      %s221 = scalar_select %p220, %s217, 1
      %s222 = smul.addr %s219, 2
      %s223 = sadd.s32 %s221, %s222
      %s224 = smul.addr %s223, 8
      %s225 = scalar_lea.vmem %s1, %s224
      %p226 = pneg %p78
      %p227 = pneg %p75
      %p228 = pneg %p99
      %p229 = pneg %p96
      %p230 = pneg %p120
      %p231 = pneg %p117
      %p232 = pneg %p148
      %p233 = pneg %p145
      %s234 = smul.u32 2, %s20
      %p235 = scmp.lt.s32.totalorder %s19, 1
      %s236 = scalar_select %p235, %s19, 1
      %p237 = scmp.lt.s32.totalorder %s234, 1
      %s238 = scalar_select %p237, %s234, 1
      %s239 = smul.addr %s236, 2
      %s240 = sadd.s32 %s238, %s239
      %s241 = smul.addr %s240, 8
      %s242 = scalar_lea.vmem %s4, %s241
      %s243 = smul.u32 2, %s20
      %p244 = scmp.lt.s32.totalorder %s19, 1
      %s245 = scalar_select %p244, %s19, 1
      %p246 = scmp.lt.s32.totalorder %s243, 1
      %s247 = scalar_select %p246, %s243, 1
      %s248 = smul.addr %s245, 4
      %s249 = sadd.s32 %s247, %s248
      %s250 = smul.addr %s249, 8
      %s251 = scalar_lea.vmem %s0, %s250
      %s252 = smul.u32 2, %s20
      %s253 = smul.u32 2, %s20
      %p254 = scmp.lt.s32.totalorder %s19, 1
      %s255 = scalar_select %p254, %s19, 1
      %p256 = scmp.lt.s32.totalorder %s253, 1
      %s257 = scalar_select %p256, %s253, 1
      %s258 = smul.addr %s255, 2
      %s259 = sadd.s32 %s257, %s258
      %s260 = smul.addr %s259, 8
      %s261 = scalar_lea.vmem %s1, %s260
      %s262 = smul.u32 2, %s20
      %s263 = smul.u32 2, %s20
      %p264 = scmp.lt.s32.totalorder %s19, 1
      %s265 = scalar_select %p264, %s19, 1
      %p266 = scmp.lt.s32.totalorder %s263, 1
      %s267 = scalar_select %p266, %s263, 1
      %s268 = smul.addr %s265, 2
      %s269 = sadd.s32 %s267, %s268
      %s270 = smul.addr %s269, 8
      %s271 = scalar_lea.vmem %s4, %s270
      %s272 = smul.u32 2, %s20
      %v273 = vld [vmem:[%s2] sm:$0xff]
      %v274 = vld [vmem:[%s251] sm:$0xff]
      %v275 = vld [vmem:[%s251 + $0x8] sm:$0xff]
      %v276 = vld [vmem:[%s251 + $0x10] sm:$0x3]
      %v277 = vld [vmem:[%s251 + $0x18] sm:$0x3]
      %v278 = vld [vmem:[%s3] sm:$0xff]
      %280 = vset.pattern.permute.xlu0 0
      %281 = vperm.xlu0 %280, %v278
      %v282 = vpop.permute.xlu0 %281
      %vm284 = vcmask 80896
      %v286 = vsel %vm284, %v273, 0
      %vm288 = vcmask 1041408
      %v290 = vsel %vm288, %v276, 0
      %v293 = vsel %vm288, %v277, 0
      %295 = vmatprep.subr.mxu0 0.0
      %296 = vmatpush1.msra.mxu0 0.0
      %297 = vmatprep.subr.mxu0 0.0
      %298 = vmatpush1.msra.mxu0 0.0
      %299 = vmatprep.subr.mxu0 0.0
      %300 = vmatpush1.msra.mxu0 0.0
      %301 = vmatprep.subr.mxu0 0.0
      %302 = vmatpush1.msra.mxu0 0.0
      %303 = vmatprep.subr.mxu0 0.0
      %304 = vmatpush1.msra.mxu0 0.0
      %305 = vmatprep.subr.mxu0 0.0
      %306 = vmatpush1.msra.mxu0 0.0
      %307 = vmatprep.subr.mxu0 0.0
      %308 = vmatpush1.msra.mxu0 0.0
      %309 = vmatprep.subr.mxu0 0.0
      %310 = vmatpush1.msra.mxu0 0.0
      %311 = vmatprep.subr.mxu0 0.0
      %312 = vmatpush1.msra.mxu0 0.0
      %313 = vmatprep.subr.mxu0 0.0
      %314 = vmatpush1.msra.mxu0 0.0
      %315 = vmatprep.subr.mxu0 0.0
      %316 = vmatpush1.msra.mxu0 0.0
      %317 = vmatprep.subr.mxu0 0.0
      %318 = vmatpush1.msra.mxu0 0.0
      %319 = vmatprep.subr.mxu0 0.0
      %320 = vmatpush1.msra.mxu0 0.0
      %321 = vmatprep.subr.mxu0 0.0
      %322 = vmatpush1.msra.mxu0 0.0
      %323 = vmatprep.subr.mxu0 %v293
      %324 = vmatpush1.msra.mxu0 %v290
      %325 = vmatprep.subr.mxu0 %v275
      %326 = vmatpush1.msra.mxu0 %v274
      %327 = vmatprep.subr.mxu0 0.0
      %328 = vmatpush2.msra.mxu0 0.0
      %329 = vmatprep.subr.mxu0 0.0
      %330 = vmatpush2.msra.mxu0 0.0
      %331 = vmatprep.subr.mxu0 0.0
      %332 = vmatpush2.msra.mxu0 0.0
      %333 = vmatprep.subr.mxu0 0.0
      %334 = vmatpush2.msra.mxu0 0.0
      %335 = vmatprep.subr.mxu0 0.0
      %336 = vmatpush2.msra.mxu0 0.0
      %337 = vmatprep.subr.mxu0 0.0
      %338 = vmatpush2.msra.mxu0 0.0
      %339 = vmatprep.subr.mxu0 0.0
      %340 = vmatpush2.msra.mxu0 0.0
      %341 = vmatprep.subr.mxu0 0.0
      %342 = vmatpush2.msra.mxu0 0.0
      %343 = vmatprep.subr.mxu0 0.0
      %344 = vmatpush2.msra.mxu0 0.0
      %345 = vmatprep.subr.mxu0 0.0
      %346 = vmatpush2.msra.mxu0 0.0
      %347 = vmatprep.subr.mxu0 0.0
      %348 = vmatpush2.msra.mxu0 0.0
      %349 = vmatprep.subr.mxu0 0.0
      %350 = vmatpush2.msra.mxu0 0.0
      %351 = vmatprep.subr.mxu0 0.0
      %352 = vmatpush2.msra.mxu0 0.0
      %353 = vmatprep.subr.mxu0 0.0
      %354 = vmatpush2.msra.mxu0 0.0
      %355 = vmatprep.subr.mxu0 0.0
      %356 = vmatpush2.msra.mxu0 0.0
      %357 = vmatprep.subr.mxu0 0.0
      %358 = vmatpush2.msra.mxu0 0.0
      %359 = vmatprep.mubr.f32.mxu0 0.0
      %360 = vmatmul.mubr.f32.gmra.mxu0 %v286
      %v361 = vpop.f32.mrf.mxu0
      %v362 = vadd.f32 %v282, %v361
      %v363 = vpop.f32.mrf.mxu0
      %v364 = vadd.f32 %v282, %v363
      %365 = vdwg.mxu0
      %v366 = vld [vmem:[%s261] sm:$0xff]
      %v367 = vld [vmem:[%s261 + $0x8] sm:$0xff]
      %v368 = vadd.f32 %v362, %v366
      %v369 = vadd.f32 %v364, %v367
      %v370 = vmul.f32 %v368, 0.5
      %v371 = vmul.f32 %v369, 0.5
      %v372 = vmul.f32 %v368, 0.70710677
      %v373 = vmul.f32 %v369, 0.70710677
      %v374 = vand.u32 2147483647, %v372
      %v375 = vand.u32 2147483647, %v373
      %v376 = vmul.f32 %v374, 0.3275911
      %v377 = vmul.f32 %v375, 0.3275911
      %v378 = vadd.f32 %v376, 1.0
      %v379 = vadd.f32 %v377, 1.0
      %v380 = vrcp.pop %v378
      %v381 = vrcp.pop %v379
      %v382 = vmul.f32 %v380, 1.0614054
      %v383 = vmul.f32 %v381, 1.0614054
      %v384 = vadd.f32 %v382, -1.4531521
      %v385 = vadd.f32 %v383, -1.4531521
      %v386 = vmul.f32 %v380, %v384
      %v387 = vmul.f32 %v381, %v385
      %v388 = vadd.f32 %v386, 1.4214138
      %v389 = vadd.f32 %v387, 1.4214138
      %v390 = vmul.f32 %v380, %v388
      %v391 = vmul.f32 %v381, %v389
      %v392 = vadd.f32 %v390, -0.28449672
      %v393 = vadd.f32 %v391, -0.28449672
      %v394 = vmul.f32 %v380, %v392
      %v395 = vmul.f32 %v381, %v393
      %v396 = vadd.f32 %v394, 0.2548296
      %v397 = vadd.f32 %v395, 0.2548296
      %v398 = vmul.f32 %v380, %v396
      %v399 = vmul.f32 %v381, %v397
      %v400 = vsub.f32 0.0, %v374
      %v401 = vsub.f32 0.0, %v375
      %v402 = vmul.f32 %v400, %v374
      %v403 = vmul.f32 %v401, %v375
      %v404 = vmul.f32 %v402, 1.442695
      %v405 = vpow.pop %v404
      %v406 = vmul.f32 %v403, 1.442695
      %v407 = vpow.pop %v406
      %v408 = vmul.f32 %v398, %v405
      %v409 = vmul.f32 %v399, %v407
      %v410 = vsub.f32 1.0, %v408
      %v411 = vsub.f32 1.0, %v409
      %vm412 = vcmp.lt.f32.partialorder %v372, 0.0
      %vm413 = vcmp.lt.f32.partialorder %v373, 0.0
      %v414 = vsub.f32 0.0, %v410
      %v415 = vsub.f32 0.0, %v411
      %v416 = vsel %vm412, %v414, %v410
      %v417 = vsel %vm413, %v415, %v411
      %v418 = vadd.f32 %v416, 1.0
      %v419 = vadd.f32 %v417, 1.0
      %v420 = vmul.f32 %v370, %v418
      %v421 = vmul.f32 %v371, %v419
      %422 = vst [vmem:[%s271] sm:$0xff] %v420
      %423 = vst [vmem:[%s271 + $0x8] sm:$0xff] %v421
      %s424 = smul.u32 2, %s20
      %p425 = scmp.lt.s32.totalorder %s19, 1
      %s426 = scalar_select %p425, %s19, 1
      %p427 = scmp.lt.s32.totalorder %s424, 1
      %s428 = scalar_select %p427, %s424, 1
      %s429 = smul.addr %s426, 2
      %s430 = sadd.s32 %s428, %s429
      %s431 = smul.addr %s430, 8
      %s432 = scalar_lea.vmem %s4, %s431
      // Predicated region
      $region37: #{fno_ensemble_rbc1_forward.25} parent=35 // pred_check
        %p433 = pneg %p145
      $region38: #{fno_ensemble_rbc1_forward.25} parent=35 // pred_check_branch
        %435 = sbr.rel (%p433) target = $region40
      $region39: #{fno_ensemble_rbc1_forward.25} parent=35 // pred_region
        %s436 = smul.u32 2, %s20
      $region40: #{fno_ensemble_rbc1_forward.25} parent=35 // pred_fallthru
        _
    $region36: #{fno_ensemble_rbc1_forward.25} parent=5 // pred_fallthru
      _
    %p437 = scmp.le.s32.totalorder 2, %s10
    // Predicated region
    $region41: #{fno_ensemble_rbc1_forward.25} parent=5 // pred_check
      %p438 = pneg %p437
    $region42: #{fno_ensemble_rbc1_forward.25} parent=5 // pred_check_branch
      %440 = sbr.rel (%p438) target = $region44
    $region43: #{fno_ensemble_rbc1_forward.25} parent=5 // pred_region
      %s441 = ssub.s32 %s10, 2
      // Predicated region
      $region45: #{fno_ensemble_rbc1_forward.25} parent=43 // pred_check
        %p442 = pneg %p151
      $region46: #{fno_ensemble_rbc1_forward.25} parent=43 // pred_check_branch
        %444 = sbr.rel (%p442) target = $region48
      $region47: #{fno_ensemble_rbc1_forward.25} parent=43 // pred_region
        %s445 = smul.u32 2, %s22
        %p446 = scmp.lt.s32.totalorder %s21, 1
        %s447 = scalar_select %p446, %s21, 1
        %p448 = scmp.lt.s32.totalorder %s445, 1
        %s449 = scalar_select %p448, %s445, 1
        %s450 = smul.addr %s447, 2
        %s451 = sadd.s32 %s449, %s450
        %s452 = smul.addr %s451, 8
        %s453 = scalar_lea.vmem %s4, %s452
      $region48: #{fno_ensemble_rbc1_forward.25} parent=43 // pred_fallthru
        _
    $region44: #{fno_ensemble_rbc1_forward.25} parent=5 // pred_fallthru
      _
  $region6: #{fno_ensemble_rbc1_forward.25} parent=0 // loop_footer
    %s14 = sadd.s32 1, %s10
  $region7: #{fno_ensemble_rbc1_forward.25} parent=0 // loop_footer_branch
    %9 = sbr.rel target = $region3
  $region8: #{fno_ensemble_rbc1_forward.25} parent=0 // loop_exit
    _

// kernel: fno_ensemble_rbc1_forward.24
$region0: #{fno_ensemble_rbc1_forward.24}
  #allocation0 [shape = 'u32[]', space=smem, size = 0x4, offset = 0x4, fixed_abs, tag = 'smem constant byte address 0x4 - core index']
  #allocation1 [shape = 'u32[144,128]{1,0:T(1,128)}', space=vmem, size = 0x12000, scoped, tag = 'internal scratch']
  %s0 = inlined_call_operand.vmem [shape: f32[2,10,32], index: 0, kind: input, shape index: {}]
  %s1 = inlined_call_operand.vmem [shape: f32[2,10,32], index: 1, kind: input, shape index: {}]
  %s2 = inlined_call_operand.vmem [shape: f32[10,8,32], index: 2, kind: input, shape index: {}]
  %s3 = inlined_call_operand.vmem [shape: f32[10,8,32], index: 3, kind: input, shape index: {}]
  %s4 = inlined_call_operand.vmem [shape: f32[2,8,32], index: 4, kind: output, shape index: {0}]
  %s5 = inlined_call_operand.vmem [shape: f32[2,8,32], index: 5, kind: output, shape index: {1}]
  %6 = xla_tuple %s4, %s5
  %s7 = sld [smem:[#allocation0]]
  $region57: #{fno_ensemble_rbc1_forward.24} parent=0
    _
  %s9 = ssub.s32 1, %s7
  %s10 = scalar_select 0, %s9, %s7
  loop: start=0, step=1, limit=4
  $region2: #{fno_ensemble_rbc1_forward.24} parent=0 // loop_pre_header
    _
  $region3: #{fno_ensemble_rbc1_forward.24} parent=0 // loop_header
    %s12 = sphi 0, %s16
    %p13 = scmp.ge.s32.totalorder %s12, 4
    %s19 = sphi 0, %s31
    %s20 = sphi 0, %s27
    %s21 = sphi 0, %s19
    %s22 = sphi 0, %s20
    %s23 = sphi 0, %s21
    %s24 = sphi 0, %s22
    %s36 = sphi 0, %s38
    %s39 = sphi 0, %s36
    %s40 = sphi 0, %s39
    %s56 = sphi 0, %s40
    %s64 = sphi 0, %s66
    %s67 = sphi 0, %s64
    %s68 = sphi 0, %s67
    %s84 = sphi 0, %s68
    %s90 = sphi 0, %s92
    %s93 = sphi 0, %s90
    %s94 = sphi 0, %s93
    %s110 = sphi 0, %s94
    %s116 = sphi 0, %s118
    %s119 = sphi 0, %s116
    %s120 = sphi 0, %s119
    %s136 = sphi 0, %s120
    %s144 = sphi 0, %s146
    %s147 = sphi 0, %s144
    %s148 = sphi 0, %s147
    %s164 = sphi 0, %s148
    %s172 = sphi 0, %s174
    %s175 = sphi 0, %s172
    %s176 = sphi 0, %s175
    %s192 = sphi 0, %s176
  $region4: #{fno_ensemble_rbc1_forward.24} parent=0 // loop_header_branch
    %15 = sbr.rel (%p13) target = $region8
  $region5: #{fno_ensemble_rbc1_forward.24} parent=0 // loop_body
    %s17 = ssub.s32 %s12, 1
    %s18 = ssub.s32 %s12, 2
    %s25 = sadd.s32 1, %s20
    %p26 = scmp.ge.s32.totalorder %s25, 1
    %s27 = scalar_select %p26, 0, %s25
    %s28 = sadd.s32 1, %s19
    %s29 = scalar_select %p26, %s28, %s19
    %p30 = scmp.ge.s32.totalorder %s29, 2
    %s31 = scalar_select %p30, 0, %s29
    %s32 = ssub.s32 %s19, %s31
    %s33 = ssub.s32 %s20, %s27
    %s34 = sor.u32 %s32, %s33
    %p35 = scmp.eq.s32.totalorder %s34, 0
    %s37 = sadd.s32 %s36, 1
    %s38 = scalar_select %p35, %s36, %s37
    %p41 = pneg %p35
    %p42 = scmp.eq.s32.totalorder %s12, 1
    %p43 = por %p41, %p42
    %p44 = scmp.ne.s32.totalorder %s36, %s39
    %p45 = scmp.eq.s32.totalorder %s12, 0
    %p46 = por %p44, %p45
    %p47 = scmp.ne.s32.totalorder %s36, %s39
    %p48 = scmp.eq.s32.totalorder %s17, 1
    %p49 = por %p47, %p48
    %p50 = scmp.ne.s32.totalorder %s39, %s40
    %p51 = scmp.eq.s32.totalorder %s17, 0
    %p52 = por %p50, %p51
    %p53 = scmp.ne.s32.totalorder %s39, %s40
    %p54 = scmp.eq.s32.totalorder %s18, 1
    %p55 = por %p53, %p54
    %p57 = scmp.ne.s32.totalorder %s40, %s56
    %p58 = scmp.eq.s32.totalorder %s18, 0
    %p59 = por %p57, %p58
    %s60 = ssub.s32 %s19, %s31
    %s61 = ssub.s32 %s20, %s27
    %s62 = sor.u32 %s60, %s61
    %p63 = scmp.eq.s32.totalorder %s62, 0
    %s65 = sadd.s32 %s64, 1
    %s66 = scalar_select %p63, %s64, %s65
    %p69 = pneg %p63
    %p70 = scmp.eq.s32.totalorder %s12, 1
    %p71 = por %p69, %p70
    %p72 = scmp.ne.s32.totalorder %s64, %s67
    %p73 = scmp.eq.s32.totalorder %s12, 0
    %p74 = por %p72, %p73
    %p75 = scmp.ne.s32.totalorder %s64, %s67
    %p76 = scmp.eq.s32.totalorder %s17, 1
    %p77 = por %p75, %p76
    %p78 = scmp.ne.s32.totalorder %s67, %s68
    %p79 = scmp.eq.s32.totalorder %s17, 0
    %p80 = por %p78, %p79
    %p81 = scmp.ne.s32.totalorder %s67, %s68
    %p82 = scmp.eq.s32.totalorder %s18, 1
    %p83 = por %p81, %p82
    %p85 = scmp.ne.s32.totalorder %s68, %s84
    %p86 = scmp.eq.s32.totalorder %s18, 0
    %p87 = por %p85, %p86
    %s88 = ssub.s32 %s20, %s27
    %p89 = scmp.eq.s32.totalorder %s88, 0
    %s91 = sadd.s32 %s90, 1
    %s92 = scalar_select %p89, %s90, %s91
    %p95 = pneg %p89
    %p96 = scmp.eq.s32.totalorder %s12, 1
    %p97 = por %p95, %p96
    %p98 = scmp.ne.s32.totalorder %s90, %s93
    %p99 = scmp.eq.s32.totalorder %s12, 0
    %p100 = por %p98, %p99
    %p101 = scmp.ne.s32.totalorder %s90, %s93
    %p102 = scmp.eq.s32.totalorder %s17, 1
    %p103 = por %p101, %p102
    %p104 = scmp.ne.s32.totalorder %s93, %s94
    %p105 = scmp.eq.s32.totalorder %s17, 0
    %p106 = por %p104, %p105
    %p107 = scmp.ne.s32.totalorder %s93, %s94
    %p108 = scmp.eq.s32.totalorder %s18, 1
    %p109 = por %p107, %p108
    %p111 = scmp.ne.s32.totalorder %s94, %s110
    %p112 = scmp.eq.s32.totalorder %s18, 0
    %p113 = por %p111, %p112
    %s114 = ssub.s32 %s20, %s27
    %p115 = scmp.eq.s32.totalorder %s114, 0
    %s117 = sadd.s32 %s116, 1
    %s118 = scalar_select %p115, %s116, %s117
    %p121 = pneg %p115
    %p122 = scmp.eq.s32.totalorder %s12, 1
    %p123 = por %p121, %p122
    %p124 = scmp.ne.s32.totalorder %s116, %s119
    %p125 = scmp.eq.s32.totalorder %s12, 0
    %p126 = por %p124, %p125
    %p127 = scmp.ne.s32.totalorder %s116, %s119
    %p128 = scmp.eq.s32.totalorder %s17, 1
    %p129 = por %p127, %p128
    %p130 = scmp.ne.s32.totalorder %s119, %s120
    %p131 = scmp.eq.s32.totalorder %s17, 0
    %p132 = por %p130, %p131
    %p133 = scmp.ne.s32.totalorder %s119, %s120
    %p134 = scmp.eq.s32.totalorder %s18, 1
    %p135 = por %p133, %p134
    %p137 = scmp.ne.s32.totalorder %s120, %s136
    %p138 = scmp.eq.s32.totalorder %s18, 0
    %p139 = por %p137, %p138
    %s140 = ssub.s32 %s19, %s31
    %s141 = ssub.s32 %s20, %s27
    %s142 = sor.u32 %s140, %s141
    %p143 = scmp.eq.s32.totalorder %s142, 0
    %s145 = sadd.s32 %s144, 1
    %s146 = scalar_select %p143, %s144, %s145
    %p149 = pneg %p143
    %p150 = scmp.eq.s32.totalorder %s12, 1
    %p151 = por %p149, %p150
    %p152 = scmp.ne.s32.totalorder %s144, %s147
    %p153 = scmp.eq.s32.totalorder %s12, 0
    %p154 = por %p152, %p153
    %p155 = scmp.ne.s32.totalorder %s144, %s147
    %p156 = scmp.eq.s32.totalorder %s17, 1
    %p157 = por %p155, %p156
    %p158 = scmp.ne.s32.totalorder %s147, %s148
    %p159 = scmp.eq.s32.totalorder %s17, 0
    %p160 = por %p158, %p159
    %p161 = scmp.ne.s32.totalorder %s147, %s148
    %p162 = scmp.eq.s32.totalorder %s18, 1
    %p163 = por %p161, %p162
    %p165 = scmp.ne.s32.totalorder %s148, %s164
    %p166 = scmp.eq.s32.totalorder %s18, 0
    %p167 = por %p165, %p166
    %s168 = ssub.s32 %s19, %s31
    %s169 = ssub.s32 %s20, %s27
    %s170 = sor.u32 %s168, %s169
    %p171 = scmp.eq.s32.totalorder %s170, 0
    %s173 = sadd.s32 %s172, 1
    %s174 = scalar_select %p171, %s172, %s173
    %p177 = pneg %p171
    %p178 = scmp.eq.s32.totalorder %s12, 1
    %p179 = por %p177, %p178
    %p180 = scmp.ne.s32.totalorder %s172, %s175
    %p181 = scmp.eq.s32.totalorder %s12, 0
    %p182 = por %p180, %p181
    %p183 = scmp.ne.s32.totalorder %s172, %s175
    %p184 = scmp.eq.s32.totalorder %s17, 1
    %p185 = por %p183, %p184
    %p186 = scmp.ne.s32.totalorder %s175, %s176
    %p187 = scmp.eq.s32.totalorder %s17, 0
    %p188 = por %p186, %p187
    %p189 = scmp.ne.s32.totalorder %s175, %s176
    %p190 = scmp.eq.s32.totalorder %s18, 1
    %p191 = por %p189, %p190
    %p193 = scmp.ne.s32.totalorder %s176, %s192
    %p194 = scmp.eq.s32.totalorder %s18, 0
    %p195 = por %p193, %p194
    %p196 = scmp.le.s32.totalorder 1, %s12
    %p197 = scmp.lt.s32.totalorder %s12, 3
    %p198 = pnand %p196, %p197
    %p199 = pneg %p198
    // Predicated region
    $region9: #{fno_ensemble_rbc1_forward.24} parent=5 // pred_check
      _
    $region10: #{fno_ensemble_rbc1_forward.24} parent=5 // pred_check_branch
      %201 = sbr.rel (%p198) target = $region12
    $region11: #{fno_ensemble_rbc1_forward.24} parent=5 // pred_region
      %s202 = ssub.s32 %s12, 1
      // Predicated region
      $region13: #{fno_ensemble_rbc1_forward.24} parent=11 // pred_check
        %p203 = pneg %p106
      $region14: #{fno_ensemble_rbc1_forward.24} parent=11 // pred_check_branch
        %205 = sbr.rel (%p203) target = $region16
      $region15: #{fno_ensemble_rbc1_forward.24} parent=11 // pred_region
        %p206 = scmp.lt.s32.totalorder %s22, 0
        %s207 = scalar_select %p206, %s22, 0
        %s208 = smul.addr %s207, 8
        %s209 = scalar_lea.vmem %s2, %s208
      $region16: #{fno_ensemble_rbc1_forward.24} parent=11 // pred_fallthru
        _
      // Predicated region
      $region17: #{fno_ensemble_rbc1_forward.24} parent=11 // pred_check
        %p210 = pneg %p132
      $region18: #{fno_ensemble_rbc1_forward.24} parent=11 // pred_check_branch
        %212 = sbr.rel (%p210) target = $region20
      $region19: #{fno_ensemble_rbc1_forward.24} parent=11 // pred_region
        %p213 = scmp.lt.s32.totalorder %s22, 0
        %s214 = scalar_select %p213, %s22, 0
        %s215 = smul.addr %s214, 8
        %s216 = scalar_lea.vmem %s3, %s215
      $region20: #{fno_ensemble_rbc1_forward.24} parent=11 // pred_fallthru
        _
    $region12: #{fno_ensemble_rbc1_forward.24} parent=5 // pred_fallthru
      _
    %p217 = scmp.lt.s32.totalorder %s12, 2
    // Predicated region
    $region21: #{fno_ensemble_rbc1_forward.24} parent=5 // pred_check
      %p218 = pneg %p217
    $region22: #{fno_ensemble_rbc1_forward.24} parent=5 // pred_check_branch
      %220 = sbr.rel (%p218) target = $region24
    $region23: #{fno_ensemble_rbc1_forward.24} parent=5 // pred_region
      // Predicated region
      $region25: #{fno_ensemble_rbc1_forward.24} parent=23 // pred_check
        %p221 = pneg %p46
      $region26: #{fno_ensemble_rbc1_forward.24} parent=23 // pred_check_branch
        %223 = sbr.rel (%p221) target = $region28
      $region27: #{fno_ensemble_rbc1_forward.24} parent=23 // pred_region
        %p224 = scmp.lt.s32.totalorder %s19, 1
        %s225 = scalar_select %p224, %s19, 1
        %p226 = scmp.lt.s32.totalorder %s20, 0
        %s227 = scalar_select %p226, %s20, 0
        %s228 = smul.addr %s225, 2
        %s229 = sadd.s32 %s227, %s228
        %s230 = smul.addr %s229, 8
        %s231 = scalar_lea.vmem %s0, %s230
      $region28: #{fno_ensemble_rbc1_forward.24} parent=23 // pred_fallthru
        _
      // Predicated region
      $region29: #{fno_ensemble_rbc1_forward.24} parent=23 // pred_check
        %p232 = pneg %p74
      $region30: #{fno_ensemble_rbc1_forward.24} parent=23 // pred_check_branch
        %234 = sbr.rel (%p232) target = $region32
      $region31: #{fno_ensemble_rbc1_forward.24} parent=23 // pred_region
        %p235 = scmp.lt.s32.totalorder %s19, 1
        %s236 = scalar_select %p235, %s19, 1
        %p237 = scmp.lt.s32.totalorder %s20, 0
        %s238 = scalar_select %p237, %s20, 0
        %s239 = smul.addr %s236, 2
        %s240 = sadd.s32 %s238, %s239
        %s241 = smul.addr %s240, 8
        %s242 = scalar_lea.vmem %s1, %s241
      $region32: #{fno_ensemble_rbc1_forward.24} parent=23 // pred_fallthru
        _
    $region24: #{fno_ensemble_rbc1_forward.24} parent=5 // pred_fallthru
      _
    %p243 = scmp.le.s32.totalorder 1, %s12
    %p244 = scmp.lt.s32.totalorder %s12, 3
    %p245 = pnand %p243, %p244
    %p246 = pneg %p245
    // Predicated region
    $region33: #{fno_ensemble_rbc1_forward.24} parent=5 // pred_check
      _
    $region34: #{fno_ensemble_rbc1_forward.24} parent=5 // pred_check_branch
      %248 = sbr.rel (%p245) target = $region36
    $region35: #{fno_ensemble_rbc1_forward.24} parent=5 // pred_region
      %s249 = ssub.s32 %s12, 1
      %p250 = scmp.lt.s32.totalorder %s21, 1
      %s251 = scalar_select %p250, %s21, 1
      %p252 = scmp.lt.s32.totalorder %s22, 0
      %s253 = scalar_select %p252, %s22, 0
      %s254 = smul.addr %s251, 2
      %s255 = sadd.s32 %s253, %s254
      %s256 = smul.addr %s255, 8
      %s257 = scalar_lea.vmem %s0, %s256
      %p258 = pneg %p52
      %p259 = pneg %p49
      %p260 = scmp.lt.s32.totalorder %s21, 1
      %s261 = scalar_select %p260, %s21, 1
      %p262 = scmp.lt.s32.totalorder %s22, 0
      %s263 = scalar_select %p262, %s22, 0
      %s264 = smul.addr %s261, 2
      %s265 = sadd.s32 %s263, %s264
      %s266 = smul.addr %s265, 8
      %s267 = scalar_lea.vmem %s1, %s266
      %p268 = pneg %p80
      %p269 = pneg %p77
      %p270 = scmp.lt.s32.totalorder %s22, 0
      %s271 = scalar_select %p270, %s22, 0
      %s272 = smul.addr %s271, 8
      %s273 = scalar_lea.vmem %s2, %s272
      %p274 = pneg %p106
      %p275 = pneg %p103
      %p276 = scmp.lt.s32.totalorder %s22, 0
      %s277 = scalar_select %p276, %s22, 0
      %s278 = smul.addr %s277, 8
      %s279 = scalar_lea.vmem %s3, %s278
      %p280 = pneg %p132
      %p281 = pneg %p129
      %p282 = pneg %p160
      %p283 = pneg %p157
      %p284 = scmp.lt.s32.totalorder %s21, 1
      %s285 = scalar_select %p284, %s21, 1
      %p286 = scmp.lt.s32.totalorder %s22, 0
      %s287 = scalar_select %p286, %s22, 0
      %s288 = sadd.s32 %s287, %s285
      %s289 = smul.addr %s288, 8
      %s290 = scalar_lea.vmem %s4, %s289
      %p291 = pneg %p188
      %p292 = pneg %p185
      %p293 = scmp.lt.s32.totalorder %s21, 1
      %s294 = scalar_select %p293, %s21, 1
      %p295 = scmp.lt.s32.totalorder %s22, 0
      %s296 = scalar_select %p295, %s22, 0
      %s297 = sadd.s32 %s296, %s294
      %s298 = smul.addr %s297, 8
      %s299 = scalar_lea.vmem %s5, %s298
      %p300 = scmp.lt.s32.totalorder %s21, 1
      %s301 = scalar_select %p300, %s21, 1
      %p302 = scmp.lt.s32.totalorder %s22, 0
      %s303 = scalar_select %p302, %s22, 0
      %s304 = smul.addr %s301, 2
      %s305 = sadd.s32 %s303, %s304
      %s306 = smul.addr %s305, 8
      %s307 = scalar_lea.vmem %s0, %s306
      %p308 = scmp.lt.s32.totalorder %s21, 1
      %s309 = scalar_select %p308, %s21, 1
      %p310 = scmp.lt.s32.totalorder %s22, 0
      %s311 = scalar_select %p310, %s22, 0
      %s312 = smul.addr %s309, 2
      %s313 = sadd.s32 %s311, %s312
      %s314 = smul.addr %s313, 8
      %s315 = scalar_lea.vmem %s1, %s314
      %p316 = scmp.lt.s32.totalorder %s22, 0
      %s317 = scalar_select %p316, %s22, 0
      %s318 = smul.addr %s317, 8
      %s319 = scalar_lea.vmem %s2, %s318
      %p320 = scmp.lt.s32.totalorder %s22, 0
      %s321 = scalar_select %p320, %s22, 0
      %s322 = smul.addr %s321, 8
      %s323 = scalar_lea.vmem %s3, %s322
      %p324 = scmp.lt.s32.totalorder %s21, 1
      %s325 = scalar_select %p324, %s21, 1
      %p326 = scmp.lt.s32.totalorder %s22, 0
      %s327 = scalar_select %p326, %s22, 0
      %s328 = sadd.s32 %s327, %s325
      %s329 = smul.addr %s328, 8
      %s330 = scalar_lea.vmem %s4, %s329
      %p331 = scmp.lt.s32.totalorder %s21, 1
      %s332 = scalar_select %p331, %s21, 1
      %p333 = scmp.lt.s32.totalorder %s22, 0
      %s334 = scalar_select %p333, %s22, 0
      %s335 = sadd.s32 %s334, %s332
      %s336 = smul.addr %s335, 8
      %s337 = scalar_lea.vmem %s5, %s336
      %v338 = vld [vmem:[%s307] sm:$0xff]
      %v339 = vld [vmem:[%s307 + $0x8] sm:$0x3]
      %v340 = vld [vmem:[%s315] sm:$0xff]
      %v341 = vld [vmem:[%s315 + $0x8] sm:$0x3]
      %v342 = vld [vmem:[%s319] sm:$0xff]
      %v343 = vld [vmem:[%s319 + $0x8] sm:$0xff]
      %v344 = vld [vmem:[%s319 + $0x10] sm:$0xff]
      %v345 = vld [vmem:[%s319 + $0x18] sm:$0xff]
      %v346 = vld [vmem:[%s319 + $0x20] sm:$0xff]
      %v347 = vld [vmem:[%s319 + $0x28] sm:$0xff]
      %v348 = vld [vmem:[%s319 + $0x30] sm:$0xff]
      %v349 = vld [vmem:[%s319 + $0x38] sm:$0xff]
      %v350 = vld [vmem:[%s319 + $0x40] sm:$0xff]
      %v351 = vld [vmem:[%s319 + $0x48] sm:$0xff]
      %v352 = vld [vmem:[%s323] sm:$0xff]
      %v353 = vld [vmem:[%s323 + $0x8] sm:$0xff]
      %v354 = vld [vmem:[%s323 + $0x10] sm:$0xff]
      %v355 = vld [vmem:[%s323 + $0x18] sm:$0xff]
      %v356 = vld [vmem:[%s323 + $0x20] sm:$0xff]
      %v357 = vld [vmem:[%s323 + $0x28] sm:$0xff]
      %v358 = vld [vmem:[%s323 + $0x30] sm:$0xff]
      %v359 = vld [vmem:[%s323 + $0x38] sm:$0xff]
      %v360 = vld [vmem:[%s323 + $0x40] sm:$0xff]
      %v361 = vld [vmem:[%s323 + $0x48] sm:$0xff]
      %v362 = vadd.f32 %v338, %v340
      %v363 = vadd.f32 %v339, %v341
      %v364 = vadd.f32 %v342, %v352
      %v365 = vadd.f32 %v343, %v353
      %v366 = vadd.f32 %v344, %v354
      %v367 = vadd.f32 %v345, %v355
      %v368 = vadd.f32 %v346, %v356
      %v369 = vadd.f32 %v347, %v357
      %v370 = vadd.f32 %v348, %v358
      %v371 = vadd.f32 %v349, %v359
      %v372 = vadd.f32 %v350, %v360
      %v373 = vadd.f32 %v351, %v361
      %v374 = vlaneseq
      %v375 = vshrl.u32 %v374, 7
      %v376 = vsub.s32 0, %v375
      %v377 = vrot.slane %v338, %v376
      %v378 = vmul.f32 %v377, %v342
      %v379 = vadd.f32 %v378, 0.0
      %v380 = vlaneseq
      %v381 = vshrl.u32 %v380, 7
      %v382 = vsub.s32 0, %v381
      %v383 = vrot.slane %v340, %v382
      %v384 = vmul.f32 %v383, %v352
      %v385 = vadd.f32 %v384, 0.0
      %v386 = vlaneseq
      %v387 = vshrl.u32 %v386, 7
      %v388 = vsub.s32 0, %v387
      %v389 = vrot.slane %v362, %v388
      %v390 = vmul.f32 %v389, %v364
      %v391 = vadd.f32 %v390, 0.0
      %v392 = vlaneseq
      %v393 = vshrl.u32 %v392, 7
      %v394 = vsub.s32 1, %v393
      %v395 = vrot.slane %v338, %v394
      %v396 = vmul.f32 %v395, %v343
      %v397 = vadd.f32 %v379, %v396
      %v398 = vlaneseq
      %v399 = vshrl.u32 %v398, 7
      %v400 = vsub.s32 1, %v399
      %v401 = vrot.slane %v340, %v400
      %v402 = vmul.f32 %v401, %v353
      %v403 = vadd.f32 %v385, %v402
      %v404 = vlaneseq
      %v405 = vshrl.u32 %v404, 7
      %v406 = vsub.s32 1, %v405
      %v407 = vrot.slane %v362, %v406
      %v408 = vmul.f32 %v407, %v365
      %v409 = vadd.f32 %v391, %v408
      %v410 = vlaneseq
      %v411 = vshrl.u32 %v410, 7
      %v412 = vsub.s32 2, %v411
      %v413 = vrot.slane %v338, %v412
      %v414 = vmul.f32 %v413, %v344
      %v415 = vadd.f32 %v397, %v414
      %v416 = vlaneseq
      %v417 = vshrl.u32 %v416, 7
      %v418 = vsub.s32 2, %v417
      %v419 = vrot.slane %v340, %v418
      %v420 = vmul.f32 %v419, %v354
      %v421 = vadd.f32 %v403, %v420
      %v422 = vlaneseq
      %v423 = vshrl.u32 %v422, 7
      %v424 = vsub.s32 2, %v423
      %v425 = vrot.slane %v362, %v424
      %v426 = vmul.f32 %v425, %v366
      %v427 = vadd.f32 %v409, %v426
      %v428 = vlaneseq
      %v429 = vshrl.u32 %v428, 7
      %v430 = vsub.s32 3, %v429
      %v431 = vrot.slane %v338, %v430
      %v432 = vmul.f32 %v431, %v345
      %v433 = vadd.f32 %v415, %v432
      %v434 = vlaneseq
      %v435 = vshrl.u32 %v434, 7
      %v436 = vsub.s32 3, %v435
      %v437 = vrot.slane %v340, %v436
      %v438 = vmul.f32 %v437, %v355
      %v439 = vadd.f32 %v421, %v438
      %v440 = vlaneseq
      %v441 = vshrl.u32 %v440, 7
      %v442 = vsub.s32 3, %v441
      %v443 = vrot.slane %v362, %v442
      %v444 = vmul.f32 %v443, %v367
      %v445 = vadd.f32 %v427, %v444
      %v446 = vlaneseq
      %v447 = vshrl.u32 %v446, 7
      %v448 = vsub.s32 4, %v447
      %v449 = vrot.slane %v338, %v448
      %v450 = vmul.f32 %v449, %v346
      %v451 = vadd.f32 %v433, %v450
      %v452 = vlaneseq
      %v453 = vshrl.u32 %v452, 7
      %v454 = vsub.s32 4, %v453
      %v455 = vrot.slane %v340, %v454
      %v456 = vmul.f32 %v455, %v356
      %v457 = vadd.f32 %v439, %v456
      %v458 = vlaneseq
      %v459 = vshrl.u32 %v458, 7
      %v460 = vsub.s32 4, %v459
      %v461 = vrot.slane %v362, %v460
      %v462 = vmul.f32 %v461, %v368
      %v463 = vadd.f32 %v445, %v462
      %v464 = vlaneseq
      %v465 = vshrl.u32 %v464, 7
      %v466 = vsub.s32 5, %v465
      %v467 = vrot.slane %v338, %v466
      %v468 = vmul.f32 %v467, %v347
      %v469 = vadd.f32 %v451, %v468
      %v470 = vlaneseq
      %v471 = vshrl.u32 %v470, 7
      %v472 = vsub.s32 5, %v471
      %v473 = vrot.slane %v340, %v472
      %v474 = vmul.f32 %v473, %v357
      %v475 = vadd.f32 %v457, %v474
      %v476 = vlaneseq
      %v477 = vshrl.u32 %v476, 7
      %v478 = vsub.s32 5, %v477
      %v479 = vrot.slane %v362, %v478
      %v480 = vmul.f32 %v479, %v369
      %v481 = vadd.f32 %v463, %v480
      %v482 = vlaneseq
      %v483 = vshrl.u32 %v482, 7
      %v484 = vsub.s32 6, %v483
      %v485 = vrot.slane %v338, %v484
      %v486 = vmul.f32 %v485, %v348
      %v487 = vadd.f32 %v469, %v486
      %v488 = vlaneseq
      %v489 = vshrl.u32 %v488, 7
      %v490 = vsub.s32 6, %v489
      %v491 = vrot.slane %v340, %v490
      %v492 = vmul.f32 %v491, %v358
      %v493 = vadd.f32 %v475, %v492
      %v494 = vlaneseq
      %v495 = vshrl.u32 %v494, 7
      %v496 = vsub.s32 6, %v495
      %v497 = vrot.slane %v362, %v496
      %v498 = vmul.f32 %v497, %v370
      %v499 = vadd.f32 %v481, %v498
      %v500 = vlaneseq
      %v501 = vshrl.u32 %v500, 7
      %v502 = vsub.s32 7, %v501
      %v503 = vrot.slane %v338, %v502
      %v504 = vmul.f32 %v503, %v349
      %v505 = vadd.f32 %v487, %v504
      %v506 = vlaneseq
      %v507 = vshrl.u32 %v506, 7
      %v508 = vsub.s32 7, %v507
      %v509 = vrot.slane %v340, %v508
      %v510 = vmul.f32 %v509, %v359
      %v511 = vadd.f32 %v493, %v510
      %v512 = vlaneseq
      %v513 = vshrl.u32 %v512, 7
      %v514 = vsub.s32 7, %v513
      %v515 = vrot.slane %v362, %v514
      %v516 = vmul.f32 %v515, %v371
      %v517 = vadd.f32 %v499, %v516
      %v518 = vlaneseq
      %v519 = vshrl.u32 %v518, 7
      %v520 = vsub.s32 0, %v519
      %v521 = vrot.slane %v339, %v520
      %v522 = vmul.f32 %v521, %v350
      %v523 = vadd.f32 %v505, %v522
      %v524 = vlaneseq
      %v525 = vshrl.u32 %v524, 7
      %v526 = vsub.s32 0, %v525
      %v527 = vrot.slane %v341, %v526
      %v528 = vmul.f32 %v527, %v360
      %v529 = vadd.f32 %v511, %v528
      %v530 = vlaneseq
      %v531 = vshrl.u32 %v530, 7
      %v532 = vsub.s32 0, %v531
      %v533 = vrot.slane %v363, %v532
      %v534 = vmul.f32 %v533, %v372
      %v535 = vadd.f32 %v517, %v534
      %v536 = vlaneseq
      %v537 = vshrl.u32 %v536, 7
      %v538 = vsub.s32 1, %v537
      %v539 = vrot.slane %v339, %v538
      %v540 = vmul.f32 %v539, %v351
      %v541 = vadd.f32 %v523, %v540
      %v542 = vlaneseq
      %v543 = vshrl.u32 %v542, 7
      %v544 = vsub.s32 1, %v543
      %v545 = vrot.slane %v341, %v544
      %v546 = vmul.f32 %v545, %v361
      %v547 = vadd.f32 %v529, %v546
      %v548 = vlaneseq
      %v549 = vshrl.u32 %v548, 7
      %v550 = vsub.s32 1, %v549
      %v551 = vrot.slane %v363, %v550
      %v552 = vmul.f32 %v551, %v373
      %v553 = vadd.f32 %v535, %v552
      %v554 = vsub.f32 %v541, %v547
      %vm555 = vcmask 261120
      %556 = vst.msk [vmem:[%s330] sm:$0xff] %vm555, %v554
      %v557 = vsub.f32 %v553, %v541
      %v558 = vsub.f32 %v557, %v547
      %559 = vst.msk [vmem:[%s337] sm:$0xff] %vm555, %v558
      %p560 = scmp.lt.s32.totalorder %s21, 1
      %s561 = scalar_select %p560, %s21, 1
      %p562 = scmp.lt.s32.totalorder %s22, 0
      %s563 = scalar_select %p562, %s22, 0
      %s564 = sadd.s32 %s563, %s561
      %s565 = smul.addr %s564, 8
      %s566 = scalar_lea.vmem %s4, %s565
      %p567 = scmp.lt.s32.totalorder %s21, 1
      %s568 = scalar_select %p567, %s21, 1
      %p569 = scmp.lt.s32.totalorder %s22, 0
      %s570 = scalar_select %p569, %s22, 0
      %s571 = sadd.s32 %s570, %s568
      %s572 = smul.addr %s571, 8
      %s573 = scalar_lea.vmem %s5, %s572
      // Predicated region
      $region37: #{fno_ensemble_rbc1_forward.24} parent=35 // pred_check
        %p574 = pneg %p157
      $region38: #{fno_ensemble_rbc1_forward.24} parent=35 // pred_check_branch
        %576 = sbr.rel (%p574) target = $region40
      $region39: #{fno_ensemble_rbc1_forward.24} parent=35 // pred_region
        _
      $region40: #{fno_ensemble_rbc1_forward.24} parent=35 // pred_fallthru
        _
      // Predicated region
      $region41: #{fno_ensemble_rbc1_forward.24} parent=35 // pred_check
        %p577 = pneg %p185
      $region42: #{fno_ensemble_rbc1_forward.24} parent=35 // pred_check_branch
        %579 = sbr.rel (%p577) target = $region44
      $region43: #{fno_ensemble_rbc1_forward.24} parent=35 // pred_region
        _
      $region44: #{fno_ensemble_rbc1_forward.24} parent=35 // pred_fallthru
        _
    $region36: #{fno_ensemble_rbc1_forward.24} parent=5 // pred_fallthru
      _
    %p580 = scmp.le.s32.totalorder 2, %s12
    // Predicated region
    $region45: #{fno_ensemble_rbc1_forward.24} parent=5 // pred_check
      %p581 = pneg %p580
    $region46: #{fno_ensemble_rbc1_forward.24} parent=5 // pred_check_branch
      %583 = sbr.rel (%p581) target = $region48
    $region47: #{fno_ensemble_rbc1_forward.24} parent=5 // pred_region
      %s584 = ssub.s32 %s12, 2
      // Predicated region
      $region49: #{fno_ensemble_rbc1_forward.24} parent=47 // pred_check
        %p585 = pneg %p163
      $region50: #{fno_ensemble_rbc1_forward.24} parent=47 // pred_check_branch
        %587 = sbr.rel (%p585) target = $region52
      $region51: #{fno_ensemble_rbc1_forward.24} parent=47 // pred_region
        %p588 = scmp.lt.s32.totalorder %s23, 1
        %s589 = scalar_select %p588, %s23, 1
        %p590 = scmp.lt.s32.totalorder %s24, 0
        %s591 = scalar_select %p590, %s24, 0
        %s592 = sadd.s32 %s591, %s589
        %s593 = smul.addr %s592, 8
        %s594 = scalar_lea.vmem %s4, %s593
      $region52: #{fno_ensemble_rbc1_forward.24} parent=47 // pred_fallthru
        _
      // Predicated region
      $region53: #{fno_ensemble_rbc1_forward.24} parent=47 // pred_check
        %p595 = pneg %p191
      $region54: #{fno_ensemble_rbc1_forward.24} parent=47 // pred_check_branch
        %597 = sbr.rel (%p595) target = $region56
      $region55: #{fno_ensemble_rbc1_forward.24} parent=47 // pred_region
        %p598 = scmp.lt.s32.totalorder %s23, 1
        %s599 = scalar_select %p598, %s23, 1
        %p600 = scmp.lt.s32.totalorder %s24, 0
        %s601 = scalar_select %p600, %s24, 0
        %s602 = sadd.s32 %s601, %s599
        %s603 = smul.addr %s602, 8
        %s604 = scalar_lea.vmem %s5, %s603
      $region56: #{fno_ensemble_rbc1_forward.24} parent=47 // pred_fallthru
        _
    $region48: #{fno_ensemble_rbc1_forward.24} parent=5 // pred_fallthru
      _
  $region6: #{fno_ensemble_rbc1_forward.24} parent=0 // loop_footer
    %s16 = sadd.s32 1, %s12
  $region7: #{fno_ensemble_rbc1_forward.24} parent=0 // loop_footer_branch
    %11 = sbr.rel target = $region3
  $region8: #{fno_ensemble_rbc1_forward.24} parent=0 // loop_exit
    _

</llo_original>
